<compile_context>
chip_gen: v7x
topology: tpu7x:2x2x1
jax: 0.10.0
libtpu: 0.0.40
codegen_flags: <defaults>
</compile_context>

<pallas_src>
import jax
import jax.numpy as jnp
from jax.experimental import pallas as pl
from jax.experimental.pallas import tpu as pltpu


def _conv_bn_relu_pool_kernel(p_ref, w_ref, g_ref, beta_ref, o_ref, acc_ref):
    """One ActiveMnistCnn block (conv3x3 -> train-mode BN -> ReLU -> maxpool2x2).

    p_ref:    (4, Npool, 9*Cin) im2col patches, one row-block per 2x2 pool
              parity; contraction dim ordered (dy, dx, cin) to match w_ref.
    w_ref:    (9*Cin, Cout)     conv weights (HWIO flattened).
    g_ref:    (1, Cout)         BN gamma.
    beta_ref: (1, Cout)         BN beta.
    o_ref:    (Npool, Cout)     pooled output, Npool = B*(H//2)*(W//2).
    acc_ref:  (4, Npool, Cout)  f32 VMEM scratch for the 4 parity conv outputs.
    """
    npool = p_ref.shape[1]
    cout = o_ref.shape[1]
    cnt = 4.0 * npool  # number of BN pixels = B*H*W

    # ---- Convolution: one K-fused MXU matmul per pool-parity group.
    # The conv bias is intentionally omitted: training-mode BN subtracts the
    # per-channel batch mean, which cancels a per-channel bias exactly. ----
    s1 = jnp.zeros((1, cout), jnp.float32)
    s2 = jnp.zeros((1, cout), jnp.float32)
    for pq in range(4):
        a = jnp.dot(p_ref[pq], w_ref[...], preferred_element_type=jnp.float32)
        acc_ref[pq] = a
        # Single-pass BN statistics, fused with the conv matmuls.
        s1 = s1 + jnp.sum(a, axis=0, keepdims=True)
        s2 = s2 + jnp.sum(a * a, axis=0, keepdims=True)

    # ---- BatchNorm2d (training mode): biased variance, eps = 1e-5.
    # One-pass var = E[x^2] - E[x]^2 is slightly less numerically stable than
    # the two-pass form; fine at these magnitudes / tolerances. ----
    mean = s1 / cnt
    var = jnp.maximum(s2 / cnt - mean * mean, 0.0)
    scale = g_ref[...] * jax.lax.rsqrt(var + 1e-5)
    shift = beta_ref[...] - mean * scale

    # ---- ReLU then 2x2/stride-2 max-pool (= max over the 4 parity groups). ----
    pooled = jnp.maximum(acc_ref[0] * scale + shift, 0.0)
    for pq in range(1, 4):
        pooled = jnp.maximum(pooled,
                             jnp.maximum(acc_ref[pq] * scale + shift, 0.0))
    o_ref[...] = pooled


def conv_block(x, w, gamma, beta):
    """x: (B, H, W, Cin) float32 NHWC -> (B, H//2, W//2, Cout)."""
    B, H, W, Cin = x.shape
    Cout = w.shape[-1]
    Ho, Wo = H // 2, W // 2
    npool = B * Ho * Wo

    # Glue: zero-pad + im2col grouped by 2x2 pool parity (p, q); the 9 conv
    # taps are packed onto the lane/contraction axis in (dy, dx, cin) order.
    # TODO(synk): for large batches this should become an in-kernel im2col fed
    # by a gridded, double-buffered pipeline over the npool axis (two-phase BN,
    # 'parallel' npool axis for v7x's 2 TCs); at these sizes everything fits in
    # VMEM in a single shot, so whole-array residency is used instead.
    xp = jnp.pad(x, ((0, 0), (1, 1), (1, 1), (0, 0)))
    groups = []
    for p in range(2):
        for q in range(2):
            taps = []
            for dy in range(3):
                for dx in range(3):
                    taps.append(
                        xp[:, p + dy:p + dy + H:2, q + dx:q + dx + W:2, :]
                        .reshape(npool, Cin))
            groups.append(jnp.concatenate(taps, axis=-1))       # (npool, 9*Cin)
    patches = jnp.stack(groups, axis=0)                         # (4, npool, 9*Cin)
    w_flat = w.reshape(9 * Cin, Cout)                           # (dy,dx,cin)-major

    out = pl.pallas_call(
        _conv_bn_relu_pool_kernel,
        out_shape=jax.ShapeDtypeStruct((npool, Cout), jnp.float32),
        in_specs=[pl.BlockSpec(memory_space=pltpu.MemorySpace.VMEM)] * 4,
        out_specs=pl.BlockSpec(memory_space=pltpu.MemorySpace.VMEM),
        scratch_shapes=[pltpu.VMEM((4, npool, Cout), jnp.float32)],
    )(patches, w_flat, gamma.reshape(1, Cout), beta.reshape(1, Cout))
    return out.reshape(B, Ho, Wo, Cout)


def active_mnist_cnn_forward(x_nchw, params):
    """Forward pass of ActiveMnistCnn.  x_nchw: (B, 1, H, W) float32."""
    x = jnp.transpose(x_nchw, (0, 2, 3, 1))             # NCHW -> NHWC
    # Conv biases b1/b2/b3 are not passed to the kernels: a per-channel bias
    # ahead of training-mode BatchNorm is exactly cancelled by the mean
    # subtraction (the reference below keeps them and still matches).
    x = conv_block(x, params["w1"], params["g1"], params["be1"])
    x = conv_block(x, params["w2"], params["g2"], params["be2"])
    x = conv_block(x, params["w3"], params["g3"], params["be3"])
    # nn.Flatten on NCHW => channel-major flatten.
    x = jnp.transpose(x, (0, 3, 1, 2))
    return x.reshape(x.shape[0], -1)


def init_params(key):
    """Deterministic synthetic parameters (shapes from the module __init__)."""
    ks = jax.random.split(key, 6)

    def w(k, shape):
        return 0.1 * jax.random.normal(k, shape, jnp.float32)

    return {
        "w1": w(ks[0], (3, 3, 1, 32)),   "b1": w(ks[1], (32,)),
        "g1": jnp.ones((32,), jnp.float32), "be1": jnp.zeros((32,), jnp.float32),
        "w2": w(ks[2], (3, 3, 32, 64)),  "b2": w(ks[3], (64,)),
        "g2": jnp.ones((64,), jnp.float32), "be2": jnp.zeros((64,), jnp.float32),
        "w3": w(ks[4], (3, 3, 64, 128)), "b3": w(ks[5], (128,)),
        "g3": jnp.ones((128,), jnp.float32), "be3": jnp.zeros((128,), jnp.float32),
    }


def reference_forward(x_nchw, p):
    """Pure-JAX reference of the PyTorch forward (training-mode BatchNorm)."""
    x = jnp.transpose(x_nchw, (0, 2, 3, 1))

    def block(x, w, b, g, be):
        y = jax.lax.conv_general_dilated(
            x, w, window_strides=(1, 1), padding="SAME",
            dimension_numbers=("NHWC", "HWIO", "NHWC")) + b
        mean = jnp.mean(y, axis=(0, 1, 2), keepdims=True)
        var = jnp.mean(jnp.square(y - mean), axis=(0, 1, 2), keepdims=True)
        y = (y - mean) * jax.lax.rsqrt(var + 1e-5) * g + be
        y = jnp.maximum(y, 0.0)
        return jax.lax.reduce_window(y, -jnp.inf, jax.lax.max,
                                     (1, 2, 2, 1), (1, 2, 2, 1), "VALID")

    x = block(x, p["w1"], p["b1"], p["g1"], p["be1"])
    x = block(x, p["w2"], p["b2"], p["g2"], p["be2"])
    x = block(x, p["w3"], p["b3"], p["g3"], p["be3"])
    x = jnp.transpose(x, (0, 3, 1, 2))
    return x.reshape(x.shape[0], -1)


if __name__ == "__main__":
    # TODO(synk): BatchNorm running_mean/running_var buffer updates (a training-
    # mode side effect of the PyTorch forward) are not modeled; they do not
    # affect the returned tensor.
    B, H, W = 2, 16, 16
    x = jax.random.normal(jax.random.PRNGKey(0), (B, 1, H, W), jnp.float32)
    params = init_params(jax.random.PRNGKey(42))

    out = jax.jit(active_mnist_cnn_forward)(x, params)
    out = jax.block_until_ready(out)
    assert out.shape == (B, 128 * (H // 8) * (W // 8)), out.shape

    ref = reference_forward(x, params)
    max_err = float(jnp.max(jnp.abs(out - ref)))
    if not bool(jnp.allclose(out, ref, atol=3e-2, rtol=3e-2)):
        raise AssertionError(f"Pallas output mismatch vs reference, max_err={max_err}")
    print("KERNEL_OK")
</pallas_src>

<mosaic_0001>
module attributes {stable_mosaic.version = 11 : i64} {
  func.func @_conv_bn_relu_pool_kernel(%arg0: memref<4x128x9xf32, #tpu.memory_space<vmem>>, %arg1: memref<9x32xf32, #tpu.memory_space<vmem>>, %arg2: memref<1x32xf32, #tpu.memory_space<vmem>>, %arg3: memref<1x32xf32, #tpu.memory_space<vmem>>, %arg4: memref<128x32xf32, #tpu.memory_space<vmem>>, %arg5: memref<4x128x32xf32, #tpu.memory_space<vmem>>) attributes {dimension_semantics = [], scalar_prefetch = 0 : i64, scratch_operands = 1 : i64, tpu.core_type = #tpu.core_type<tc>} {
    %cst = arith.constant 0.000000e+00 : f32
    %0 = vector.broadcast %cst : f32 to vector<1x32xf32>
    %cst_0 = arith.constant 0.000000e+00 : f32
    %1 = vector.broadcast %cst_0 : f32 to vector<1x32xf32>
    %c0 = arith.constant 0 : index
    %c0_1 = arith.constant 0 : index
    %c0_2 = arith.constant 0 : index
    %2 = vector.load %arg0[%c0, %c0_1, %c0_2] : memref<4x128x9xf32, #tpu.memory_space<vmem>>, vector<1x128x9xf32>
    %3 = vector.shape_cast %2 : vector<1x128x9xf32> to vector<128x9xf32>
    %c0_3 = arith.constant 0 : index
    %c0_4 = arith.constant 0 : index
    %4 = vector.load %arg1[%c0_3, %c0_4] : memref<9x32xf32, #tpu.memory_space<vmem>>, vector<9x32xf32>
    %cst_5 = arith.constant dense<0.000000e+00> : vector<128x32xf32>
    %5 = tpu.matmul %3, %4, %cst_5 {dimension_numbers = #tpu.dot_dimension_numbers<[1], [0], [0], [1], [0, 0, 1, 1], [], []>} : vector<128x9xf32>, vector<9x32xf32>, vector<128x32xf32> -> vector<128x32xf32>
    %c0_6 = arith.constant 0 : index
    %c0_7 = arith.constant 0 : index
    %c0_8 = arith.constant 0 : index
    %6 = vector.load %arg5[%c0_6, %c0_7, %c0_8] : memref<4x128x32xf32, #tpu.memory_space<vmem>>, vector<1x128x32xf32>
    %7 = vector.shape_cast %6 : vector<1x128x32xf32> to vector<128x32xf32>
    %8 = vector.shape_cast %5 : vector<128x32xf32> to vector<1x128x32xf32>
    tpu.vector_store %arg5[%c0_6, %c0_7, %c0_8], %8 {strides = array<i32>} : memref<4x128x32xf32, #tpu.memory_space<vmem>>, vector<1x128x32xf32>,
    %cst_9 = arith.constant dense<0.000000e+00> : vector<32xf32>
    %9 = vector.multi_reduction <add>, %5, %cst_9 [0] : vector<128x32xf32> to vector<32xf32>
    %10 = vector.shape_cast %9 : vector<32xf32> to vector<1x32xf32>
    %11 = arith.addf %0, %10 : vector<1x32xf32>
    %12 = arith.mulf %5, %5 : vector<128x32xf32>
    %cst_10 = arith.constant dense<0.000000e+00> : vector<32xf32>
    %13 = vector.multi_reduction <add>, %12, %cst_10 [0] : vector<128x32xf32> to vector<32xf32>
    %14 = vector.shape_cast %13 : vector<32xf32> to vector<1x32xf32>
    %15 = arith.addf %1, %14 : vector<1x32xf32>
    %c1 = arith.constant 1 : index
    %c0_11 = arith.constant 0 : index
    %c0_12 = arith.constant 0 : index
    %16 = vector.load %arg0[%c1, %c0_11, %c0_12] : memref<4x128x9xf32, #tpu.memory_space<vmem>>, vector<1x128x9xf32>
    %17 = vector.shape_cast %16 : vector<1x128x9xf32> to vector<128x9xf32>
    %c0_13 = arith.constant 0 : index
    %c0_14 = arith.constant 0 : index
    %18 = vector.load %arg1[%c0_13, %c0_14] : memref<9x32xf32, #tpu.memory_space<vmem>>, vector<9x32xf32>
    %cst_15 = arith.constant dense<0.000000e+00> : vector<128x32xf32>
    %19 = tpu.matmul %17, %18, %cst_15 {dimension_numbers = #tpu.dot_dimension_numbers<[1], [0], [0], [1], [0, 0, 1, 1], [], []>} : vector<128x9xf32>, vector<9x32xf32>, vector<128x32xf32> -> vector<128x32xf32>
    %c1_16 = arith.constant 1 : index
    %c0_17 = arith.constant 0 : index
    %c0_18 = arith.constant 0 : index
    %20 = vector.load %arg5[%c1_16, %c0_17, %c0_18] : memref<4x128x32xf32, #tpu.memory_space<vmem>>, vector<1x128x32xf32>
    %21 = vector.shape_cast %20 : vector<1x128x32xf32> to vector<128x32xf32>
    %22 = vector.shape_cast %19 : vector<128x32xf32> to vector<1x128x32xf32>
    tpu.vector_store %arg5[%c1_16, %c0_17, %c0_18], %22 {strides = array<i32>} : memref<4x128x32xf32, #tpu.memory_space<vmem>>, vector<1x128x32xf32>,
    %cst_19 = arith.constant dense<0.000000e+00> : vector<32xf32>
    %23 = vector.multi_reduction <add>, %19, %cst_19 [0] : vector<128x32xf32> to vector<32xf32>
    %24 = vector.shape_cast %23 : vector<32xf32> to vector<1x32xf32>
    %25 = arith.addf %11, %24 : vector<1x32xf32>
    %26 = arith.mulf %19, %19 : vector<128x32xf32>
    %cst_20 = arith.constant dense<0.000000e+00> : vector<32xf32>
    %27 = vector.multi_reduction <add>, %26, %cst_20 [0] : vector<128x32xf32> to vector<32xf32>
    %28 = vector.shape_cast %27 : vector<32xf32> to vector<1x32xf32>
    %29 = arith.addf %15, %28 : vector<1x32xf32>
    %c2 = arith.constant 2 : index
    %c0_21 = arith.constant 0 : index
    %c0_22 = arith.constant 0 : index
    %30 = vector.load %arg0[%c2, %c0_21, %c0_22] : memref<4x128x9xf32, #tpu.memory_space<vmem>>, vector<1x128x9xf32>
    %31 = vector.shape_cast %30 : vector<1x128x9xf32> to vector<128x9xf32>
    %c0_23 = arith.constant 0 : index
    %c0_24 = arith.constant 0 : index
    %32 = vector.load %arg1[%c0_23, %c0_24] : memref<9x32xf32, #tpu.memory_space<vmem>>, vector<9x32xf32>
    %cst_25 = arith.constant dense<0.000000e+00> : vector<128x32xf32>
    %33 = tpu.matmul %31, %32, %cst_25 {dimension_numbers = #tpu.dot_dimension_numbers<[1], [0], [0], [1], [0, 0, 1, 1], [], []>} : vector<128x9xf32>, vector<9x32xf32>, vector<128x32xf32> -> vector<128x32xf32>
    %c2_26 = arith.constant 2 : index
    %c0_27 = arith.constant 0 : index
    %c0_28 = arith.constant 0 : index
    %34 = vector.load %arg5[%c2_26, %c0_27, %c0_28] : memref<4x128x32xf32, #tpu.memory_space<vmem>>, vector<1x128x32xf32>
    %35 = vector.shape_cast %34 : vector<1x128x32xf32> to vector<128x32xf32>
    %36 = vector.shape_cast %33 : vector<128x32xf32> to vector<1x128x32xf32>
    tpu.vector_store %arg5[%c2_26, %c0_27, %c0_28], %36 {strides = array<i32>} : memref<4x128x32xf32, #tpu.memory_space<vmem>>, vector<1x128x32xf32>,
    %cst_29 = arith.constant dense<0.000000e+00> : vector<32xf32>
    %37 = vector.multi_reduction <add>, %33, %cst_29 [0] : vector<128x32xf32> to vector<32xf32>
    %38 = vector.shape_cast %37 : vector<32xf32> to vector<1x32xf32>
    %39 = arith.addf %25, %38 : vector<1x32xf32>
    %40 = arith.mulf %33, %33 : vector<128x32xf32>
    %cst_30 = arith.constant dense<0.000000e+00> : vector<32xf32>
    %41 = vector.multi_reduction <add>, %40, %cst_30 [0] : vector<128x32xf32> to vector<32xf32>
    %42 = vector.shape_cast %41 : vector<32xf32> to vector<1x32xf32>
    %43 = arith.addf %29, %42 : vector<1x32xf32>
    %c3 = arith.constant 3 : index
    %c0_31 = arith.constant 0 : index
    %c0_32 = arith.constant 0 : index
    %44 = vector.load %arg0[%c3, %c0_31, %c0_32] : memref<4x128x9xf32, #tpu.memory_space<vmem>>, vector<1x128x9xf32>
    %45 = vector.shape_cast %44 : vector<1x128x9xf32> to vector<128x9xf32>
    %c0_33 = arith.constant 0 : index
    %c0_34 = arith.constant 0 : index
    %46 = vector.load %arg1[%c0_33, %c0_34] : memref<9x32xf32, #tpu.memory_space<vmem>>, vector<9x32xf32>
    %cst_35 = arith.constant dense<0.000000e+00> : vector<128x32xf32>
    %47 = tpu.matmul %45, %46, %cst_35 {dimension_numbers = #tpu.dot_dimension_numbers<[1], [0], [0], [1], [0, 0, 1, 1], [], []>} : vector<128x9xf32>, vector<9x32xf32>, vector<128x32xf32> -> vector<128x32xf32>
    %c3_36 = arith.constant 3 : index
    %c0_37 = arith.constant 0 : index
    %c0_38 = arith.constant 0 : index
    %48 = vector.load %arg5[%c3_36, %c0_37, %c0_38] : memref<4x128x32xf32, #tpu.memory_space<vmem>>, vector<1x128x32xf32>
    %49 = vector.shape_cast %48 : vector<1x128x32xf32> to vector<128x32xf32>
    %50 = vector.shape_cast %47 : vector<128x32xf32> to vector<1x128x32xf32>
    tpu.vector_store %arg5[%c3_36, %c0_37, %c0_38], %50 {strides = array<i32>} : memref<4x128x32xf32, #tpu.memory_space<vmem>>, vector<1x128x32xf32>,
    %cst_39 = arith.constant dense<0.000000e+00> : vector<32xf32>
    %51 = vector.multi_reduction <add>, %47, %cst_39 [0] : vector<128x32xf32> to vector<32xf32>
    %52 = vector.shape_cast %51 : vector<32xf32> to vector<1x32xf32>
    %53 = arith.addf %39, %52 : vector<1x32xf32>
    %54 = arith.mulf %47, %47 : vector<128x32xf32>
    %cst_40 = arith.constant dense<0.000000e+00> : vector<32xf32>
    %55 = vector.multi_reduction <add>, %54, %cst_40 [0] : vector<128x32xf32> to vector<32xf32>
    %56 = vector.shape_cast %55 : vector<32xf32> to vector<1x32xf32>
    %57 = arith.addf %43, %56 : vector<1x32xf32>
    %cst_41 = arith.constant 5.120000e+02 : f32
    %58 = vector.broadcast %cst_41 : f32 to vector<1x32xf32>
    %59 = arith.divf %53, %58 : vector<1x32xf32>
    %cst_42 = arith.constant 5.120000e+02 : f32
    %60 = vector.broadcast %cst_42 : f32 to vector<1x32xf32>
    %61 = arith.divf %57, %60 : vector<1x32xf32>
    %62 = arith.mulf %59, %59 : vector<1x32xf32>
    %63 = arith.subf %61, %62 : vector<1x32xf32>
    %cst_43 = arith.constant 0.000000e+00 : f32
    %64 = vector.broadcast %cst_43 : f32 to vector<1x32xf32>
    %65 = arith.maximumf %63, %64 : vector<1x32xf32>
    %c0_44 = arith.constant 0 : index
    %c0_45 = arith.constant 0 : index
    %66 = vector.load %arg2[%c0_44, %c0_45] : memref<1x32xf32, #tpu.memory_space<vmem>>, vector<1x32xf32>
    %cst_46 = arith.constant 9.99999974E-6 : f32
    %67 = vector.broadcast %cst_46 : f32 to vector<1x32xf32>
    %68 = arith.addf %65, %67 : vector<1x32xf32>
    %69 = math.rsqrt %68 : vector<1x32xf32>
    %70 = arith.mulf %66, %69 : vector<1x32xf32>
    %c0_47 = arith.constant 0 : index
    %c0_48 = arith.constant 0 : index
    %71 = vector.load %arg3[%c0_47, %c0_48] : memref<1x32xf32, #tpu.memory_space<vmem>>, vector<1x32xf32>
    %72 = arith.mulf %59, %70 : vector<1x32xf32>
    %73 = arith.subf %71, %72 : vector<1x32xf32>
    %c0_49 = arith.constant 0 : index
    %c0_50 = arith.constant 0 : index
    %c0_51 = arith.constant 0 : index
    %74 = vector.load %arg5[%c0_49, %c0_50, %c0_51] : memref<4x128x32xf32, #tpu.memory_space<vmem>>, vector<1x128x32xf32>
    %75 = vector.shape_cast %74 : vector<1x128x32xf32> to vector<128x32xf32>
    %76 = vector.broadcast %70 : vector<1x32xf32> to vector<128x32xf32>
    %77 = arith.mulf %75, %76 : vector<128x32xf32>
    %78 = vector.broadcast %73 : vector<1x32xf32> to vector<128x32xf32>
    %79 = arith.addf %77, %78 : vector<128x32xf32>
    %cst_52 = arith.constant 0.000000e+00 : f32
    %80 = vector.broadcast %cst_52 : f32 to vector<128x32xf32>
    %81 = arith.maximumf %79, %80 : vector<128x32xf32>
    %c1_53 = arith.constant 1 : index
    %c0_54 = arith.constant 0 : index
    %c0_55 = arith.constant 0 : index
    %82 = vector.load %arg5[%c1_53, %c0_54, %c0_55] : memref<4x128x32xf32, #tpu.memory_space<vmem>>, vector<1x128x32xf32>
    %83 = vector.shape_cast %82 : vector<1x128x32xf32> to vector<128x32xf32>
    %84 = vector.broadcast %70 : vector<1x32xf32> to vector<128x32xf32>
    %85 = arith.mulf %83, %84 : vector<128x32xf32>
    %86 = vector.broadcast %73 : vector<1x32xf32> to vector<128x32xf32>
    %87 = arith.addf %85, %86 : vector<128x32xf32>
    %cst_56 = arith.constant 0.000000e+00 : f32
    %88 = vector.broadcast %cst_56 : f32 to vector<128x32xf32>
    %89 = arith.maximumf %87, %88 : vector<128x32xf32>
    %90 = arith.maximumf %81, %89 : vector<128x32xf32>
    %c2_57 = arith.constant 2 : index
    %c0_58 = arith.constant 0 : index
    %c0_59 = arith.constant 0 : index
    %91 = vector.load %arg5[%c2_57, %c0_58, %c0_59] : memref<4x128x32xf32, #tpu.memory_space<vmem>>, vector<1x128x32xf32>
    %92 = vector.shape_cast %91 : vector<1x128x32xf32> to vector<128x32xf32>
    %93 = vector.broadcast %70 : vector<1x32xf32> to vector<128x32xf32>
    %94 = arith.mulf %92, %93 : vector<128x32xf32>
    %95 = vector.broadcast %73 : vector<1x32xf32> to vector<128x32xf32>
    %96 = arith.addf %94, %95 : vector<128x32xf32>
    %cst_60 = arith.constant 0.000000e+00 : f32
    %97 = vector.broadcast %cst_60 : f32 to vector<128x32xf32>
    %98 = arith.maximumf %96, %97 : vector<128x32xf32>
    %99 = arith.maximumf %90, %98 : vector<128x32xf32>
    %c3_61 = arith.constant 3 : index
    %c0_62 = arith.constant 0 : index
    %c0_63 = arith.constant 0 : index
    %100 = vector.load %arg5[%c3_61, %c0_62, %c0_63] : memref<4x128x32xf32, #tpu.memory_space<vmem>>, vector<1x128x32xf32>
    %101 = vector.shape_cast %100 : vector<1x128x32xf32> to vector<128x32xf32>
    %102 = vector.broadcast %70 : vector<1x32xf32> to vector<128x32xf32>
    %103 = arith.mulf %101, %102 : vector<128x32xf32>
    %104 = vector.broadcast %73 : vector<1x32xf32> to vector<128x32xf32>
    %105 = arith.addf %103, %104 : vector<128x32xf32>
    %cst_64 = arith.constant 0.000000e+00 : f32
    %106 = vector.broadcast %cst_64 : f32 to vector<128x32xf32>
    %107 = arith.maximumf %105, %106 : vector<128x32xf32>
    %108 = arith.maximumf %99, %107 : vector<128x32xf32>
    %c0_65 = arith.constant 0 : index
    %c0_66 = arith.constant 0 : index
    %109 = vector.load %arg4[%c0_65, %c0_66] : memref<128x32xf32, #tpu.memory_space<vmem>>, vector<128x32xf32>
    tpu.vector_store %arg4[%c0_65, %c0_66], %108 {strides = array<i32>} : memref<128x32xf32, #tpu.memory_space<vmem>>, vector<128x32xf32>,
    return
  }
}

module attributes {stable_mosaic.version = 11 : i64} {
  func.func @_conv_bn_relu_pool_kernel(%arg0: memref<4x32x288xf32, #tpu.memory_space<vmem>>, %arg1: memref<288x64xf32, #tpu.memory_space<vmem>>, %arg2: memref<1x64xf32, #tpu.memory_space<vmem>>, %arg3: memref<1x64xf32, #tpu.memory_space<vmem>>, %arg4: memref<32x64xf32, #tpu.memory_space<vmem>>, %arg5: memref<4x32x64xf32, #tpu.memory_space<vmem>>) attributes {dimension_semantics = [], scalar_prefetch = 0 : i64, scratch_operands = 1 : i64, tpu.core_type = #tpu.core_type<tc>} {
    %cst = arith.constant 0.000000e+00 : f32
    %0 = vector.broadcast %cst : f32 to vector<1x64xf32>
    %cst_0 = arith.constant 0.000000e+00 : f32
    %1 = vector.broadcast %cst_0 : f32 to vector<1x64xf32>
    %c0 = arith.constant 0 : index
    %c0_1 = arith.constant 0 : index
    %c0_2 = arith.constant 0 : index
    %2 = vector.load %arg0[%c0, %c0_1, %c0_2] : memref<4x32x288xf32, #tpu.memory_space<vmem>>, vector<1x32x288xf32>
    %3 = vector.shape_cast %2 : vector<1x32x288xf32> to vector<32x288xf32>
    %c0_3 = arith.constant 0 : index
    %c0_4 = arith.constant 0 : index
    %4 = vector.load %arg1[%c0_3, %c0_4] : memref<288x64xf32, #tpu.memory_space<vmem>>, vector<288x64xf32>
    %cst_5 = arith.constant dense<0.000000e+00> : vector<32x64xf32>
    %5 = tpu.matmul %3, %4, %cst_5 {dimension_numbers = #tpu.dot_dimension_numbers<[1], [0], [0], [1], [0, 0, 1, 1], [], []>} : vector<32x288xf32>, vector<288x64xf32>, vector<32x64xf32> -> vector<32x64xf32>
    %c0_6 = arith.constant 0 : index
    %c0_7 = arith.constant 0 : index
    %c0_8 = arith.constant 0 : index
    %6 = vector.load %arg5[%c0_6, %c0_7, %c0_8] : memref<4x32x64xf32, #tpu.memory_space<vmem>>, vector<1x32x64xf32>
    %7 = vector.shape_cast %6 : vector<1x32x64xf32> to vector<32x64xf32>
    %8 = vector.shape_cast %5 : vector<32x64xf32> to vector<1x32x64xf32>
    tpu.vector_store %arg5[%c0_6, %c0_7, %c0_8], %8 {strides = array<i32>} : memref<4x32x64xf32, #tpu.memory_space<vmem>>, vector<1x32x64xf32>,
    %cst_9 = arith.constant dense<0.000000e+00> : vector<64xf32>
    %9 = vector.multi_reduction <add>, %5, %cst_9 [0] : vector<32x64xf32> to vector<64xf32>
    %10 = vector.shape_cast %9 : vector<64xf32> to vector<1x64xf32>
    %11 = arith.addf %0, %10 : vector<1x64xf32>
    %12 = arith.mulf %5, %5 : vector<32x64xf32>
    %cst_10 = arith.constant dense<0.000000e+00> : vector<64xf32>
    %13 = vector.multi_reduction <add>, %12, %cst_10 [0] : vector<32x64xf32> to vector<64xf32>
    %14 = vector.shape_cast %13 : vector<64xf32> to vector<1x64xf32>
    %15 = arith.addf %1, %14 : vector<1x64xf32>
    %c1 = arith.constant 1 : index
    %c0_11 = arith.constant 0 : index
    %c0_12 = arith.constant 0 : index
    %16 = vector.load %arg0[%c1, %c0_11, %c0_12] : memref<4x32x288xf32, #tpu.memory_space<vmem>>, vector<1x32x288xf32>
    %17 = vector.shape_cast %16 : vector<1x32x288xf32> to vector<32x288xf32>
    %c0_13 = arith.constant 0 : index
    %c0_14 = arith.constant 0 : index
    %18 = vector.load %arg1[%c0_13, %c0_14] : memref<288x64xf32, #tpu.memory_space<vmem>>, vector<288x64xf32>
    %cst_15 = arith.constant dense<0.000000e+00> : vector<32x64xf32>
    %19 = tpu.matmul %17, %18, %cst_15 {dimension_numbers = #tpu.dot_dimension_numbers<[1], [0], [0], [1], [0, 0, 1, 1], [], []>} : vector<32x288xf32>, vector<288x64xf32>, vector<32x64xf32> -> vector<32x64xf32>
    %c1_16 = arith.constant 1 : index
    %c0_17 = arith.constant 0 : index
    %c0_18 = arith.constant 0 : index
    %20 = vector.load %arg5[%c1_16, %c0_17, %c0_18] : memref<4x32x64xf32, #tpu.memory_space<vmem>>, vector<1x32x64xf32>
    %21 = vector.shape_cast %20 : vector<1x32x64xf32> to vector<32x64xf32>
    %22 = vector.shape_cast %19 : vector<32x64xf32> to vector<1x32x64xf32>
    tpu.vector_store %arg5[%c1_16, %c0_17, %c0_18], %22 {strides = array<i32>} : memref<4x32x64xf32, #tpu.memory_space<vmem>>, vector<1x32x64xf32>,
    %cst_19 = arith.constant dense<0.000000e+00> : vector<64xf32>
    %23 = vector.multi_reduction <add>, %19, %cst_19 [0] : vector<32x64xf32> to vector<64xf32>
    %24 = vector.shape_cast %23 : vector<64xf32> to vector<1x64xf32>
    %25 = arith.addf %11, %24 : vector<1x64xf32>
    %26 = arith.mulf %19, %19 : vector<32x64xf32>
    %cst_20 = arith.constant dense<0.000000e+00> : vector<64xf32>
    %27 = vector.multi_reduction <add>, %26, %cst_20 [0] : vector<32x64xf32> to vector<64xf32>
    %28 = vector.shape_cast %27 : vector<64xf32> to vector<1x64xf32>
    %29 = arith.addf %15, %28 : vector<1x64xf32>
    %c2 = arith.constant 2 : index
    %c0_21 = arith.constant 0 : index
    %c0_22 = arith.constant 0 : index
    %30 = vector.load %arg0[%c2, %c0_21, %c0_22] : memref<4x32x288xf32, #tpu.memory_space<vmem>>, vector<1x32x288xf32>
    %31 = vector.shape_cast %30 : vector<1x32x288xf32> to vector<32x288xf32>
    %c0_23 = arith.constant 0 : index
    %c0_24 = arith.constant 0 : index
    %32 = vector.load %arg1[%c0_23, %c0_24] : memref<288x64xf32, #tpu.memory_space<vmem>>, vector<288x64xf32>
    %cst_25 = arith.constant dense<0.000000e+00> : vector<32x64xf32>
    %33 = tpu.matmul %31, %32, %cst_25 {dimension_numbers = #tpu.dot_dimension_numbers<[1], [0], [0], [1], [0, 0, 1, 1], [], []>} : vector<32x288xf32>, vector<288x64xf32>, vector<32x64xf32> -> vector<32x64xf32>
    %c2_26 = arith.constant 2 : index
    %c0_27 = arith.constant 0 : index
    %c0_28 = arith.constant 0 : index
    %34 = vector.load %arg5[%c2_26, %c0_27, %c0_28] : memref<4x32x64xf32, #tpu.memory_space<vmem>>, vector<1x32x64xf32>
    %35 = vector.shape_cast %34 : vector<1x32x64xf32> to vector<32x64xf32>
    %36 = vector.shape_cast %33 : vector<32x64xf32> to vector<1x32x64xf32>
    tpu.vector_store %arg5[%c2_26, %c0_27, %c0_28], %36 {strides = array<i32>} : memref<4x32x64xf32, #tpu.memory_space<vmem>>, vector<1x32x64xf32>,
    %cst_29 = arith.constant dense<0.000000e+00> : vector<64xf32>
    %37 = vector.multi_reduction <add>, %33, %cst_29 [0] : vector<32x64xf32> to vector<64xf32>
    %38 = vector.shape_cast %37 : vector<64xf32> to vector<1x64xf32>
    %39 = arith.addf %25, %38 : vector<1x64xf32>
    %40 = arith.mulf %33, %33 : vector<32x64xf32>
    %cst_30 = arith.constant dense<0.000000e+00> : vector<64xf32>
    %41 = vector.multi_reduction <add>, %40, %cst_30 [0] : vector<32x64xf32> to vector<64xf32>
    %42 = vector.shape_cast %41 : vector<64xf32> to vector<1x64xf32>
    %43 = arith.addf %29, %42 : vector<1x64xf32>
    %c3 = arith.constant 3 : index
    %c0_31 = arith.constant 0 : index
    %c0_32 = arith.constant 0 : index
    %44 = vector.load %arg0[%c3, %c0_31, %c0_32] : memref<4x32x288xf32, #tpu.memory_space<vmem>>, vector<1x32x288xf32>
    %45 = vector.shape_cast %44 : vector<1x32x288xf32> to vector<32x288xf32>
    %c0_33 = arith.constant 0 : index
    %c0_34 = arith.constant 0 : index
    %46 = vector.load %arg1[%c0_33, %c0_34] : memref<288x64xf32, #tpu.memory_space<vmem>>, vector<288x64xf32>
    %cst_35 = arith.constant dense<0.000000e+00> : vector<32x64xf32>
    %47 = tpu.matmul %45, %46, %cst_35 {dimension_numbers = #tpu.dot_dimension_numbers<[1], [0], [0], [1], [0, 0, 1, 1], [], []>} : vector<32x288xf32>, vector<288x64xf32>, vector<32x64xf32> -> vector<32x64xf32>
    %c3_36 = arith.constant 3 : index
    %c0_37 = arith.constant 0 : index
    %c0_38 = arith.constant 0 : index
    %48 = vector.load %arg5[%c3_36, %c0_37, %c0_38] : memref<4x32x64xf32, #tpu.memory_space<vmem>>, vector<1x32x64xf32>
    %49 = vector.shape_cast %48 : vector<1x32x64xf32> to vector<32x64xf32>
    %50 = vector.shape_cast %47 : vector<32x64xf32> to vector<1x32x64xf32>
    tpu.vector_store %arg5[%c3_36, %c0_37, %c0_38], %50 {strides = array<i32>} : memref<4x32x64xf32, #tpu.memory_space<vmem>>, vector<1x32x64xf32>,
    %cst_39 = arith.constant dense<0.000000e+00> : vector<64xf32>
    %51 = vector.multi_reduction <add>, %47, %cst_39 [0] : vector<32x64xf32> to vector<64xf32>
    %52 = vector.shape_cast %51 : vector<64xf32> to vector<1x64xf32>
    %53 = arith.addf %39, %52 : vector<1x64xf32>
    %54 = arith.mulf %47, %47 : vector<32x64xf32>
    %cst_40 = arith.constant dense<0.000000e+00> : vector<64xf32>
    %55 = vector.multi_reduction <add>, %54, %cst_40 [0] : vector<32x64xf32> to vector<64xf32>
    %56 = vector.shape_cast %55 : vector<64xf32> to vector<1x64xf32>
    %57 = arith.addf %43, %56 : vector<1x64xf32>
    %cst_41 = arith.constant 1.280000e+02 : f32
    %58 = vector.broadcast %cst_41 : f32 to vector<1x64xf32>
    %59 = arith.divf %53, %58 : vector<1x64xf32>
    %cst_42 = arith.constant 1.280000e+02 : f32
    %60 = vector.broadcast %cst_42 : f32 to vector<1x64xf32>
    %61 = arith.divf %57, %60 : vector<1x64xf32>
    %62 = arith.mulf %59, %59 : vector<1x64xf32>
    %63 = arith.subf %61, %62 : vector<1x64xf32>
    %cst_43 = arith.constant 0.000000e+00 : f32
    %64 = vector.broadcast %cst_43 : f32 to vector<1x64xf32>
    %65 = arith.maximumf %63, %64 : vector<1x64xf32>
    %c0_44 = arith.constant 0 : index
    %c0_45 = arith.constant 0 : index
    %66 = vector.load %arg2[%c0_44, %c0_45] : memref<1x64xf32, #tpu.memory_space<vmem>>, vector<1x64xf32>
    %cst_46 = arith.constant 9.99999974E-6 : f32
    %67 = vector.broadcast %cst_46 : f32 to vector<1x64xf32>
    %68 = arith.addf %65, %67 : vector<1x64xf32>
    %69 = math.rsqrt %68 : vector<1x64xf32>
    %70 = arith.mulf %66, %69 : vector<1x64xf32>
    %c0_47 = arith.constant 0 : index
    %c0_48 = arith.constant 0 : index
    %71 = vector.load %arg3[%c0_47, %c0_48] : memref<1x64xf32, #tpu.memory_space<vmem>>, vector<1x64xf32>
    %72 = arith.mulf %59, %70 : vector<1x64xf32>
    %73 = arith.subf %71, %72 : vector<1x64xf32>
    %c0_49 = arith.constant 0 : index
    %c0_50 = arith.constant 0 : index
    %c0_51 = arith.constant 0 : index
    %74 = vector.load %arg5[%c0_49, %c0_50, %c0_51] : memref<4x32x64xf32, #tpu.memory_space<vmem>>, vector<1x32x64xf32>
    %75 = vector.shape_cast %74 : vector<1x32x64xf32> to vector<32x64xf32>
    %76 = vector.broadcast %70 : vector<1x64xf32> to vector<32x64xf32>
    %77 = arith.mulf %75, %76 : vector<32x64xf32>
    %78 = vector.broadcast %73 : vector<1x64xf32> to vector<32x64xf32>
    %79 = arith.addf %77, %78 : vector<32x64xf32>
    %cst_52 = arith.constant 0.000000e+00 : f32
    %80 = vector.broadcast %cst_52 : f32 to vector<32x64xf32>
    %81 = arith.maximumf %79, %80 : vector<32x64xf32>
    %c1_53 = arith.constant 1 : index
    %c0_54 = arith.constant 0 : index
    %c0_55 = arith.constant 0 : index
    %82 = vector.load %arg5[%c1_53, %c0_54, %c0_55] : memref<4x32x64xf32, #tpu.memory_space<vmem>>, vector<1x32x64xf32>
    %83 = vector.shape_cast %82 : vector<1x32x64xf32> to vector<32x64xf32>
    %84 = vector.broadcast %70 : vector<1x64xf32> to vector<32x64xf32>
    %85 = arith.mulf %83, %84 : vector<32x64xf32>
    %86 = vector.broadcast %73 : vector<1x64xf32> to vector<32x64xf32>
    %87 = arith.addf %85, %86 : vector<32x64xf32>
    %cst_56 = arith.constant 0.000000e+00 : f32
    %88 = vector.broadcast %cst_56 : f32 to vector<32x64xf32>
    %89 = arith.maximumf %87, %88 : vector<32x64xf32>
    %90 = arith.maximumf %81, %89 : vector<32x64xf32>
    %c2_57 = arith.constant 2 : index
    %c0_58 = arith.constant 0 : index
    %c0_59 = arith.constant 0 : index
    %91 = vector.load %arg5[%c2_57, %c0_58, %c0_59] : memref<4x32x64xf32, #tpu.memory_space<vmem>>, vector<1x32x64xf32>
    %92 = vector.shape_cast %91 : vector<1x32x64xf32> to vector<32x64xf32>
    %93 = vector.broadcast %70 : vector<1x64xf32> to vector<32x64xf32>
    %94 = arith.mulf %92, %93 : vector<32x64xf32>
    %95 = vector.broadcast %73 : vector<1x64xf32> to vector<32x64xf32>
    %96 = arith.addf %94, %95 : vector<32x64xf32>
    %cst_60 = arith.constant 0.000000e+00 : f32
    %97 = vector.broadcast %cst_60 : f32 to vector<32x64xf32>
    %98 = arith.maximumf %96, %97 : vector<32x64xf32>
    %99 = arith.maximumf %90, %98 : vector<32x64xf32>
    %c3_61 = arith.constant 3 : index
    %c0_62 = arith.constant 0 : index
    %c0_63 = arith.constant 0 : index
    %100 = vector.load %arg5[%c3_61, %c0_62, %c0_63] : memref<4x32x64xf32, #tpu.memory_space<vmem>>, vector<1x32x64xf32>
    %101 = vector.shape_cast %100 : vector<1x32x64xf32> to vector<32x64xf32>
    %102 = vector.broadcast %70 : vector<1x64xf32> to vector<32x64xf32>
    %103 = arith.mulf %101, %102 : vector<32x64xf32>
    %104 = vector.broadcast %73 : vector<1x64xf32> to vector<32x64xf32>
    %105 = arith.addf %103, %104 : vector<32x64xf32>
    %cst_64 = arith.constant 0.000000e+00 : f32
    %106 = vector.broadcast %cst_64 : f32 to vector<32x64xf32>
    %107 = arith.maximumf %105, %106 : vector<32x64xf32>
    %108 = arith.maximumf %99, %107 : vector<32x64xf32>
    %c0_65 = arith.constant 0 : index
    %c0_66 = arith.constant 0 : index
    %109 = vector.load %arg4[%c0_65, %c0_66] : memref<32x64xf32, #tpu.memory_space<vmem>>, vector<32x64xf32>
    tpu.vector_store %arg4[%c0_65, %c0_66], %108 {strides = array<i32>} : memref<32x64xf32, #tpu.memory_space<vmem>>, vector<32x64xf32>,
    return
  }
}

module attributes {stable_mosaic.version = 11 : i64} {
  func.func @_conv_bn_relu_pool_kernel(%arg0: memref<4x8x576xf32, #tpu.memory_space<vmem>>, %arg1: memref<576x128xf32, #tpu.memory_space<vmem>>, %arg2: memref<1x128xf32, #tpu.memory_space<vmem>>, %arg3: memref<1x128xf32, #tpu.memory_space<vmem>>, %arg4: memref<8x128xf32, #tpu.memory_space<vmem>>, %arg5: memref<4x8x128xf32, #tpu.memory_space<vmem>>) attributes {dimension_semantics = [], scalar_prefetch = 0 : i64, scratch_operands = 1 : i64, tpu.core_type = #tpu.core_type<tc>} {
    %cst = arith.constant 0.000000e+00 : f32
    %0 = vector.broadcast %cst : f32 to vector<1x128xf32>
    %cst_0 = arith.constant 0.000000e+00 : f32
    %1 = vector.broadcast %cst_0 : f32 to vector<1x128xf32>
    %c0 = arith.constant 0 : index
    %c0_1 = arith.constant 0 : index
    %c0_2 = arith.constant 0 : index
    %2 = vector.load %arg0[%c0, %c0_1, %c0_2] : memref<4x8x576xf32, #tpu.memory_space<vmem>>, vector<1x8x576xf32>
    %3 = vector.shape_cast %2 : vector<1x8x576xf32> to vector<8x576xf32>
    %c0_3 = arith.constant 0 : index
    %c0_4 = arith.constant 0 : index
    %4 = vector.load %arg1[%c0_3, %c0_4] : memref<576x128xf32, #tpu.memory_space<vmem>>, vector<576x128xf32>
    %cst_5 = arith.constant dense<0.000000e+00> : vector<8x128xf32>
    %5 = tpu.matmul %3, %4, %cst_5 {dimension_numbers = #tpu.dot_dimension_numbers<[1], [0], [0], [1], [0, 0, 1, 1], [], []>} : vector<8x576xf32>, vector<576x128xf32>, vector<8x128xf32> -> vector<8x128xf32>
    %c0_6 = arith.constant 0 : index
    %c0_7 = arith.constant 0 : index
    %c0_8 = arith.constant 0 : index
    %6 = vector.load %arg5[%c0_6, %c0_7, %c0_8] : memref<4x8x128xf32, #tpu.memory_space<vmem>>, vector<1x8x128xf32>
    %7 = vector.shape_cast %6 : vector<1x8x128xf32> to vector<8x128xf32>
    %8 = vector.shape_cast %5 : vector<8x128xf32> to vector<1x8x128xf32>
    tpu.vector_store %arg5[%c0_6, %c0_7, %c0_8], %8 {strides = array<i32>} : memref<4x8x128xf32, #tpu.memory_space<vmem>>, vector<1x8x128xf32>,
    %cst_9 = arith.constant dense<0.000000e+00> : vector<128xf32>
    %9 = vector.multi_reduction <add>, %5, %cst_9 [0] : vector<8x128xf32> to vector<128xf32>
    %10 = vector.shape_cast %9 : vector<128xf32> to vector<1x128xf32>
    %11 = arith.addf %0, %10 : vector<1x128xf32>
    %12 = arith.mulf %5, %5 : vector<8x128xf32>
    %cst_10 = arith.constant dense<0.000000e+00> : vector<128xf32>
    %13 = vector.multi_reduction <add>, %12, %cst_10 [0] : vector<8x128xf32> to vector<128xf32>
    %14 = vector.shape_cast %13 : vector<128xf32> to vector<1x128xf32>
    %15 = arith.addf %1, %14 : vector<1x128xf32>
    %c1 = arith.constant 1 : index
    %c0_11 = arith.constant 0 : index
    %c0_12 = arith.constant 0 : index
    %16 = vector.load %arg0[%c1, %c0_11, %c0_12] : memref<4x8x576xf32, #tpu.memory_space<vmem>>, vector<1x8x576xf32>
    %17 = vector.shape_cast %16 : vector<1x8x576xf32> to vector<8x576xf32>
    %c0_13 = arith.constant 0 : index
    %c0_14 = arith.constant 0 : index
    %18 = vector.load %arg1[%c0_13, %c0_14] : memref<576x128xf32, #tpu.memory_space<vmem>>, vector<576x128xf32>
    %cst_15 = arith.constant dense<0.000000e+00> : vector<8x128xf32>
    %19 = tpu.matmul %17, %18, %cst_15 {dimension_numbers = #tpu.dot_dimension_numbers<[1], [0], [0], [1], [0, 0, 1, 1], [], []>} : vector<8x576xf32>, vector<576x128xf32>, vector<8x128xf32> -> vector<8x128xf32>
    %c1_16 = arith.constant 1 : index
    %c0_17 = arith.constant 0 : index
    %c0_18 = arith.constant 0 : index
    %20 = vector.load %arg5[%c1_16, %c0_17, %c0_18] : memref<4x8x128xf32, #tpu.memory_space<vmem>>, vector<1x8x128xf32>
    %21 = vector.shape_cast %20 : vector<1x8x128xf32> to vector<8x128xf32>
    %22 = vector.shape_cast %19 : vector<8x128xf32> to vector<1x8x128xf32>
    tpu.vector_store %arg5[%c1_16, %c0_17, %c0_18], %22 {strides = array<i32>} : memref<4x8x128xf32, #tpu.memory_space<vmem>>, vector<1x8x128xf32>,
    %cst_19 = arith.constant dense<0.000000e+00> : vector<128xf32>
    %23 = vector.multi_reduction <add>, %19, %cst_19 [0] : vector<8x128xf32> to vector<128xf32>
    %24 = vector.shape_cast %23 : vector<128xf32> to vector<1x128xf32>
    %25 = arith.addf %11, %24 : vector<1x128xf32>
    %26 = arith.mulf %19, %19 : vector<8x128xf32>
    %cst_20 = arith.constant dense<0.000000e+00> : vector<128xf32>
    %27 = vector.multi_reduction <add>, %26, %cst_20 [0] : vector<8x128xf32> to vector<128xf32>
    %28 = vector.shape_cast %27 : vector<128xf32> to vector<1x128xf32>
    %29 = arith.addf %15, %28 : vector<1x128xf32>
    %c2 = arith.constant 2 : index
    %c0_21 = arith.constant 0 : index
    %c0_22 = arith.constant 0 : index
    %30 = vector.load %arg0[%c2, %c0_21, %c0_22] : memref<4x8x576xf32, #tpu.memory_space<vmem>>, vector<1x8x576xf32>
    %31 = vector.shape_cast %30 : vector<1x8x576xf32> to vector<8x576xf32>
    %c0_23 = arith.constant 0 : index
    %c0_24 = arith.constant 0 : index
    %32 = vector.load %arg1[%c0_23, %c0_24] : memref<576x128xf32, #tpu.memory_space<vmem>>, vector<576x128xf32>
    %cst_25 = arith.constant dense<0.000000e+00> : vector<8x128xf32>
    %33 = tpu.matmul %31, %32, %cst_25 {dimension_numbers = #tpu.dot_dimension_numbers<[1], [0], [0], [1], [0, 0, 1, 1], [], []>} : vector<8x576xf32>, vector<576x128xf32>, vector<8x128xf32> -> vector<8x128xf32>
    %c2_26 = arith.constant 2 : index
    %c0_27 = arith.constant 0 : index
    %c0_28 = arith.constant 0 : index
    %34 = vector.load %arg5[%c2_26, %c0_27, %c0_28] : memref<4x8x128xf32, #tpu.memory_space<vmem>>, vector<1x8x128xf32>
    %35 = vector.shape_cast %34 : vector<1x8x128xf32> to vector<8x128xf32>
    %36 = vector.shape_cast %33 : vector<8x128xf32> to vector<1x8x128xf32>
    tpu.vector_store %arg5[%c2_26, %c0_27, %c0_28], %36 {strides = array<i32>} : memref<4x8x128xf32, #tpu.memory_space<vmem>>, vector<1x8x128xf32>,
    %cst_29 = arith.constant dense<0.000000e+00> : vector<128xf32>
    %37 = vector.multi_reduction <add>, %33, %cst_29 [0] : vector<8x128xf32> to vector<128xf32>
    %38 = vector.shape_cast %37 : vector<128xf32> to vector<1x128xf32>
    %39 = arith.addf %25, %38 : vector<1x128xf32>
    %40 = arith.mulf %33, %33 : vector<8x128xf32>
    %cst_30 = arith.constant dense<0.000000e+00> : vector<128xf32>
    %41 = vector.multi_reduction <add>, %40, %cst_30 [0] : vector<8x128xf32> to vector<128xf32>
    %42 = vector.shape_cast %41 : vector<128xf32> to vector<1x128xf32>
    %43 = arith.addf %29, %42 : vector<1x128xf32>
    %c3 = arith.constant 3 : index
    %c0_31 = arith.constant 0 : index
    %c0_32 = arith.constant 0 : index
    %44 = vector.load %arg0[%c3, %c0_31, %c0_32] : memref<4x8x576xf32, #tpu.memory_space<vmem>>, vector<1x8x576xf32>
    %45 = vector.shape_cast %44 : vector<1x8x576xf32> to vector<8x576xf32>
    %c0_33 = arith.constant 0 : index
    %c0_34 = arith.constant 0 : index
    %46 = vector.load %arg1[%c0_33, %c0_34] : memref<576x128xf32, #tpu.memory_space<vmem>>, vector<576x128xf32>
    %cst_35 = arith.constant dense<0.000000e+00> : vector<8x128xf32>
    %47 = tpu.matmul %45, %46, %cst_35 {dimension_numbers = #tpu.dot_dimension_numbers<[1], [0], [0], [1], [0, 0, 1, 1], [], []>} : vector<8x576xf32>, vector<576x128xf32>, vector<8x128xf32> -> vector<8x128xf32>
    %c3_36 = arith.constant 3 : index
    %c0_37 = arith.constant 0 : index
    %c0_38 = arith.constant 0 : index
    %48 = vector.load %arg5[%c3_36, %c0_37, %c0_38] : memref<4x8x128xf32, #tpu.memory_space<vmem>>, vector<1x8x128xf32>
    %49 = vector.shape_cast %48 : vector<1x8x128xf32> to vector<8x128xf32>
    %50 = vector.shape_cast %47 : vector<8x128xf32> to vector<1x8x128xf32>
    tpu.vector_store %arg5[%c3_36, %c0_37, %c0_38], %50 {strides = array<i32>} : memref<4x8x128xf32, #tpu.memory_space<vmem>>, vector<1x8x128xf32>,
    %cst_39 = arith.constant dense<0.000000e+00> : vector<128xf32>
    %51 = vector.multi_reduction <add>, %47, %cst_39 [0] : vector<8x128xf32> to vector<128xf32>
    %52 = vector.shape_cast %51 : vector<128xf32> to vector<1x128xf32>
    %53 = arith.addf %39, %52 : vector<1x128xf32>
    %54 = arith.mulf %47, %47 : vector<8x128xf32>
    %cst_40 = arith.constant dense<0.000000e+00> : vector<128xf32>
    %55 = vector.multi_reduction <add>, %54, %cst_40 [0] : vector<8x128xf32> to vector<128xf32>
    %56 = vector.shape_cast %55 : vector<128xf32> to vector<1x128xf32>
    %57 = arith.addf %43, %56 : vector<1x128xf32>
    %cst_41 = arith.constant 3.200000e+01 : f32
    %58 = vector.broadcast %cst_41 : f32 to vector<1x128xf32>
    %59 = arith.divf %53, %58 : vector<1x128xf32>
    %cst_42 = arith.constant 3.200000e+01 : f32
    %60 = vector.broadcast %cst_42 : f32 to vector<1x128xf32>
    %61 = arith.divf %57, %60 : vector<1x128xf32>
    %62 = arith.mulf %59, %59 : vector<1x128xf32>
    %63 = arith.subf %61, %62 : vector<1x128xf32>
    %cst_43 = arith.constant 0.000000e+00 : f32
    %64 = vector.broadcast %cst_43 : f32 to vector<1x128xf32>
    %65 = arith.maximumf %63, %64 : vector<1x128xf32>
    %c0_44 = arith.constant 0 : index
    %c0_45 = arith.constant 0 : index
    %66 = vector.load %arg2[%c0_44, %c0_45] : memref<1x128xf32, #tpu.memory_space<vmem>>, vector<1x128xf32>
    %cst_46 = arith.constant 9.99999974E-6 : f32
    %67 = vector.broadcast %cst_46 : f32 to vector<1x128xf32>
    %68 = arith.addf %65, %67 : vector<1x128xf32>
    %69 = math.rsqrt %68 : vector<1x128xf32>
    %70 = arith.mulf %66, %69 : vector<1x128xf32>
    %c0_47 = arith.constant 0 : index
    %c0_48 = arith.constant 0 : index
    %71 = vector.load %arg3[%c0_47, %c0_48] : memref<1x128xf32, #tpu.memory_space<vmem>>, vector<1x128xf32>
    %72 = arith.mulf %59, %70 : vector<1x128xf32>
    %73 = arith.subf %71, %72 : vector<1x128xf32>
    %c0_49 = arith.constant 0 : index
    %c0_50 = arith.constant 0 : index
    %c0_51 = arith.constant 0 : index
    %74 = vector.load %arg5[%c0_49, %c0_50, %c0_51] : memref<4x8x128xf32, #tpu.memory_space<vmem>>, vector<1x8x128xf32>
    %75 = vector.shape_cast %74 : vector<1x8x128xf32> to vector<8x128xf32>
    %76 = vector.broadcast %70 : vector<1x128xf32> to vector<8x128xf32>
    %77 = arith.mulf %75, %76 : vector<8x128xf32>
    %78 = vector.broadcast %73 : vector<1x128xf32> to vector<8x128xf32>
    %79 = arith.addf %77, %78 : vector<8x128xf32>
    %cst_52 = arith.constant 0.000000e+00 : f32
    %80 = vector.broadcast %cst_52 : f32 to vector<8x128xf32>
    %81 = arith.maximumf %79, %80 : vector<8x128xf32>
    %c1_53 = arith.constant 1 : index
    %c0_54 = arith.constant 0 : index
    %c0_55 = arith.constant 0 : index
    %82 = vector.load %arg5[%c1_53, %c0_54, %c0_55] : memref<4x8x128xf32, #tpu.memory_space<vmem>>, vector<1x8x128xf32>
    %83 = vector.shape_cast %82 : vector<1x8x128xf32> to vector<8x128xf32>
    %84 = vector.broadcast %70 : vector<1x128xf32> to vector<8x128xf32>
    %85 = arith.mulf %83, %84 : vector<8x128xf32>
    %86 = vector.broadcast %73 : vector<1x128xf32> to vector<8x128xf32>
    %87 = arith.addf %85, %86 : vector<8x128xf32>
    %cst_56 = arith.constant 0.000000e+00 : f32
    %88 = vector.broadcast %cst_56 : f32 to vector<8x128xf32>
    %89 = arith.maximumf %87, %88 : vector<8x128xf32>
    %90 = arith.maximumf %81, %89 : vector<8x128xf32>
    %c2_57 = arith.constant 2 : index
    %c0_58 = arith.constant 0 : index
    %c0_59 = arith.constant 0 : index
    %91 = vector.load %arg5[%c2_57, %c0_58, %c0_59] : memref<4x8x128xf32, #tpu.memory_space<vmem>>, vector<1x8x128xf32>
    %92 = vector.shape_cast %91 : vector<1x8x128xf32> to vector<8x128xf32>
    %93 = vector.broadcast %70 : vector<1x128xf32> to vector<8x128xf32>
    %94 = arith.mulf %92, %93 : vector<8x128xf32>
    %95 = vector.broadcast %73 : vector<1x128xf32> to vector<8x128xf32>
    %96 = arith.addf %94, %95 : vector<8x128xf32>
    %cst_60 = arith.constant 0.000000e+00 : f32
    %97 = vector.broadcast %cst_60 : f32 to vector<8x128xf32>
    %98 = arith.maximumf %96, %97 : vector<8x128xf32>
    %99 = arith.maximumf %90, %98 : vector<8x128xf32>
    %c3_61 = arith.constant 3 : index
    %c0_62 = arith.constant 0 : index
    %c0_63 = arith.constant 0 : index
    %100 = vector.load %arg5[%c3_61, %c0_62, %c0_63] : memref<4x8x128xf32, #tpu.memory_space<vmem>>, vector<1x8x128xf32>
    %101 = vector.shape_cast %100 : vector<1x8x128xf32> to vector<8x128xf32>
    %102 = vector.broadcast %70 : vector<1x128xf32> to vector<8x128xf32>
    %103 = arith.mulf %101, %102 : vector<8x128xf32>
    %104 = vector.broadcast %73 : vector<1x128xf32> to vector<8x128xf32>
    %105 = arith.addf %103, %104 : vector<8x128xf32>
    %cst_64 = arith.constant 0.000000e+00 : f32
    %106 = vector.broadcast %cst_64 : f32 to vector<8x128xf32>
    %107 = arith.maximumf %105, %106 : vector<8x128xf32>
    %108 = arith.maximumf %99, %107 : vector<8x128xf32>
    %c0_65 = arith.constant 0 : index
    %c0_66 = arith.constant 0 : index
    %109 = vector.load %arg4[%c0_65, %c0_66] : memref<8x128xf32, #tpu.memory_space<vmem>>, vector<8x128xf32>
    tpu.vector_store %arg4[%c0_65, %c0_66], %108 {strides = array<i32>} : memref<8x128xf32, #tpu.memory_space<vmem>>, vector<8x128xf32>,
    return
  }
}

</mosaic_0001>

<llo_original>
// kernel: active_mnist_cnn_forward.3
$region0: #{active_mnist_cnn_forward.3}
  #allocation0 [shape = 'u32[]', space=smem, size = 0x4, offset = 0x4, fixed_abs, tag = 'smem constant byte address 0x4 - core index']
  #allocation1 [shape = 'u32[144,128]{1,0:T(1,128)}', space=vmem, size = 0x12000, scoped, tag = 'internal scratch']
  #allocation2 [shape = 'f32[4,128,32]{2,1,0:T(8,128)}', space=vmem, size = 0x40000, scoped, tag = 'scratch operand']
  %s0 = inlined_call_operand.vmem [shape: f32[4,128,9], index: 0, kind: input, shape index: {}]
  %s1 = inlined_call_operand.vmem [shape: f32[9,32], index: 1, kind: input, shape index: {}]
  %s2 = inlined_call_operand.vmem [shape: f32[1,32], index: 2, kind: input, shape index: {}]
  %s3 = inlined_call_operand.vmem [shape: f32[1,32], index: 3, kind: input, shape index: {}]
  %s4 = inlined_call_operand.vmem [shape: f32[128,32], index: 4, kind: output, shape index: {}]
  %s5 = sld [smem:[#allocation0]]
  $region26: #{active_mnist_cnn_forward.3} parent=0
    _
  %s7 = ssub.s32 1, %s5
  %s8 = scalar_select 0, %s7, %s5
  // Predicated region
  $region2: #{active_mnist_cnn_forward.3} parent=0 // pred_check
    _
  $region3: #{active_mnist_cnn_forward.3} parent=0 // pred_check_branch
    %10 = sbr.rel (0) target = $region5
  $region4: #{active_mnist_cnn_forward.3} parent=0 // pred_region
    _
  $region5: #{active_mnist_cnn_forward.3} parent=0 // pred_fallthru
    _
  // Predicated region
  $region6: #{active_mnist_cnn_forward.3} parent=0 // pred_check
    _
  $region7: #{active_mnist_cnn_forward.3} parent=0 // pred_check_branch
    %12 = sbr.rel (0) target = $region9
  $region8: #{active_mnist_cnn_forward.3} parent=0 // pred_region
    _
  $region9: #{active_mnist_cnn_forward.3} parent=0 // pred_fallthru
    _
  // Predicated region
  $region10: #{active_mnist_cnn_forward.3} parent=0 // pred_check
    _
  $region11: #{active_mnist_cnn_forward.3} parent=0 // pred_check_branch
    %14 = sbr.rel (0) target = $region13
  $region12: #{active_mnist_cnn_forward.3} parent=0 // pred_region
    _
  $region13: #{active_mnist_cnn_forward.3} parent=0 // pred_fallthru
    _
  // Predicated region
  $region14: #{active_mnist_cnn_forward.3} parent=0 // pred_check
    _
  $region15: #{active_mnist_cnn_forward.3} parent=0 // pred_check_branch
    %16 = sbr.rel (0) target = $region17
  $region16: #{active_mnist_cnn_forward.3} parent=0 // pred_region
    _
  $region17: #{active_mnist_cnn_forward.3} parent=0 // pred_fallthru
    _
  %v17 = vld [vmem:[%s0] sm:$0xff]
  %v18 = vld [vmem:[%s0 + $0x8] sm:$0xff]
  %v19 = vld [vmem:[%s0 + $0x10] sm:$0xff]
  %v20 = vld [vmem:[%s0 + $0x18] sm:$0xff]
  %v21 = vld [vmem:[%s0 + $0x20] sm:$0xff]
  %v22 = vld [vmem:[%s0 + $0x28] sm:$0xff]
  %v23 = vld [vmem:[%s0 + $0x30] sm:$0xff]
  %v24 = vld [vmem:[%s0 + $0x38] sm:$0xff]
  %v25 = vld [vmem:[%s0 + $0x40] sm:$0xff]
  %v26 = vld [vmem:[%s0 + $0x48] sm:$0xff]
  %v27 = vld [vmem:[%s0 + $0x50] sm:$0xff]
  %v28 = vld [vmem:[%s0 + $0x58] sm:$0xff]
  %v29 = vld [vmem:[%s0 + $0x60] sm:$0xff]
  %v30 = vld [vmem:[%s0 + $0x68] sm:$0xff]
  %v31 = vld [vmem:[%s0 + $0x70] sm:$0xff]
  %v32 = vld [vmem:[%s0 + $0x78] sm:$0xff]
  %v33 = vld [vmem:[%s1] sm:$0xff]
  %v34 = vld [vmem:[%s1 + $0x8] sm:$0x1]
  %vm35 = vcmask 72704
  %v37 = vsel %vm35, %v17, 0
  %v40 = vsel %vm35, %v18, 0
  %v43 = vsel %vm35, %v19, 0
  %v46 = vsel %vm35, %v20, 0
  %v49 = vsel %vm35, %v21, 0
  %v52 = vsel %vm35, %v22, 0
  %v55 = vsel %vm35, %v23, 0
  %v58 = vsel %vm35, %v24, 0
  %v61 = vsel %vm35, %v25, 0
  %v64 = vsel %vm35, %v26, 0
  %v67 = vsel %vm35, %v27, 0
  %v70 = vsel %vm35, %v28, 0
  %v73 = vsel %vm35, %v29, 0
  %v76 = vsel %vm35, %v30, 0
  %v79 = vsel %vm35, %v31, 0
  %v82 = vsel %vm35, %v32, 0
  %vm84 = vcmask 1040384
  %v86 = vsel %vm84, %v34, 0
  %88 = vmatprep.subr.mxu0 0.0
  %89 = vmatpush1.msra.mxu0 %v33
  %90 = vmatprep.subr.mxu0 0.0
  %91 = vmatpush1.msra.mxu0 %v86
  %92 = vmatprep.subr.mxu0 0.0
  %93 = vmatpush1.msra.mxu0 0.0
  %94 = vmatprep.subr.mxu0 0.0
  %95 = vmatpush1.msra.mxu0 0.0
  %96 = vmatprep.subr.mxu0 0.0
  %97 = vmatpush1.msra.mxu0 0.0
  %98 = vmatprep.subr.mxu0 0.0
  %99 = vmatpush1.msra.mxu0 0.0
  %100 = vmatprep.subr.mxu0 0.0
  %101 = vmatpush1.msra.mxu0 0.0
  %102 = vmatprep.subr.mxu0 0.0
  %103 = vmatpush1.msra.mxu0 0.0
  %104 = vmatprep.subr.mxu0 0.0
  %105 = vmatpush1.msra.mxu0 0.0
  %106 = vmatprep.subr.mxu0 0.0
  %107 = vmatpush1.msra.mxu0 0.0
  %108 = vmatprep.subr.mxu0 0.0
  %109 = vmatpush1.msra.mxu0 0.0
  %110 = vmatprep.subr.mxu0 0.0
  %111 = vmatpush1.msra.mxu0 0.0
  %112 = vmatprep.subr.mxu0 0.0
  %113 = vmatpush1.msra.mxu0 0.0
  %114 = vmatprep.subr.mxu0 0.0
  %115 = vmatpush1.msra.mxu0 0.0
  %116 = vmatprep.subr.mxu0 0.0
  %117 = vmatpush1.msra.mxu0 0.0
  %118 = vmatprep.subr.mxu0 0.0
  %119 = vmatpush1.msra.mxu0 0.0
  %120 = vmatprep.subr.mxu0 0.0
  %121 = vmatpush1.msra.mxu0 0.0
  %122 = vmatprep.subr.mxu0 0.0
  %123 = vmatpush1.msra.mxu0 0.0
  %124 = vmatprep.subr.mxu0 0.0
  %125 = vmatpush1.msra.mxu0 0.0
  %126 = vmatprep.subr.mxu0 0.0
  %127 = vmatpush1.msra.mxu0 0.0
  %128 = vmatprep.subr.mxu0 0.0
  %129 = vmatpush1.msra.mxu0 0.0
  %130 = vmatprep.subr.mxu0 0.0
  %131 = vmatpush1.msra.mxu0 0.0
  %132 = vmatprep.subr.mxu0 0.0
  %133 = vmatpush1.msra.mxu0 0.0
  %134 = vmatprep.subr.mxu0 0.0
  %135 = vmatpush1.msra.mxu0 0.0
  %136 = vmatprep.subr.mxu0 0.0
  %137 = vmatpush1.msra.mxu0 0.0
  %138 = vmatprep.subr.mxu0 0.0
  %139 = vmatpush1.msra.mxu0 0.0
  %140 = vmatprep.subr.mxu0 0.0
  %141 = vmatpush1.msra.mxu0 0.0
  %142 = vmatprep.subr.mxu0 0.0
  %143 = vmatpush1.msra.mxu0 0.0
  %144 = vmatprep.subr.mxu0 0.0
  %145 = vmatpush1.msra.mxu0 0.0
  %146 = vmatprep.subr.mxu0 0.0
  %147 = vmatpush1.msra.mxu0 0.0
  %148 = vmatprep.subr.mxu0 0.0
  %149 = vmatpush1.msra.mxu0 0.0
  %150 = vmatprep.subr.mxu0 0.0
  %151 = vmatpush1.msra.mxu0 0.0
  %152 = vmatprep.mubr.f32.mxu0 0.0
  %153 = vmatmul.mubr.f32.gmra.mrb[0].mxu0 %v37
  %v154 = vpop.f32.mrb[0].mxu0
  %v155 = vadd.f32 0.0, %v154
  %v156 = vpop.f32.mrb[0].mxu0
  %157 = vmatprep.mubr.f32.mxu0 0.0
  %158 = vmatmul.mubr.f32.gmra.mrb[0].mxu0 %v40
  %v159 = vpop.f32.mrb[0].mxu0
  %v160 = vadd.f32 0.0, %v159
  %v161 = vpop.f32.mrb[0].mxu0
  %162 = vmatprep.mubr.f32.mxu0 0.0
  %163 = vmatmul.mubr.f32.gmra.mrb[0].mxu0 %v43
  %v164 = vpop.f32.mrb[0].mxu0
  %v165 = vadd.f32 0.0, %v164
  %v166 = vpop.f32.mrb[0].mxu0
  %167 = vmatprep.mubr.f32.mxu0 0.0
  %168 = vmatmul.mubr.f32.gmra.mrb[0].mxu0 %v46
  %v169 = vpop.f32.mrb[0].mxu0
  %v170 = vadd.f32 0.0, %v169
  %v171 = vpop.f32.mrb[0].mxu0
  %172 = vmatprep.mubr.f32.mxu0 0.0
  %173 = vmatmul.mubr.f32.gmra.mrb[0].mxu0 %v49
  %v174 = vpop.f32.mrb[0].mxu0
  %v175 = vadd.f32 0.0, %v174
  %v176 = vpop.f32.mrb[0].mxu0
  %177 = vmatprep.mubr.f32.mxu0 0.0
  %178 = vmatmul.mubr.f32.gmra.mrb[0].mxu0 %v52
  %v179 = vpop.f32.mrb[0].mxu0
  %v180 = vadd.f32 0.0, %v179
  %v181 = vpop.f32.mrb[0].mxu0
  %182 = vmatprep.mubr.f32.mxu0 0.0
  %183 = vmatmul.mubr.f32.gmra.mrb[0].mxu0 %v55
  %v184 = vpop.f32.mrb[0].mxu0
  %v185 = vadd.f32 0.0, %v184
  %v186 = vpop.f32.mrb[0].mxu0
  %187 = vmatprep.mubr.f32.mxu0 0.0
  %188 = vmatmul.mubr.f32.gmra.mrb[0].mxu0 %v58
  %v189 = vpop.f32.mrb[0].mxu0
  %v190 = vadd.f32 0.0, %v189
  %v191 = vpop.f32.mrb[0].mxu0
  %192 = vmatprep.mubr.f32.mxu0 0.0
  %193 = vmatmul.mubr.f32.gmra.mrb[0].mxu0 %v61
  %v194 = vpop.f32.mrb[0].mxu0
  %v195 = vadd.f32 0.0, %v194
  %v196 = vpop.f32.mrb[0].mxu0
  %197 = vmatprep.mubr.f32.mxu0 0.0
  %198 = vmatmul.mubr.f32.gmra.mrb[0].mxu0 %v64
  %v199 = vpop.f32.mrb[0].mxu0
  %v200 = vadd.f32 0.0, %v199
  %v201 = vpop.f32.mrb[0].mxu0
  %202 = vmatprep.mubr.f32.mxu0 0.0
  %203 = vmatmul.mubr.f32.gmra.mrb[0].mxu0 %v67
  %v204 = vpop.f32.mrb[0].mxu0
  %v205 = vadd.f32 0.0, %v204
  %v206 = vpop.f32.mrb[0].mxu0
  %207 = vmatprep.mubr.f32.mxu0 0.0
  %208 = vmatmul.mubr.f32.gmra.mrb[0].mxu0 %v70
  %v209 = vpop.f32.mrb[0].mxu0
  %v210 = vadd.f32 0.0, %v209
  %v211 = vpop.f32.mrb[0].mxu0
  %212 = vmatprep.mubr.f32.mxu0 0.0
  %213 = vmatmul.mubr.f32.gmra.mrb[0].mxu0 %v73
  %v214 = vpop.f32.mrb[0].mxu0
  %v215 = vadd.f32 0.0, %v214
  %v216 = vpop.f32.mrb[0].mxu0
  %217 = vmatprep.mubr.f32.mxu0 0.0
  %218 = vmatmul.mubr.f32.gmra.mrb[0].mxu0 %v76
  %v219 = vpop.f32.mrb[0].mxu0
  %v220 = vadd.f32 0.0, %v219
  %v221 = vpop.f32.mrb[0].mxu0
  %222 = vmatprep.mubr.f32.mxu0 0.0
  %223 = vmatmul.mubr.f32.gmra.mrb[0].mxu0 %v79
  %v224 = vpop.f32.mrb[0].mxu0
  %v225 = vadd.f32 0.0, %v224
  %v226 = vpop.f32.mrb[0].mxu0
  %227 = vmatprep.mubr.f32.mxu0 0.0
  %228 = vmatmul.mubr.f32.gmra.mrb[0].mxu0 %v82
  %v229 = vpop.f32.mrb[0].mxu0
  %v230 = vadd.f32 0.0, %v229
  %v231 = vpop.f32.mrb[0].mxu0
  %232 = vdwg.mxu0
  %vm233 = vcmask 261120
  %234 = vst.msk [vmem:[#allocation2] sm:$0xff] %vm233, %v155
  %235 = vst.msk [vmem:[#allocation2 + $0x8] sm:$0xff] %vm233, %v160
  %236 = vst.msk [vmem:[#allocation2 + $0x10] sm:$0xff] %vm233, %v165
  %237 = vst.msk [vmem:[#allocation2 + $0x18] sm:$0xff] %vm233, %v170
  %238 = vst.msk [vmem:[#allocation2 + $0x20] sm:$0xff] %vm233, %v175
  %239 = vst.msk [vmem:[#allocation2 + $0x28] sm:$0xff] %vm233, %v180
  %240 = vst.msk [vmem:[#allocation2 + $0x30] sm:$0xff] %vm233, %v185
  %241 = vst.msk [vmem:[#allocation2 + $0x38] sm:$0xff] %vm233, %v190
  %242 = vst.msk [vmem:[#allocation2 + $0x40] sm:$0xff] %vm233, %v195
  %243 = vst.msk [vmem:[#allocation2 + $0x48] sm:$0xff] %vm233, %v200
  %244 = vst.msk [vmem:[#allocation2 + $0x50] sm:$0xff] %vm233, %v205
  %245 = vst.msk [vmem:[#allocation2 + $0x58] sm:$0xff] %vm233, %v210
  %246 = vst.msk [vmem:[#allocation2 + $0x60] sm:$0xff] %vm233, %v215
  %247 = vst.msk [vmem:[#allocation2 + $0x68] sm:$0xff] %vm233, %v220
  %248 = vst.msk [vmem:[#allocation2 + $0x70] sm:$0xff] %vm233, %v225
  %249 = vst.msk [vmem:[#allocation2 + $0x78] sm:$0xff] %vm233, %v230
  %v250 = vsel %vm233, %v155, 0.0
  %v251 = vsel %vm233, %v160, 0.0
  %v252 = vadd.f32 %v250, %v251
  %v253 = vsel %vm233, %v165, 0.0
  %v254 = vadd.f32 %v252, %v253
  %v255 = vsel %vm233, %v170, 0.0
  %v256 = vadd.f32 %v254, %v255
  %v257 = vsel %vm233, %v175, 0.0
  %v258 = vadd.f32 %v256, %v257
  %v259 = vsel %vm233, %v180, 0.0
  %v260 = vadd.f32 %v258, %v259
  %v261 = vsel %vm233, %v185, 0.0
  %v262 = vadd.f32 %v260, %v261
  %v263 = vsel %vm233, %v190, 0.0
  %v264 = vadd.f32 %v262, %v263
  %v265 = vsel %vm233, %v195, 0.0
  %v266 = vadd.f32 %v264, %v265
  %v267 = vsel %vm233, %v200, 0.0
  %v268 = vadd.f32 %v266, %v267
  %v269 = vsel %vm233, %v205, 0.0
  %v270 = vadd.f32 %v268, %v269
  %v271 = vsel %vm233, %v210, 0.0
  %v272 = vadd.f32 %v270, %v271
  %v273 = vsel %vm233, %v215, 0.0
  %v274 = vadd.f32 %v272, %v273
  %v275 = vsel %vm233, %v220, 0.0
  %v276 = vadd.f32 %v274, %v275
  %v277 = vsel %vm233, %v225, 0.0
  %v278 = vadd.f32 %v276, %v277
  %v279 = vsel %vm233, %v230, 0.0
  %v280 = vadd.f32 %v278, %v279
  %v281 = vrot.slane %v280, 4
  %v282 = vadd.f32 %v280, %v281
  %v283 = vrot.slane %v282, 2
  %v284 = vadd.f32 %v282, %v283
  %v285 = vrot.slane %v284, 1
  %v286 = vadd.f32 %v284, %v285
  %v287 = vadd.f32 %v286, 0.0
  %v288 = vmul.f32 %v155, %v155
  %v289 = vmul.f32 %v160, %v160
  %v290 = vmul.f32 %v165, %v165
  %v291 = vmul.f32 %v170, %v170
  %v292 = vmul.f32 %v175, %v175
  %v293 = vmul.f32 %v180, %v180
  %v294 = vmul.f32 %v185, %v185
  %v295 = vmul.f32 %v190, %v190
  %v296 = vmul.f32 %v195, %v195
  %v297 = vmul.f32 %v200, %v200
  %v298 = vmul.f32 %v205, %v205
  %v299 = vmul.f32 %v210, %v210
  %v300 = vmul.f32 %v215, %v215
  %v301 = vmul.f32 %v220, %v220
  %v302 = vmul.f32 %v225, %v225
  %v303 = vmul.f32 %v230, %v230
  %v304 = vsel %vm233, %v288, 0.0
  %v305 = vsel %vm233, %v289, 0.0
  %v306 = vadd.f32 %v304, %v305
  %v307 = vsel %vm233, %v290, 0.0
  %v308 = vadd.f32 %v306, %v307
  %v309 = vsel %vm233, %v291, 0.0
  %v310 = vadd.f32 %v308, %v309
  %v311 = vsel %vm233, %v292, 0.0
  %v312 = vadd.f32 %v310, %v311
  %v313 = vsel %vm233, %v293, 0.0
  %v314 = vadd.f32 %v312, %v313
  %v315 = vsel %vm233, %v294, 0.0
  %v316 = vadd.f32 %v314, %v315
  %v317 = vsel %vm233, %v295, 0.0
  %v318 = vadd.f32 %v316, %v317
  %v319 = vsel %vm233, %v296, 0.0
  %v320 = vadd.f32 %v318, %v319
  %v321 = vsel %vm233, %v297, 0.0
  %v322 = vadd.f32 %v320, %v321
  %v323 = vsel %vm233, %v298, 0.0
  %v324 = vadd.f32 %v322, %v323
  %v325 = vsel %vm233, %v299, 0.0
  %v326 = vadd.f32 %v324, %v325
  %v327 = vsel %vm233, %v300, 0.0
  %v328 = vadd.f32 %v326, %v327
  %v329 = vsel %vm233, %v301, 0.0
  %v330 = vadd.f32 %v328, %v329
  %v331 = vsel %vm233, %v302, 0.0
  %v332 = vadd.f32 %v330, %v331
  %v333 = vsel %vm233, %v303, 0.0
  %v334 = vadd.f32 %v332, %v333
  %v335 = vrot.slane %v334, 4
  %v336 = vadd.f32 %v334, %v335
  %v337 = vrot.slane %v336, 2
  %v338 = vadd.f32 %v336, %v337
  %v339 = vrot.slane %v338, 1
  %v340 = vadd.f32 %v338, %v339
  %v341 = vadd.f32 %v340, 0.0
  %s342 = scalar_lea.vmem %s0, 128
  %v343 = vld [vmem:[%s342] sm:$0xff]
  %v344 = vld [vmem:[%s342 + $0x8] sm:$0xff]
  %v345 = vld [vmem:[%s342 + $0x10] sm:$0xff]
  %v346 = vld [vmem:[%s342 + $0x18] sm:$0xff]
  %v347 = vld [vmem:[%s342 + $0x20] sm:$0xff]
  %v348 = vld [vmem:[%s342 + $0x28] sm:$0xff]
  %v349 = vld [vmem:[%s342 + $0x30] sm:$0xff]
  %v350 = vld [vmem:[%s342 + $0x38] sm:$0xff]
  %v351 = vld [vmem:[%s342 + $0x40] sm:$0xff]
  %v352 = vld [vmem:[%s342 + $0x48] sm:$0xff]
  %v353 = vld [vmem:[%s342 + $0x50] sm:$0xff]
  %v354 = vld [vmem:[%s342 + $0x58] sm:$0xff]
  %v355 = vld [vmem:[%s342 + $0x60] sm:$0xff]
  %v356 = vld [vmem:[%s342 + $0x68] sm:$0xff]
  %v357 = vld [vmem:[%s342 + $0x70] sm:$0xff]
  %v358 = vld [vmem:[%s342 + $0x78] sm:$0xff]
  %v359 = vld [vmem:[%s1] sm:$0xff]
  %v360 = vld [vmem:[%s1 + $0x8] sm:$0x1]
  %v362 = vsel %vm35, %v343, 0
  %v365 = vsel %vm35, %v344, 0
  %v368 = vsel %vm35, %v345, 0
  %v371 = vsel %vm35, %v346, 0
  %v374 = vsel %vm35, %v347, 0
  %v377 = vsel %vm35, %v348, 0
  %v380 = vsel %vm35, %v349, 0
  %v383 = vsel %vm35, %v350, 0
  %v386 = vsel %vm35, %v351, 0
  %v389 = vsel %vm35, %v352, 0
  %v392 = vsel %vm35, %v353, 0
  %v395 = vsel %vm35, %v354, 0
  %v398 = vsel %vm35, %v355, 0
  %v401 = vsel %vm35, %v356, 0
  %v404 = vsel %vm35, %v357, 0
  %v407 = vsel %vm35, %v358, 0
  %v410 = vsel %vm84, %v360, 0
  %412 = vmatprep.subr.mxu0 0.0
  %413 = vmatpush1.msra.mxu0 %v359
  %414 = vmatprep.subr.mxu0 0.0
  %415 = vmatpush1.msra.mxu0 %v410
  %416 = vmatprep.subr.mxu0 0.0
  %417 = vmatpush1.msra.mxu0 0.0
  %418 = vmatprep.subr.mxu0 0.0
  %419 = vmatpush1.msra.mxu0 0.0
  %420 = vmatprep.subr.mxu0 0.0
  %421 = vmatpush1.msra.mxu0 0.0
  %422 = vmatprep.subr.mxu0 0.0
  %423 = vmatpush1.msra.mxu0 0.0
  %424 = vmatprep.subr.mxu0 0.0
  %425 = vmatpush1.msra.mxu0 0.0
  %426 = vmatprep.subr.mxu0 0.0
  %427 = vmatpush1.msra.mxu0 0.0
  %428 = vmatprep.subr.mxu0 0.0
  %429 = vmatpush1.msra.mxu0 0.0
  %430 = vmatprep.subr.mxu0 0.0
  %431 = vmatpush1.msra.mxu0 0.0
  %432 = vmatprep.subr.mxu0 0.0
  %433 = vmatpush1.msra.mxu0 0.0
  %434 = vmatprep.subr.mxu0 0.0
  %435 = vmatpush1.msra.mxu0 0.0
  %436 = vmatprep.subr.mxu0 0.0
  %437 = vmatpush1.msra.mxu0 0.0
  %438 = vmatprep.subr.mxu0 0.0
  %439 = vmatpush1.msra.mxu0 0.0
  %440 = vmatprep.subr.mxu0 0.0
  %441 = vmatpush1.msra.mxu0 0.0
  %442 = vmatprep.subr.mxu0 0.0
  %443 = vmatpush1.msra.mxu0 0.0
  %444 = vmatprep.subr.mxu0 0.0
  %445 = vmatpush1.msra.mxu0 0.0
  %446 = vmatprep.subr.mxu0 0.0
  %447 = vmatpush1.msra.mxu0 0.0
  %448 = vmatprep.subr.mxu0 0.0
  %449 = vmatpush1.msra.mxu0 0.0
  %450 = vmatprep.subr.mxu0 0.0
  %451 = vmatpush1.msra.mxu0 0.0
  %452 = vmatprep.subr.mxu0 0.0
  %453 = vmatpush1.msra.mxu0 0.0
  %454 = vmatprep.subr.mxu0 0.0
  %455 = vmatpush1.msra.mxu0 0.0
  %456 = vmatprep.subr.mxu0 0.0
  %457 = vmatpush1.msra.mxu0 0.0
  %458 = vmatprep.subr.mxu0 0.0
  %459 = vmatpush1.msra.mxu0 0.0
  %460 = vmatprep.subr.mxu0 0.0
  %461 = vmatpush1.msra.mxu0 0.0
  %462 = vmatprep.subr.mxu0 0.0
  %463 = vmatpush1.msra.mxu0 0.0
  %464 = vmatprep.subr.mxu0 0.0
  %465 = vmatpush1.msra.mxu0 0.0
  %466 = vmatprep.subr.mxu0 0.0
  %467 = vmatpush1.msra.mxu0 0.0
  %468 = vmatprep.subr.mxu0 0.0
  %469 = vmatpush1.msra.mxu0 0.0
  %470 = vmatprep.subr.mxu0 0.0
  %471 = vmatpush1.msra.mxu0 0.0
  %472 = vmatprep.subr.mxu0 0.0
  %473 = vmatpush1.msra.mxu0 0.0
  %474 = vmatprep.subr.mxu0 0.0
  %475 = vmatpush1.msra.mxu0 0.0
  %476 = vmatprep.mubr.f32.mxu0 0.0
  %477 = vmatmul.mubr.f32.gmra.mrb[0].mxu0 %v362
  %v478 = vpop.f32.mrb[0].mxu0
  %v479 = vadd.f32 0.0, %v478
  %v480 = vpop.f32.mrb[0].mxu0
  %481 = vmatprep.mubr.f32.mxu0 0.0
  %482 = vmatmul.mubr.f32.gmra.mrb[0].mxu0 %v365
  %v483 = vpop.f32.mrb[0].mxu0
  %v484 = vadd.f32 0.0, %v483
  %v485 = vpop.f32.mrb[0].mxu0
  %486 = vmatprep.mubr.f32.mxu0 0.0
  %487 = vmatmul.mubr.f32.gmra.mrb[0].mxu0 %v368
  %v488 = vpop.f32.mrb[0].mxu0
  %v489 = vadd.f32 0.0, %v488
  %v490 = vpop.f32.mrb[0].mxu0
  %491 = vmatprep.mubr.f32.mxu0 0.0
  %492 = vmatmul.mubr.f32.gmra.mrb[0].mxu0 %v371
  %v493 = vpop.f32.mrb[0].mxu0
  %v494 = vadd.f32 0.0, %v493
  %v495 = vpop.f32.mrb[0].mxu0
  %496 = vmatprep.mubr.f32.mxu0 0.0
  %497 = vmatmul.mubr.f32.gmra.mrb[0].mxu0 %v374
  %v498 = vpop.f32.mrb[0].mxu0
  %v499 = vadd.f32 0.0, %v498
  %v500 = vpop.f32.mrb[0].mxu0
  %501 = vmatprep.mubr.f32.mxu0 0.0
  %502 = vmatmul.mubr.f32.gmra.mrb[0].mxu0 %v377
  %v503 = vpop.f32.mrb[0].mxu0
  %v504 = vadd.f32 0.0, %v503
  %v505 = vpop.f32.mrb[0].mxu0
  %506 = vmatprep.mubr.f32.mxu0 0.0
  %507 = vmatmul.mubr.f32.gmra.mrb[0].mxu0 %v380
  %v508 = vpop.f32.mrb[0].mxu0
  %v509 = vadd.f32 0.0, %v508
  %v510 = vpop.f32.mrb[0].mxu0
  %511 = vmatprep.mubr.f32.mxu0 0.0
  %512 = vmatmul.mubr.f32.gmra.mrb[0].mxu0 %v383
  %v513 = vpop.f32.mrb[0].mxu0
  %v514 = vadd.f32 0.0, %v513
  %v515 = vpop.f32.mrb[0].mxu0
  %516 = vmatprep.mubr.f32.mxu0 0.0
  %517 = vmatmul.mubr.f32.gmra.mrb[0].mxu0 %v386
  %v518 = vpop.f32.mrb[0].mxu0
  %v519 = vadd.f32 0.0, %v518
  %v520 = vpop.f32.mrb[0].mxu0
  %521 = vmatprep.mubr.f32.mxu0 0.0
  %522 = vmatmul.mubr.f32.gmra.mrb[0].mxu0 %v389
  %v523 = vpop.f32.mrb[0].mxu0
  %v524 = vadd.f32 0.0, %v523
  %v525 = vpop.f32.mrb[0].mxu0
  %526 = vmatprep.mubr.f32.mxu0 0.0
  %527 = vmatmul.mubr.f32.gmra.mrb[0].mxu0 %v392
  %v528 = vpop.f32.mrb[0].mxu0
  %v529 = vadd.f32 0.0, %v528
  %v530 = vpop.f32.mrb[0].mxu0
  %531 = vmatprep.mubr.f32.mxu0 0.0
  %532 = vmatmul.mubr.f32.gmra.mrb[0].mxu0 %v395
  %v533 = vpop.f32.mrb[0].mxu0
  %v534 = vadd.f32 0.0, %v533
  %v535 = vpop.f32.mrb[0].mxu0
  %536 = vmatprep.mubr.f32.mxu0 0.0
  %537 = vmatmul.mubr.f32.gmra.mrb[0].mxu0 %v398
  %v538 = vpop.f32.mrb[0].mxu0
  %v539 = vadd.f32 0.0, %v538
  %v540 = vpop.f32.mrb[0].mxu0
  %541 = vmatprep.mubr.f32.mxu0 0.0
  %542 = vmatmul.mubr.f32.gmra.mrb[0].mxu0 %v401
  %v543 = vpop.f32.mrb[0].mxu0
  %v544 = vadd.f32 0.0, %v543
  %v545 = vpop.f32.mrb[0].mxu0
  %546 = vmatprep.mubr.f32.mxu0 0.0
  %547 = vmatmul.mubr.f32.gmra.mrb[0].mxu0 %v404
  %v548 = vpop.f32.mrb[0].mxu0
  %v549 = vadd.f32 0.0, %v548
  %v550 = vpop.f32.mrb[0].mxu0
  %551 = vmatprep.mubr.f32.mxu0 0.0
  %552 = vmatmul.mubr.f32.gmra.mrb[0].mxu0 %v407
  %v553 = vpop.f32.mrb[0].mxu0
  %v554 = vadd.f32 0.0, %v553
  %v555 = vpop.f32.mrb[0].mxu0
  %556 = vdwg.mxu0
  %s557 = scalar_lea.vmem [#allocation2], 128
  %558 = vst.msk [vmem:[%s557] sm:$0xff] %vm233, %v479
  %559 = vst.msk [vmem:[%s557 + $0x8] sm:$0xff] %vm233, %v484
  %560 = vst.msk [vmem:[%s557 + $0x10] sm:$0xff] %vm233, %v489
  %561 = vst.msk [vmem:[%s557 + $0x18] sm:$0xff] %vm233, %v494
  %562 = vst.msk [vmem:[%s557 + $0x20] sm:$0xff] %vm233, %v499
  %563 = vst.msk [vmem:[%s557 + $0x28] sm:$0xff] %vm233, %v504
  %564 = vst.msk [vmem:[%s557 + $0x30] sm:$0xff] %vm233, %v509
  %565 = vst.msk [vmem:[%s557 + $0x38] sm:$0xff] %vm233, %v514
  %566 = vst.msk [vmem:[%s557 + $0x40] sm:$0xff] %vm233, %v519
  %567 = vst.msk [vmem:[%s557 + $0x48] sm:$0xff] %vm233, %v524
  %568 = vst.msk [vmem:[%s557 + $0x50] sm:$0xff] %vm233, %v529
  %569 = vst.msk [vmem:[%s557 + $0x58] sm:$0xff] %vm233, %v534
  %570 = vst.msk [vmem:[%s557 + $0x60] sm:$0xff] %vm233, %v539
  %571 = vst.msk [vmem:[%s557 + $0x68] sm:$0xff] %vm233, %v544
  %572 = vst.msk [vmem:[%s557 + $0x70] sm:$0xff] %vm233, %v549
  %573 = vst.msk [vmem:[%s557 + $0x78] sm:$0xff] %vm233, %v554
  %v574 = vsel %vm233, %v479, 0.0
  %v575 = vsel %vm233, %v484, 0.0
  %v576 = vadd.f32 %v574, %v575
  %v577 = vsel %vm233, %v489, 0.0
  %v578 = vadd.f32 %v576, %v577
  %v579 = vsel %vm233, %v494, 0.0
  %v580 = vadd.f32 %v578, %v579
  %v581 = vsel %vm233, %v499, 0.0
  %v582 = vadd.f32 %v580, %v581
  %v583 = vsel %vm233, %v504, 0.0
  %v584 = vadd.f32 %v582, %v583
  %v585 = vsel %vm233, %v509, 0.0
  %v586 = vadd.f32 %v584, %v585
  %v587 = vsel %vm233, %v514, 0.0
  %v588 = vadd.f32 %v586, %v587
  %v589 = vsel %vm233, %v519, 0.0
  %v590 = vadd.f32 %v588, %v589
  %v591 = vsel %vm233, %v524, 0.0
  %v592 = vadd.f32 %v590, %v591
  %v593 = vsel %vm233, %v529, 0.0
  %v594 = vadd.f32 %v592, %v593
  %v595 = vsel %vm233, %v534, 0.0
  %v596 = vadd.f32 %v594, %v595
  %v597 = vsel %vm233, %v539, 0.0
  %v598 = vadd.f32 %v596, %v597
  %v599 = vsel %vm233, %v544, 0.0
  %v600 = vadd.f32 %v598, %v599
  %v601 = vsel %vm233, %v549, 0.0
  %v602 = vadd.f32 %v600, %v601
  %v603 = vsel %vm233, %v554, 0.0
  %v604 = vadd.f32 %v602, %v603
  %v605 = vrot.slane %v604, 4
  %v606 = vadd.f32 %v604, %v605
  %v607 = vrot.slane %v606, 2
  %v608 = vadd.f32 %v606, %v607
  %v609 = vrot.slane %v608, 1
  %v610 = vadd.f32 %v608, %v609
  %v611 = vadd.f32 %v287, %v610
  %v612 = vmul.f32 %v479, %v479
  %v613 = vmul.f32 %v484, %v484
  %v614 = vmul.f32 %v489, %v489
  %v615 = vmul.f32 %v494, %v494
  %v616 = vmul.f32 %v499, %v499
  %v617 = vmul.f32 %v504, %v504
  %v618 = vmul.f32 %v509, %v509
  %v619 = vmul.f32 %v514, %v514
  %v620 = vmul.f32 %v519, %v519
  %v621 = vmul.f32 %v524, %v524
  %v622 = vmul.f32 %v529, %v529
  %v623 = vmul.f32 %v534, %v534
  %v624 = vmul.f32 %v539, %v539
  %v625 = vmul.f32 %v544, %v544
  %v626 = vmul.f32 %v549, %v549
  %v627 = vmul.f32 %v554, %v554
  %v628 = vsel %vm233, %v612, 0.0
  %v629 = vsel %vm233, %v613, 0.0
  %v630 = vadd.f32 %v628, %v629
  %v631 = vsel %vm233, %v614, 0.0
  %v632 = vadd.f32 %v630, %v631
  %v633 = vsel %vm233, %v615, 0.0
  %v634 = vadd.f32 %v632, %v633
  %v635 = vsel %vm233, %v616, 0.0
  %v636 = vadd.f32 %v634, %v635
  %v637 = vsel %vm233, %v617, 0.0
  %v638 = vadd.f32 %v636, %v637
  %v639 = vsel %vm233, %v618, 0.0
  %v640 = vadd.f32 %v638, %v639
  %v641 = vsel %vm233, %v619, 0.0
  %v642 = vadd.f32 %v640, %v641
  %v643 = vsel %vm233, %v620, 0.0
  %v644 = vadd.f32 %v642, %v643
  %v645 = vsel %vm233, %v621, 0.0
  %v646 = vadd.f32 %v644, %v645
  %v647 = vsel %vm233, %v622, 0.0
  %v648 = vadd.f32 %v646, %v647
  %v649 = vsel %vm233, %v623, 0.0
  %v650 = vadd.f32 %v648, %v649
  %v651 = vsel %vm233, %v624, 0.0
  %v652 = vadd.f32 %v650, %v651
  %v653 = vsel %vm233, %v625, 0.0
  %v654 = vadd.f32 %v652, %v653
  %v655 = vsel %vm233, %v626, 0.0
  %v656 = vadd.f32 %v654, %v655
  %v657 = vsel %vm233, %v627, 0.0
  %v658 = vadd.f32 %v656, %v657
  %v659 = vrot.slane %v658, 4
  %v660 = vadd.f32 %v658, %v659
  %v661 = vrot.slane %v660, 2
  %v662 = vadd.f32 %v660, %v661
  %v663 = vrot.slane %v662, 1
  %v664 = vadd.f32 %v662, %v663
  %v665 = vadd.f32 %v341, %v664
  %s666 = scalar_lea.vmem %s0, 256
  %v667 = vld [vmem:[%s666] sm:$0xff]
  %v668 = vld [vmem:[%s666 + $0x8] sm:$0xff]
  %v669 = vld [vmem:[%s666 + $0x10] sm:$0xff]
  %v670 = vld [vmem:[%s666 + $0x18] sm:$0xff]
  %v671 = vld [vmem:[%s666 + $0x20] sm:$0xff]
  %v672 = vld [vmem:[%s666 + $0x28] sm:$0xff]
  %v673 = vld [vmem:[%s666 + $0x30] sm:$0xff]
  %v674 = vld [vmem:[%s666 + $0x38] sm:$0xff]
  %v675 = vld [vmem:[%s666 + $0x40] sm:$0xff]
  %v676 = vld [vmem:[%s666 + $0x48] sm:$0xff]
  %v677 = vld [vmem:[%s666 + $0x50] sm:$0xff]
  %v678 = vld [vmem:[%s666 + $0x58] sm:$0xff]
  %v679 = vld [vmem:[%s666 + $0x60] sm:$0xff]
  %v680 = vld [vmem:[%s666 + $0x68] sm:$0xff]
  %v681 = vld [vmem:[%s666 + $0x70] sm:$0xff]
  %v682 = vld [vmem:[%s666 + $0x78] sm:$0xff]
  %v683 = vld [vmem:[%s1] sm:$0xff]
  %v684 = vld [vmem:[%s1 + $0x8] sm:$0x1]
  %v686 = vsel %vm35, %v667, 0
  %v689 = vsel %vm35, %v668, 0
  %v692 = vsel %vm35, %v669, 0
  %v695 = vsel %vm35, %v670, 0
  %v698 = vsel %vm35, %v671, 0
  %v701 = vsel %vm35, %v672, 0
  %v704 = vsel %vm35, %v673, 0
  %v707 = vsel %vm35, %v674, 0
  %v710 = vsel %vm35, %v675, 0
  %v713 = vsel %vm35, %v676, 0
  %v716 = vsel %vm35, %v677, 0
  %v719 = vsel %vm35, %v678, 0
  %v722 = vsel %vm35, %v679, 0
  %v725 = vsel %vm35, %v680, 0
  %v728 = vsel %vm35, %v681, 0
  %v731 = vsel %vm35, %v682, 0
  %v734 = vsel %vm84, %v684, 0
  %736 = vmatprep.subr.mxu0 0.0
  %737 = vmatpush1.msra.mxu0 %v683
  %738 = vmatprep.subr.mxu0 0.0
  %739 = vmatpush1.msra.mxu0 %v734
  %740 = vmatprep.subr.mxu0 0.0
  %741 = vmatpush1.msra.mxu0 0.0
  %742 = vmatprep.subr.mxu0 0.0
  %743 = vmatpush1.msra.mxu0 0.0
  %744 = vmatprep.subr.mxu0 0.0
  %745 = vmatpush1.msra.mxu0 0.0
  %746 = vmatprep.subr.mxu0 0.0
  %747 = vmatpush1.msra.mxu0 0.0
  %748 = vmatprep.subr.mxu0 0.0
  %749 = vmatpush1.msra.mxu0 0.0
  %750 = vmatprep.subr.mxu0 0.0
  %751 = vmatpush1.msra.mxu0 0.0
  %752 = vmatprep.subr.mxu0 0.0
  %753 = vmatpush1.msra.mxu0 0.0
  %754 = vmatprep.subr.mxu0 0.0
  %755 = vmatpush1.msra.mxu0 0.0
  %756 = vmatprep.subr.mxu0 0.0
  %757 = vmatpush1.msra.mxu0 0.0
  %758 = vmatprep.subr.mxu0 0.0
  %759 = vmatpush1.msra.mxu0 0.0
  %760 = vmatprep.subr.mxu0 0.0
  %761 = vmatpush1.msra.mxu0 0.0
  %762 = vmatprep.subr.mxu0 0.0
  %763 = vmatpush1.msra.mxu0 0.0
  %764 = vmatprep.subr.mxu0 0.0
  %765 = vmatpush1.msra.mxu0 0.0
  %766 = vmatprep.subr.mxu0 0.0
  %767 = vmatpush1.msra.mxu0 0.0
  %768 = vmatprep.subr.mxu0 0.0
  %769 = vmatpush1.msra.mxu0 0.0
  %770 = vmatprep.subr.mxu0 0.0
  %771 = vmatpush1.msra.mxu0 0.0
  %772 = vmatprep.subr.mxu0 0.0
  %773 = vmatpush1.msra.mxu0 0.0
  %774 = vmatprep.subr.mxu0 0.0
  %775 = vmatpush1.msra.mxu0 0.0
  %776 = vmatprep.subr.mxu0 0.0
  %777 = vmatpush1.msra.mxu0 0.0
  %778 = vmatprep.subr.mxu0 0.0
  %779 = vmatpush1.msra.mxu0 0.0
  %780 = vmatprep.subr.mxu0 0.0
  %781 = vmatpush1.msra.mxu0 0.0
  %782 = vmatprep.subr.mxu0 0.0
  %783 = vmatpush1.msra.mxu0 0.0
  %784 = vmatprep.subr.mxu0 0.0
  %785 = vmatpush1.msra.mxu0 0.0
  %786 = vmatprep.subr.mxu0 0.0
  %787 = vmatpush1.msra.mxu0 0.0
  %788 = vmatprep.subr.mxu0 0.0
  %789 = vmatpush1.msra.mxu0 0.0
  %790 = vmatprep.subr.mxu0 0.0
  %791 = vmatpush1.msra.mxu0 0.0
  %792 = vmatprep.subr.mxu0 0.0
  %793 = vmatpush1.msra.mxu0 0.0
  %794 = vmatprep.subr.mxu0 0.0
  %795 = vmatpush1.msra.mxu0 0.0
  %796 = vmatprep.subr.mxu0 0.0
  %797 = vmatpush1.msra.mxu0 0.0
  %798 = vmatprep.subr.mxu0 0.0
  %799 = vmatpush1.msra.mxu0 0.0
  %800 = vmatprep.mubr.f32.mxu0 0.0
  %801 = vmatmul.mubr.f32.gmra.mrb[0].mxu0 %v686
  %v802 = vpop.f32.mrb[0].mxu0
  %v803 = vadd.f32 0.0, %v802
  %v804 = vpop.f32.mrb[0].mxu0
  %805 = vmatprep.mubr.f32.mxu0 0.0
  %806 = vmatmul.mubr.f32.gmra.mrb[0].mxu0 %v689
  %v807 = vpop.f32.mrb[0].mxu0
  %v808 = vadd.f32 0.0, %v807
  %v809 = vpop.f32.mrb[0].mxu0
  %810 = vmatprep.mubr.f32.mxu0 0.0
  %811 = vmatmul.mubr.f32.gmra.mrb[0].mxu0 %v692
  %v812 = vpop.f32.mrb[0].mxu0
  %v813 = vadd.f32 0.0, %v812
  %v814 = vpop.f32.mrb[0].mxu0
  %815 = vmatprep.mubr.f32.mxu0 0.0
  %816 = vmatmul.mubr.f32.gmra.mrb[0].mxu0 %v695
  %v817 = vpop.f32.mrb[0].mxu0
  %v818 = vadd.f32 0.0, %v817
  %v819 = vpop.f32.mrb[0].mxu0
  %820 = vmatprep.mubr.f32.mxu0 0.0
  %821 = vmatmul.mubr.f32.gmra.mrb[0].mxu0 %v698
  %v822 = vpop.f32.mrb[0].mxu0
  %v823 = vadd.f32 0.0, %v822
  %v824 = vpop.f32.mrb[0].mxu0
  %825 = vmatprep.mubr.f32.mxu0 0.0
  %826 = vmatmul.mubr.f32.gmra.mrb[0].mxu0 %v701
  %v827 = vpop.f32.mrb[0].mxu0
  %v828 = vadd.f32 0.0, %v827
  %v829 = vpop.f32.mrb[0].mxu0
  %830 = vmatprep.mubr.f32.mxu0 0.0
  %831 = vmatmul.mubr.f32.gmra.mrb[0].mxu0 %v704
  %v832 = vpop.f32.mrb[0].mxu0
  %v833 = vadd.f32 0.0, %v832
  %v834 = vpop.f32.mrb[0].mxu0
  %835 = vmatprep.mubr.f32.mxu0 0.0
  %836 = vmatmul.mubr.f32.gmra.mrb[0].mxu0 %v707
  %v837 = vpop.f32.mrb[0].mxu0
  %v838 = vadd.f32 0.0, %v837
  %v839 = vpop.f32.mrb[0].mxu0
  %840 = vmatprep.mubr.f32.mxu0 0.0
  %841 = vmatmul.mubr.f32.gmra.mrb[0].mxu0 %v710
  %v842 = vpop.f32.mrb[0].mxu0
  %v843 = vadd.f32 0.0, %v842
  %v844 = vpop.f32.mrb[0].mxu0
  %845 = vmatprep.mubr.f32.mxu0 0.0
  %846 = vmatmul.mubr.f32.gmra.mrb[0].mxu0 %v713
  %v847 = vpop.f32.mrb[0].mxu0
  %v848 = vadd.f32 0.0, %v847
  %v849 = vpop.f32.mrb[0].mxu0
  %850 = vmatprep.mubr.f32.mxu0 0.0
  %851 = vmatmul.mubr.f32.gmra.mrb[0].mxu0 %v716
  %v852 = vpop.f32.mrb[0].mxu0
  %v853 = vadd.f32 0.0, %v852
  %v854 = vpop.f32.mrb[0].mxu0
  %855 = vmatprep.mubr.f32.mxu0 0.0
  %856 = vmatmul.mubr.f32.gmra.mrb[0].mxu0 %v719
  %v857 = vpop.f32.mrb[0].mxu0
  %v858 = vadd.f32 0.0, %v857
  %v859 = vpop.f32.mrb[0].mxu0
  %860 = vmatprep.mubr.f32.mxu0 0.0
  %861 = vmatmul.mubr.f32.gmra.mrb[0].mxu0 %v722
  %v862 = vpop.f32.mrb[0].mxu0
  %v863 = vadd.f32 0.0, %v862
  %v864 = vpop.f32.mrb[0].mxu0
  %865 = vmatprep.mubr.f32.mxu0 0.0
  %866 = vmatmul.mubr.f32.gmra.mrb[0].mxu0 %v725
  %v867 = vpop.f32.mrb[0].mxu0
  %v868 = vadd.f32 0.0, %v867
  %v869 = vpop.f32.mrb[0].mxu0
  %870 = vmatprep.mubr.f32.mxu0 0.0
  %871 = vmatmul.mubr.f32.gmra.mrb[0].mxu0 %v728
  %v872 = vpop.f32.mrb[0].mxu0
  %v873 = vadd.f32 0.0, %v872
  %v874 = vpop.f32.mrb[0].mxu0
  %875 = vmatprep.mubr.f32.mxu0 0.0
  %876 = vmatmul.mubr.f32.gmra.mrb[0].mxu0 %v731
  %v877 = vpop.f32.mrb[0].mxu0
  %v878 = vadd.f32 0.0, %v877
  %v879 = vpop.f32.mrb[0].mxu0
  %880 = vdwg.mxu0
  %s881 = scalar_lea.vmem [#allocation2], 256
  %882 = vst.msk [vmem:[%s881] sm:$0xff] %vm233, %v803
  %883 = vst.msk [vmem:[%s881 + $0x8] sm:$0xff] %vm233, %v808
  %884 = vst.msk [vmem:[%s881 + $0x10] sm:$0xff] %vm233, %v813
  %885 = vst.msk [vmem:[%s881 + $0x18] sm:$0xff] %vm233, %v818
  %886 = vst.msk [vmem:[%s881 + $0x20] sm:$0xff] %vm233, %v823
  %887 = vst.msk [vmem:[%s881 + $0x28] sm:$0xff] %vm233, %v828
  %888 = vst.msk [vmem:[%s881 + $0x30] sm:$0xff] %vm233, %v833
  %889 = vst.msk [vmem:[%s881 + $0x38] sm:$0xff] %vm233, %v838
  %890 = vst.msk [vmem:[%s881 + $0x40] sm:$0xff] %vm233, %v843
  %891 = vst.msk [vmem:[%s881 + $0x48] sm:$0xff] %vm233, %v848
  %892 = vst.msk [vmem:[%s881 + $0x50] sm:$0xff] %vm233, %v853
  %893 = vst.msk [vmem:[%s881 + $0x58] sm:$0xff] %vm233, %v858
  %894 = vst.msk [vmem:[%s881 + $0x60] sm:$0xff] %vm233, %v863
  %895 = vst.msk [vmem:[%s881 + $0x68] sm:$0xff] %vm233, %v868
  %896 = vst.msk [vmem:[%s881 + $0x70] sm:$0xff] %vm233, %v873
  %897 = vst.msk [vmem:[%s881 + $0x78] sm:$0xff] %vm233, %v878
  %v898 = vsel %vm233, %v803, 0.0
  %v899 = vsel %vm233, %v808, 0.0
  %v900 = vadd.f32 %v898, %v899
  %v901 = vsel %vm233, %v813, 0.0
  %v902 = vadd.f32 %v900, %v901
  %v903 = vsel %vm233, %v818, 0.0
  %v904 = vadd.f32 %v902, %v903
  %v905 = vsel %vm233, %v823, 0.0
  %v906 = vadd.f32 %v904, %v905
  %v907 = vsel %vm233, %v828, 0.0
  %v908 = vadd.f32 %v906, %v907
  %v909 = vsel %vm233, %v833, 0.0
  %v910 = vadd.f32 %v908, %v909
  %v911 = vsel %vm233, %v838, 0.0
  %v912 = vadd.f32 %v910, %v911
  %v913 = vsel %vm233, %v843, 0.0
  %v914 = vadd.f32 %v912, %v913
  %v915 = vsel %vm233, %v848, 0.0
  %v916 = vadd.f32 %v914, %v915
  %v917 = vsel %vm233, %v853, 0.0
  %v918 = vadd.f32 %v916, %v917
  %v919 = vsel %vm233, %v858, 0.0
  %v920 = vadd.f32 %v918, %v919
  %v921 = vsel %vm233, %v863, 0.0
  %v922 = vadd.f32 %v920, %v921
  %v923 = vsel %vm233, %v868, 0.0
  %v924 = vadd.f32 %v922, %v923
  %v925 = vsel %vm233, %v873, 0.0
  %v926 = vadd.f32 %v924, %v925
  %v927 = vsel %vm233, %v878, 0.0
  %v928 = vadd.f32 %v926, %v927
  %v929 = vrot.slane %v928, 4
  %v930 = vadd.f32 %v928, %v929
  %v931 = vrot.slane %v930, 2
  %v932 = vadd.f32 %v930, %v931
  %v933 = vrot.slane %v932, 1
  %v934 = vadd.f32 %v932, %v933
  %v935 = vadd.f32 %v611, %v934
  %v936 = vmul.f32 %v803, %v803
  %v937 = vmul.f32 %v808, %v808
  %v938 = vmul.f32 %v813, %v813
  %v939 = vmul.f32 %v818, %v818
  %v940 = vmul.f32 %v823, %v823
  %v941 = vmul.f32 %v828, %v828
  %v942 = vmul.f32 %v833, %v833
  %v943 = vmul.f32 %v838, %v838
  %v944 = vmul.f32 %v843, %v843
  %v945 = vmul.f32 %v848, %v848
  %v946 = vmul.f32 %v853, %v853
  %v947 = vmul.f32 %v858, %v858
  %v948 = vmul.f32 %v863, %v863
  %v949 = vmul.f32 %v868, %v868
  %v950 = vmul.f32 %v873, %v873
  %v951 = vmul.f32 %v878, %v878
  %v952 = vsel %vm233, %v936, 0.0
  %v953 = vsel %vm233, %v937, 0.0
  %v954 = vadd.f32 %v952, %v953
  %v955 = vsel %vm233, %v938, 0.0
  %v956 = vadd.f32 %v954, %v955
  %v957 = vsel %vm233, %v939, 0.0
  %v958 = vadd.f32 %v956, %v957
  %v959 = vsel %vm233, %v940, 0.0
  %v960 = vadd.f32 %v958, %v959
  %v961 = vsel %vm233, %v941, 0.0
  %v962 = vadd.f32 %v960, %v961
  %v963 = vsel %vm233, %v942, 0.0
  %v964 = vadd.f32 %v962, %v963
  %v965 = vsel %vm233, %v943, 0.0
  %v966 = vadd.f32 %v964, %v965
  %v967 = vsel %vm233, %v944, 0.0
  %v968 = vadd.f32 %v966, %v967
  %v969 = vsel %vm233, %v945, 0.0
  %v970 = vadd.f32 %v968, %v969
  %v971 = vsel %vm233, %v946, 0.0
  %v972 = vadd.f32 %v970, %v971
  %v973 = vsel %vm233, %v947, 0.0
  %v974 = vadd.f32 %v972, %v973
  %v975 = vsel %vm233, %v948, 0.0
  %v976 = vadd.f32 %v974, %v975
  %v977 = vsel %vm233, %v949, 0.0
  %v978 = vadd.f32 %v976, %v977
  %v979 = vsel %vm233, %v950, 0.0
  %v980 = vadd.f32 %v978, %v979
  %v981 = vsel %vm233, %v951, 0.0
  %v982 = vadd.f32 %v980, %v981
  %v983 = vrot.slane %v982, 4
  %v984 = vadd.f32 %v982, %v983
  %v985 = vrot.slane %v984, 2
  %v986 = vadd.f32 %v984, %v985
  %v987 = vrot.slane %v986, 1
  %v988 = vadd.f32 %v986, %v987
  %v989 = vadd.f32 %v665, %v988
  %s990 = scalar_lea.vmem %s0, 384
  %v991 = vld [vmem:[%s990] sm:$0xff]
  %v992 = vld [vmem:[%s990 + $0x8] sm:$0xff]
  %v993 = vld [vmem:[%s990 + $0x10] sm:$0xff]
  %v994 = vld [vmem:[%s990 + $0x18] sm:$0xff]
  %v995 = vld [vmem:[%s990 + $0x20] sm:$0xff]
  %v996 = vld [vmem:[%s990 + $0x28] sm:$0xff]
  %v997 = vld [vmem:[%s990 + $0x30] sm:$0xff]
  %v998 = vld [vmem:[%s990 + $0x38] sm:$0xff]
  %v999 = vld [vmem:[%s990 + $0x40] sm:$0xff]
  %v1000 = vld [vmem:[%s990 + $0x48] sm:$0xff]
  %v1001 = vld [vmem:[%s990 + $0x50] sm:$0xff]
  %v1002 = vld [vmem:[%s990 + $0x58] sm:$0xff]
  %v1003 = vld [vmem:[%s990 + $0x60] sm:$0xff]
  %v1004 = vld [vmem:[%s990 + $0x68] sm:$0xff]
  %v1005 = vld [vmem:[%s990 + $0x70] sm:$0xff]
  %v1006 = vld [vmem:[%s990 + $0x78] sm:$0xff]
  %v1007 = vld [vmem:[%s1] sm:$0xff]
  %v1008 = vld [vmem:[%s1 + $0x8] sm:$0x1]
  %v1010 = vsel %vm35, %v991, 0
  %v1013 = vsel %vm35, %v992, 0
  %v1016 = vsel %vm35, %v993, 0
  %v1019 = vsel %vm35, %v994, 0
  %v1022 = vsel %vm35, %v995, 0
  %v1025 = vsel %vm35, %v996, 0
  %v1028 = vsel %vm35, %v997, 0
  %v1031 = vsel %vm35, %v998, 0
  %v1034 = vsel %vm35, %v999, 0
  %v1037 = vsel %vm35, %v1000, 0
  %v1040 = vsel %vm35, %v1001, 0
  %v1043 = vsel %vm35, %v1002, 0
  %v1046 = vsel %vm35, %v1003, 0
  %v1049 = vsel %vm35, %v1004, 0
  %v1052 = vsel %vm35, %v1005, 0
  %v1055 = vsel %vm35, %v1006, 0
  %v1058 = vsel %vm84, %v1008, 0
  %1060 = vmatprep.subr.mxu0 0.0
  %1061 = vmatpush1.msra.mxu0 %v1007
  %1062 = vmatprep.subr.mxu0 0.0
  %1063 = vmatpush1.msra.mxu0 %v1058
  %1064 = vmatprep.subr.mxu0 0.0
  %1065 = vmatpush1.msra.mxu0 0.0
  %1066 = vmatprep.subr.mxu0 0.0
  %1067 = vmatpush1.msra.mxu0 0.0
  %1068 = vmatprep.subr.mxu0 0.0
  %1069 = vmatpush1.msra.mxu0 0.0
  %1070 = vmatprep.subr.mxu0 0.0
  %1071 = vmatpush1.msra.mxu0 0.0
  %1072 = vmatprep.subr.mxu0 0.0
  %1073 = vmatpush1.msra.mxu0 0.0
  %1074 = vmatprep.subr.mxu0 0.0
  %1075 = vmatpush1.msra.mxu0 0.0
  %1076 = vmatprep.subr.mxu0 0.0
  %1077 = vmatpush1.msra.mxu0 0.0
  %1078 = vmatprep.subr.mxu0 0.0
  %1079 = vmatpush1.msra.mxu0 0.0
  %1080 = vmatprep.subr.mxu0 0.0
  %1081 = vmatpush1.msra.mxu0 0.0
  %1082 = vmatprep.subr.mxu0 0.0
  %1083 = vmatpush1.msra.mxu0 0.0
  %1084 = vmatprep.subr.mxu0 0.0
  %1085 = vmatpush1.msra.mxu0 0.0
  %1086 = vmatprep.subr.mxu0 0.0
  %1087 = vmatpush1.msra.mxu0 0.0
  %1088 = vmatprep.subr.mxu0 0.0
  %1089 = vmatpush1.msra.mxu0 0.0
  %1090 = vmatprep.subr.mxu0 0.0
  %1091 = vmatpush1.msra.mxu0 0.0
  %1092 = vmatprep.subr.mxu0 0.0
  %1093 = vmatpush1.msra.mxu0 0.0
  %1094 = vmatprep.subr.mxu0 0.0
  %1095 = vmatpush1.msra.mxu0 0.0
  %1096 = vmatprep.subr.mxu0 0.0
  %1097 = vmatpush1.msra.mxu0 0.0
  %1098 = vmatprep.subr.mxu0 0.0
  %1099 = vmatpush1.msra.mxu0 0.0
  %1100 = vmatprep.subr.mxu0 0.0
  %1101 = vmatpush1.msra.mxu0 0.0
  %1102 = vmatprep.subr.mxu0 0.0
  %1103 = vmatpush1.msra.mxu0 0.0
  %1104 = vmatprep.subr.mxu0 0.0
  %1105 = vmatpush1.msra.mxu0 0.0
  %1106 = vmatprep.subr.mxu0 0.0
  %1107 = vmatpush1.msra.mxu0 0.0
  %1108 = vmatprep.subr.mxu0 0.0
  %1109 = vmatpush1.msra.mxu0 0.0
  %1110 = vmatprep.subr.mxu0 0.0
  %1111 = vmatpush1.msra.mxu0 0.0
  %1112 = vmatprep.subr.mxu0 0.0
  %1113 = vmatpush1.msra.mxu0 0.0
  %1114 = vmatprep.subr.mxu0 0.0
  %1115 = vmatpush1.msra.mxu0 0.0
  %1116 = vmatprep.subr.mxu0 0.0
  %1117 = vmatpush1.msra.mxu0 0.0
  %1118 = vmatprep.subr.mxu0 0.0
  %1119 = vmatpush1.msra.mxu0 0.0
  %1120 = vmatprep.subr.mxu0 0.0
  %1121 = vmatpush1.msra.mxu0 0.0
  %1122 = vmatprep.subr.mxu0 0.0
  %1123 = vmatpush1.msra.mxu0 0.0
  %1124 = vmatprep.mubr.f32.mxu0 0.0
  %1125 = vmatmul.mubr.f32.gmra.mrb[0].mxu0 %v1010
  %v1126 = vpop.f32.mrb[0].mxu0
  %v1127 = vadd.f32 0.0, %v1126
  %v1128 = vpop.f32.mrb[0].mxu0
  %1129 = vmatprep.mubr.f32.mxu0 0.0
  %1130 = vmatmul.mubr.f32.gmra.mrb[0].mxu0 %v1013
  %v1131 = vpop.f32.mrb[0].mxu0
  %v1132 = vadd.f32 0.0, %v1131
  %v1133 = vpop.f32.mrb[0].mxu0
  %1134 = vmatprep.mubr.f32.mxu0 0.0
  %1135 = vmatmul.mubr.f32.gmra.mrb[0].mxu0 %v1016
  %v1136 = vpop.f32.mrb[0].mxu0
  %v1137 = vadd.f32 0.0, %v1136
  %v1138 = vpop.f32.mrb[0].mxu0
  %1139 = vmatprep.mubr.f32.mxu0 0.0
  %1140 = vmatmul.mubr.f32.gmra.mrb[0].mxu0 %v1019
  %v1141 = vpop.f32.mrb[0].mxu0
  %v1142 = vadd.f32 0.0, %v1141
  %v1143 = vpop.f32.mrb[0].mxu0
  %1144 = vmatprep.mubr.f32.mxu0 0.0
  %1145 = vmatmul.mubr.f32.gmra.mrb[0].mxu0 %v1022
  %v1146 = vpop.f32.mrb[0].mxu0
  %v1147 = vadd.f32 0.0, %v1146
  %v1148 = vpop.f32.mrb[0].mxu0
  %1149 = vmatprep.mubr.f32.mxu0 0.0
  %1150 = vmatmul.mubr.f32.gmra.mrb[0].mxu0 %v1025
  %v1151 = vpop.f32.mrb[0].mxu0
  %v1152 = vadd.f32 0.0, %v1151
  %v1153 = vpop.f32.mrb[0].mxu0
  %1154 = vmatprep.mubr.f32.mxu0 0.0
  %1155 = vmatmul.mubr.f32.gmra.mrb[0].mxu0 %v1028
  %v1156 = vpop.f32.mrb[0].mxu0
  %v1157 = vadd.f32 0.0, %v1156
  %v1158 = vpop.f32.mrb[0].mxu0
  %1159 = vmatprep.mubr.f32.mxu0 0.0
  %1160 = vmatmul.mubr.f32.gmra.mrb[0].mxu0 %v1031
  %v1161 = vpop.f32.mrb[0].mxu0
  %v1162 = vadd.f32 0.0, %v1161
  %v1163 = vpop.f32.mrb[0].mxu0
  %1164 = vmatprep.mubr.f32.mxu0 0.0
  %1165 = vmatmul.mubr.f32.gmra.mrb[0].mxu0 %v1034
  %v1166 = vpop.f32.mrb[0].mxu0
  %v1167 = vadd.f32 0.0, %v1166
  %v1168 = vpop.f32.mrb[0].mxu0
  %1169 = vmatprep.mubr.f32.mxu0 0.0
  %1170 = vmatmul.mubr.f32.gmra.mrb[0].mxu0 %v1037
  %v1171 = vpop.f32.mrb[0].mxu0
  %v1172 = vadd.f32 0.0, %v1171
  %v1173 = vpop.f32.mrb[0].mxu0
  %1174 = vmatprep.mubr.f32.mxu0 0.0
  %1175 = vmatmul.mubr.f32.gmra.mrb[0].mxu0 %v1040
  %v1176 = vpop.f32.mrb[0].mxu0
  %v1177 = vadd.f32 0.0, %v1176
  %v1178 = vpop.f32.mrb[0].mxu0
  %1179 = vmatprep.mubr.f32.mxu0 0.0
  %1180 = vmatmul.mubr.f32.gmra.mrb[0].mxu0 %v1043
  %v1181 = vpop.f32.mrb[0].mxu0
  %v1182 = vadd.f32 0.0, %v1181
  %v1183 = vpop.f32.mrb[0].mxu0
  %1184 = vmatprep.mubr.f32.mxu0 0.0
  %1185 = vmatmul.mubr.f32.gmra.mrb[0].mxu0 %v1046
  %v1186 = vpop.f32.mrb[0].mxu0
  %v1187 = vadd.f32 0.0, %v1186
  %v1188 = vpop.f32.mrb[0].mxu0
  %1189 = vmatprep.mubr.f32.mxu0 0.0
  %1190 = vmatmul.mubr.f32.gmra.mrb[0].mxu0 %v1049
  %v1191 = vpop.f32.mrb[0].mxu0
  %v1192 = vadd.f32 0.0, %v1191
  %v1193 = vpop.f32.mrb[0].mxu0
  %1194 = vmatprep.mubr.f32.mxu0 0.0
  %1195 = vmatmul.mubr.f32.gmra.mrb[0].mxu0 %v1052
  %v1196 = vpop.f32.mrb[0].mxu0
  %v1197 = vadd.f32 0.0, %v1196
  %v1198 = vpop.f32.mrb[0].mxu0
  %1199 = vmatprep.mubr.f32.mxu0 0.0
  %1200 = vmatmul.mubr.f32.gmra.mrb[0].mxu0 %v1055
  %v1201 = vpop.f32.mrb[0].mxu0
  %v1202 = vadd.f32 0.0, %v1201
  %v1203 = vpop.f32.mrb[0].mxu0
  %1204 = vdwg.mxu0
  %s1205 = scalar_lea.vmem [#allocation2], 384
  %1206 = vst.msk [vmem:[%s1205] sm:$0xff] %vm233, %v1127
  %1207 = vst.msk [vmem:[%s1205 + $0x8] sm:$0xff] %vm233, %v1132
  %1208 = vst.msk [vmem:[%s1205 + $0x10] sm:$0xff] %vm233, %v1137
  %1209 = vst.msk [vmem:[%s1205 + $0x18] sm:$0xff] %vm233, %v1142
  %1210 = vst.msk [vmem:[%s1205 + $0x20] sm:$0xff] %vm233, %v1147
  %1211 = vst.msk [vmem:[%s1205 + $0x28] sm:$0xff] %vm233, %v1152
  %1212 = vst.msk [vmem:[%s1205 + $0x30] sm:$0xff] %vm233, %v1157
  %1213 = vst.msk [vmem:[%s1205 + $0x38] sm:$0xff] %vm233, %v1162
  %1214 = vst.msk [vmem:[%s1205 + $0x40] sm:$0xff] %vm233, %v1167
  %1215 = vst.msk [vmem:[%s1205 + $0x48] sm:$0xff] %vm233, %v1172
  %1216 = vst.msk [vmem:[%s1205 + $0x50] sm:$0xff] %vm233, %v1177
  %1217 = vst.msk [vmem:[%s1205 + $0x58] sm:$0xff] %vm233, %v1182
  %1218 = vst.msk [vmem:[%s1205 + $0x60] sm:$0xff] %vm233, %v1187
  %1219 = vst.msk [vmem:[%s1205 + $0x68] sm:$0xff] %vm233, %v1192
  %1220 = vst.msk [vmem:[%s1205 + $0x70] sm:$0xff] %vm233, %v1197
  %1221 = vst.msk [vmem:[%s1205 + $0x78] sm:$0xff] %vm233, %v1202
  %v1222 = vsel %vm233, %v1127, 0.0
  %v1223 = vsel %vm233, %v1132, 0.0
  %v1224 = vadd.f32 %v1222, %v1223
  %v1225 = vsel %vm233, %v1137, 0.0
  %v1226 = vadd.f32 %v1224, %v1225
  %v1227 = vsel %vm233, %v1142, 0.0
  %v1228 = vadd.f32 %v1226, %v1227
  %v1229 = vsel %vm233, %v1147, 0.0
  %v1230 = vadd.f32 %v1228, %v1229
  %v1231 = vsel %vm233, %v1152, 0.0
  %v1232 = vadd.f32 %v1230, %v1231
  %v1233 = vsel %vm233, %v1157, 0.0
  %v1234 = vadd.f32 %v1232, %v1233
  %v1235 = vsel %vm233, %v1162, 0.0
  %v1236 = vadd.f32 %v1234, %v1235
  %v1237 = vsel %vm233, %v1167, 0.0
  %v1238 = vadd.f32 %v1236, %v1237
  %v1239 = vsel %vm233, %v1172, 0.0
  %v1240 = vadd.f32 %v1238, %v1239
  %v1241 = vsel %vm233, %v1177, 0.0
  %v1242 = vadd.f32 %v1240, %v1241
  %v1243 = vsel %vm233, %v1182, 0.0
  %v1244 = vadd.f32 %v1242, %v1243
  %v1245 = vsel %vm233, %v1187, 0.0
  %v1246 = vadd.f32 %v1244, %v1245
  %v1247 = vsel %vm233, %v1192, 0.0
  %v1248 = vadd.f32 %v1246, %v1247
  %v1249 = vsel %vm233, %v1197, 0.0
  %v1250 = vadd.f32 %v1248, %v1249
  %v1251 = vsel %vm233, %v1202, 0.0
  %v1252 = vadd.f32 %v1250, %v1251
  %v1253 = vrot.slane %v1252, 4
  %v1254 = vadd.f32 %v1252, %v1253
  %v1255 = vrot.slane %v1254, 2
  %v1256 = vadd.f32 %v1254, %v1255
  %v1257 = vrot.slane %v1256, 1
  %v1258 = vadd.f32 %v1256, %v1257
  %v1259 = vadd.f32 %v935, %v1258
  %v1260 = vmul.f32 %v1127, %v1127
  %v1261 = vmul.f32 %v1132, %v1132
  %v1262 = vmul.f32 %v1137, %v1137
  %v1263 = vmul.f32 %v1142, %v1142
  %v1264 = vmul.f32 %v1147, %v1147
  %v1265 = vmul.f32 %v1152, %v1152
  %v1266 = vmul.f32 %v1157, %v1157
  %v1267 = vmul.f32 %v1162, %v1162
  %v1268 = vmul.f32 %v1167, %v1167
  %v1269 = vmul.f32 %v1172, %v1172
  %v1270 = vmul.f32 %v1177, %v1177
  %v1271 = vmul.f32 %v1182, %v1182
  %v1272 = vmul.f32 %v1187, %v1187
  %v1273 = vmul.f32 %v1192, %v1192
  %v1274 = vmul.f32 %v1197, %v1197
  %v1275 = vmul.f32 %v1202, %v1202
  %v1276 = vsel %vm233, %v1260, 0.0
  %v1277 = vsel %vm233, %v1261, 0.0
  %v1278 = vadd.f32 %v1276, %v1277
  %v1279 = vsel %vm233, %v1262, 0.0
  %v1280 = vadd.f32 %v1278, %v1279
  %v1281 = vsel %vm233, %v1263, 0.0
  %v1282 = vadd.f32 %v1280, %v1281
  %v1283 = vsel %vm233, %v1264, 0.0
  %v1284 = vadd.f32 %v1282, %v1283
  %v1285 = vsel %vm233, %v1265, 0.0
  %v1286 = vadd.f32 %v1284, %v1285
  %v1287 = vsel %vm233, %v1266, 0.0
  %v1288 = vadd.f32 %v1286, %v1287
  %v1289 = vsel %vm233, %v1267, 0.0
  %v1290 = vadd.f32 %v1288, %v1289
  %v1291 = vsel %vm233, %v1268, 0.0
  %v1292 = vadd.f32 %v1290, %v1291
  %v1293 = vsel %vm233, %v1269, 0.0
  %v1294 = vadd.f32 %v1292, %v1293
  %v1295 = vsel %vm233, %v1270, 0.0
  %v1296 = vadd.f32 %v1294, %v1295
  %v1297 = vsel %vm233, %v1271, 0.0
  %v1298 = vadd.f32 %v1296, %v1297
  %v1299 = vsel %vm233, %v1272, 0.0
  %v1300 = vadd.f32 %v1298, %v1299
  %v1301 = vsel %vm233, %v1273, 0.0
  %v1302 = vadd.f32 %v1300, %v1301
  %v1303 = vsel %vm233, %v1274, 0.0
  %v1304 = vadd.f32 %v1302, %v1303
  %v1305 = vsel %vm233, %v1275, 0.0
  %v1306 = vadd.f32 %v1304, %v1305
  %v1307 = vrot.slane %v1306, 4
  %v1308 = vadd.f32 %v1306, %v1307
  %v1309 = vrot.slane %v1308, 2
  %v1310 = vadd.f32 %v1308, %v1309
  %v1311 = vrot.slane %v1310, 1
  %v1312 = vadd.f32 %v1310, %v1311
  %v1313 = vadd.f32 %v989, %v1312
  %v1314 = vrcp.pop 512.0
  %v1315 = vmul.f32 %v1259, %v1314
  %v1316 = vmul.f32 %v1313, %v1314
  %v1317 = vmul.f32 %v1315, %v1315
  %v1318 = vsub.f32 %v1316, %v1317
  %v1319 = vmax.f32 %v1318, 0.0
  %v1320 = vld [vmem:[%s2] sm:$0x1]
  %v1321 = vadd.f32 %v1319, 1e-05
  %v1322 = vrsqrt.pop %v1321
  %v1323 = vmul.f32 %v1320, %v1322
  %v1324 = vld [vmem:[%s3] sm:$0x1]
  %v1325 = vmul.f32 %v1315, %v1323
  %v1326 = vsub.f32 %v1324, %v1325
  %v1327 = vld [vmem:[#allocation2] sm:$0xff]
  %v1328 = vld [vmem:[#allocation2 + $0x8] sm:$0xff]
  %v1329 = vld [vmem:[#allocation2 + $0x10] sm:$0xff]
  %v1330 = vld [vmem:[#allocation2 + $0x18] sm:$0xff]
  %v1331 = vld [vmem:[#allocation2 + $0x20] sm:$0xff]
  %v1332 = vld [vmem:[#allocation2 + $0x28] sm:$0xff]
  %v1333 = vld [vmem:[#allocation2 + $0x30] sm:$0xff]
  %v1334 = vld [vmem:[#allocation2 + $0x38] sm:$0xff]
  %v1335 = vld [vmem:[#allocation2 + $0x40] sm:$0xff]
  %v1336 = vld [vmem:[#allocation2 + $0x48] sm:$0xff]
  %v1337 = vld [vmem:[#allocation2 + $0x50] sm:$0xff]
  %v1338 = vld [vmem:[#allocation2 + $0x58] sm:$0xff]
  %v1339 = vld [vmem:[#allocation2 + $0x60] sm:$0xff]
  %v1340 = vld [vmem:[#allocation2 + $0x68] sm:$0xff]
  %v1341 = vld [vmem:[#allocation2 + $0x70] sm:$0xff]
  %v1342 = vld [vmem:[#allocation2 + $0x78] sm:$0xff]
  %v1344 = vlaneseq
  %v1345 = vshrl.u32 %v1344, 7
  %v1346 = vsub.s32 0, %v1345
  %v1347 = vrot.slane %v1323, %v1346
  %v1349 = vmul.f32 %v1327, %v1347
  %v1350 = vmul.f32 %v1328, %v1347
  %v1351 = vmul.f32 %v1329, %v1347
  %v1352 = vmul.f32 %v1330, %v1347
  %v1353 = vmul.f32 %v1331, %v1347
  %v1354 = vmul.f32 %v1332, %v1347
  %v1355 = vmul.f32 %v1333, %v1347
  %v1356 = vmul.f32 %v1334, %v1347
  %v1357 = vmul.f32 %v1335, %v1347
  %v1358 = vmul.f32 %v1336, %v1347
  %v1359 = vmul.f32 %v1337, %v1347
  %v1360 = vmul.f32 %v1338, %v1347
  %v1361 = vmul.f32 %v1339, %v1347
  %v1362 = vmul.f32 %v1340, %v1347
  %v1363 = vmul.f32 %v1341, %v1347
  %v1364 = vmul.f32 %v1342, %v1347
  %v1366 = vlaneseq
  %v1367 = vshrl.u32 %v1366, 7
  %v1368 = vsub.s32 0, %v1367
  %v1369 = vrot.slane %v1326, %v1368
  %v1371 = vadd.f32 %v1349, %v1369
  %v1372 = vadd.f32 %v1350, %v1369
  %v1373 = vadd.f32 %v1351, %v1369
  %v1374 = vadd.f32 %v1352, %v1369
  %v1375 = vadd.f32 %v1353, %v1369
  %v1376 = vadd.f32 %v1354, %v1369
  %v1377 = vadd.f32 %v1355, %v1369
  %v1378 = vadd.f32 %v1356, %v1369
  %v1379 = vadd.f32 %v1357, %v1369
  %v1380 = vadd.f32 %v1358, %v1369
  %v1381 = vadd.f32 %v1359, %v1369
  %v1382 = vadd.f32 %v1360, %v1369
  %v1383 = vadd.f32 %v1361, %v1369
  %v1384 = vadd.f32 %v1362, %v1369
  %v1385 = vadd.f32 %v1363, %v1369
  %v1386 = vadd.f32 %v1364, %v1369
  %v1387 = vmax.f32 %v1371, 0.0
  %v1388 = vmax.f32 %v1372, 0.0
  %v1389 = vmax.f32 %v1373, 0.0
  %v1390 = vmax.f32 %v1374, 0.0
  %v1391 = vmax.f32 %v1375, 0.0
  %v1392 = vmax.f32 %v1376, 0.0
  %v1393 = vmax.f32 %v1377, 0.0
  %v1394 = vmax.f32 %v1378, 0.0
  %v1395 = vmax.f32 %v1379, 0.0
  %v1396 = vmax.f32 %v1380, 0.0
  %v1397 = vmax.f32 %v1381, 0.0
  %v1398 = vmax.f32 %v1382, 0.0
  %v1399 = vmax.f32 %v1383, 0.0
  %v1400 = vmax.f32 %v1384, 0.0
  %v1401 = vmax.f32 %v1385, 0.0
  %v1402 = vmax.f32 %v1386, 0.0
  %v1403 = vld [vmem:[%s557] sm:$0xff]
  %v1404 = vld [vmem:[%s557 + $0x8] sm:$0xff]
  %v1405 = vld [vmem:[%s557 + $0x10] sm:$0xff]
  %v1406 = vld [vmem:[%s557 + $0x18] sm:$0xff]
  %v1407 = vld [vmem:[%s557 + $0x20] sm:$0xff]
  %v1408 = vld [vmem:[%s557 + $0x28] sm:$0xff]
  %v1409 = vld [vmem:[%s557 + $0x30] sm:$0xff]
  %v1410 = vld [vmem:[%s557 + $0x38] sm:$0xff]
  %v1411 = vld [vmem:[%s557 + $0x40] sm:$0xff]
  %v1412 = vld [vmem:[%s557 + $0x48] sm:$0xff]
  %v1413 = vld [vmem:[%s557 + $0x50] sm:$0xff]
  %v1414 = vld [vmem:[%s557 + $0x58] sm:$0xff]
  %v1415 = vld [vmem:[%s557 + $0x60] sm:$0xff]
  %v1416 = vld [vmem:[%s557 + $0x68] sm:$0xff]
  %v1417 = vld [vmem:[%s557 + $0x70] sm:$0xff]
  %v1418 = vld [vmem:[%s557 + $0x78] sm:$0xff]
  %v1419 = vmul.f32 %v1403, %v1347
  %v1420 = vmul.f32 %v1404, %v1347
  %v1421 = vmul.f32 %v1405, %v1347
  %v1422 = vmul.f32 %v1406, %v1347
  %v1423 = vmul.f32 %v1407, %v1347
  %v1424 = vmul.f32 %v1408, %v1347
  %v1425 = vmul.f32 %v1409, %v1347
  %v1426 = vmul.f32 %v1410, %v1347
  %v1427 = vmul.f32 %v1411, %v1347
  %v1428 = vmul.f32 %v1412, %v1347
  %v1429 = vmul.f32 %v1413, %v1347
  %v1430 = vmul.f32 %v1414, %v1347
  %v1431 = vmul.f32 %v1415, %v1347
  %v1432 = vmul.f32 %v1416, %v1347
  %v1433 = vmul.f32 %v1417, %v1347
  %v1434 = vmul.f32 %v1418, %v1347
  %v1435 = vadd.f32 %v1419, %v1369
  %v1436 = vadd.f32 %v1420, %v1369
  %v1437 = vadd.f32 %v1421, %v1369
  %v1438 = vadd.f32 %v1422, %v1369
  %v1439 = vadd.f32 %v1423, %v1369
  %v1440 = vadd.f32 %v1424, %v1369
  %v1441 = vadd.f32 %v1425, %v1369
  %v1442 = vadd.f32 %v1426, %v1369
  %v1443 = vadd.f32 %v1427, %v1369
  %v1444 = vadd.f32 %v1428, %v1369
  %v1445 = vadd.f32 %v1429, %v1369
  %v1446 = vadd.f32 %v1430, %v1369
  %v1447 = vadd.f32 %v1431, %v1369
  %v1448 = vadd.f32 %v1432, %v1369
  %v1449 = vadd.f32 %v1433, %v1369
  %v1450 = vadd.f32 %v1434, %v1369
  %v1451 = vmax.f32 %v1435, 0.0
  %v1452 = vmax.f32 %v1436, 0.0
  %v1453 = vmax.f32 %v1437, 0.0
  %v1454 = vmax.f32 %v1438, 0.0
  %v1455 = vmax.f32 %v1439, 0.0
  %v1456 = vmax.f32 %v1440, 0.0
  %v1457 = vmax.f32 %v1441, 0.0
  %v1458 = vmax.f32 %v1442, 0.0
  %v1459 = vmax.f32 %v1443, 0.0
  %v1460 = vmax.f32 %v1444, 0.0
  %v1461 = vmax.f32 %v1445, 0.0
  %v1462 = vmax.f32 %v1446, 0.0
  %v1463 = vmax.f32 %v1447, 0.0
  %v1464 = vmax.f32 %v1448, 0.0
  %v1465 = vmax.f32 %v1449, 0.0
  %v1466 = vmax.f32 %v1450, 0.0
  %v1467 = vmax.f32 %v1387, %v1451
  %v1468 = vmax.f32 %v1388, %v1452
  %v1469 = vmax.f32 %v1389, %v1453
  %v1470 = vmax.f32 %v1390, %v1454
  %v1471 = vmax.f32 %v1391, %v1455
  %v1472 = vmax.f32 %v1392, %v1456
  %v1473 = vmax.f32 %v1393, %v1457
  %v1474 = vmax.f32 %v1394, %v1458
  %v1475 = vmax.f32 %v1395, %v1459
  %v1476 = vmax.f32 %v1396, %v1460
  %v1477 = vmax.f32 %v1397, %v1461
  %v1478 = vmax.f32 %v1398, %v1462
  %v1479 = vmax.f32 %v1399, %v1463
  %v1480 = vmax.f32 %v1400, %v1464
  %v1481 = vmax.f32 %v1401, %v1465
  %v1482 = vmax.f32 %v1402, %v1466
  %v1483 = vld [vmem:[%s881] sm:$0xff]
  %v1484 = vld [vmem:[%s881 + $0x8] sm:$0xff]
  %v1485 = vld [vmem:[%s881 + $0x10] sm:$0xff]
  %v1486 = vld [vmem:[%s881 + $0x18] sm:$0xff]
  %v1487 = vld [vmem:[%s881 + $0x20] sm:$0xff]
  %v1488 = vld [vmem:[%s881 + $0x28] sm:$0xff]
  %v1489 = vld [vmem:[%s881 + $0x30] sm:$0xff]
  %v1490 = vld [vmem:[%s881 + $0x38] sm:$0xff]
  %v1491 = vld [vmem:[%s881 + $0x40] sm:$0xff]
  %v1492 = vld [vmem:[%s881 + $0x48] sm:$0xff]
  %v1493 = vld [vmem:[%s881 + $0x50] sm:$0xff]
  %v1494 = vld [vmem:[%s881 + $0x58] sm:$0xff]
  %v1495 = vld [vmem:[%s881 + $0x60] sm:$0xff]
  %v1496 = vld [vmem:[%s881 + $0x68] sm:$0xff]
  %v1497 = vld [vmem:[%s881 + $0x70] sm:$0xff]
  %v1498 = vld [vmem:[%s881 + $0x78] sm:$0xff]
  %v1499 = vmul.f32 %v1483, %v1347
  %v1500 = vmul.f32 %v1484, %v1347
  %v1501 = vmul.f32 %v1485, %v1347
  %v1502 = vmul.f32 %v1486, %v1347
  %v1503 = vmul.f32 %v1487, %v1347
  %v1504 = vmul.f32 %v1488, %v1347
  %v1505 = vmul.f32 %v1489, %v1347
  %v1506 = vmul.f32 %v1490, %v1347
  %v1507 = vmul.f32 %v1491, %v1347
  %v1508 = vmul.f32 %v1492, %v1347
  %v1509 = vmul.f32 %v1493, %v1347
  %v1510 = vmul.f32 %v1494, %v1347
  %v1511 = vmul.f32 %v1495, %v1347
  %v1512 = vmul.f32 %v1496, %v1347
  %v1513 = vmul.f32 %v1497, %v1347
  %v1514 = vmul.f32 %v1498, %v1347
  %v1515 = vadd.f32 %v1499, %v1369
  %v1516 = vadd.f32 %v1500, %v1369
  %v1517 = vadd.f32 %v1501, %v1369
  %v1518 = vadd.f32 %v1502, %v1369
  %v1519 = vadd.f32 %v1503, %v1369
  %v1520 = vadd.f32 %v1504, %v1369
  %v1521 = vadd.f32 %v1505, %v1369
  %v1522 = vadd.f32 %v1506, %v1369
  %v1523 = vadd.f32 %v1507, %v1369
  %v1524 = vadd.f32 %v1508, %v1369
  %v1525 = vadd.f32 %v1509, %v1369
  %v1526 = vadd.f32 %v1510, %v1369
  %v1527 = vadd.f32 %v1511, %v1369
  %v1528 = vadd.f32 %v1512, %v1369
  %v1529 = vadd.f32 %v1513, %v1369
  %v1530 = vadd.f32 %v1514, %v1369
  %v1531 = vmax.f32 %v1515, 0.0
  %v1532 = vmax.f32 %v1516, 0.0
  %v1533 = vmax.f32 %v1517, 0.0
  %v1534 = vmax.f32 %v1518, 0.0
  %v1535 = vmax.f32 %v1519, 0.0
  %v1536 = vmax.f32 %v1520, 0.0
  %v1537 = vmax.f32 %v1521, 0.0
  %v1538 = vmax.f32 %v1522, 0.0
  %v1539 = vmax.f32 %v1523, 0.0
  %v1540 = vmax.f32 %v1524, 0.0
  %v1541 = vmax.f32 %v1525, 0.0
  %v1542 = vmax.f32 %v1526, 0.0
  %v1543 = vmax.f32 %v1527, 0.0
  %v1544 = vmax.f32 %v1528, 0.0
  %v1545 = vmax.f32 %v1529, 0.0
  %v1546 = vmax.f32 %v1530, 0.0
  %v1547 = vmax.f32 %v1467, %v1531
  %v1548 = vmax.f32 %v1468, %v1532
  %v1549 = vmax.f32 %v1469, %v1533
  %v1550 = vmax.f32 %v1470, %v1534
  %v1551 = vmax.f32 %v1471, %v1535
  %v1552 = vmax.f32 %v1472, %v1536
  %v1553 = vmax.f32 %v1473, %v1537
  %v1554 = vmax.f32 %v1474, %v1538
  %v1555 = vmax.f32 %v1475, %v1539
  %v1556 = vmax.f32 %v1476, %v1540
  %v1557 = vmax.f32 %v1477, %v1541
  %v1558 = vmax.f32 %v1478, %v1542
  %v1559 = vmax.f32 %v1479, %v1543
  %v1560 = vmax.f32 %v1480, %v1544
  %v1561 = vmax.f32 %v1481, %v1545
  %v1562 = vmax.f32 %v1482, %v1546
  %v1563 = vld [vmem:[%s1205] sm:$0xff]
  %v1564 = vld [vmem:[%s1205 + $0x8] sm:$0xff]
  %v1565 = vld [vmem:[%s1205 + $0x10] sm:$0xff]
  %v1566 = vld [vmem:[%s1205 + $0x18] sm:$0xff]
  %v1567 = vld [vmem:[%s1205 + $0x20] sm:$0xff]
  %v1568 = vld [vmem:[%s1205 + $0x28] sm:$0xff]
  %v1569 = vld [vmem:[%s1205 + $0x30] sm:$0xff]
  %v1570 = vld [vmem:[%s1205 + $0x38] sm:$0xff]
  %v1571 = vld [vmem:[%s1205 + $0x40] sm:$0xff]
  %v1572 = vld [vmem:[%s1205 + $0x48] sm:$0xff]
  %v1573 = vld [vmem:[%s1205 + $0x50] sm:$0xff]
  %v1574 = vld [vmem:[%s1205 + $0x58] sm:$0xff]
  %v1575 = vld [vmem:[%s1205 + $0x60] sm:$0xff]
  %v1576 = vld [vmem:[%s1205 + $0x68] sm:$0xff]
  %v1577 = vld [vmem:[%s1205 + $0x70] sm:$0xff]
  %v1578 = vld [vmem:[%s1205 + $0x78] sm:$0xff]
  %v1579 = vmul.f32 %v1563, %v1347
  %v1580 = vmul.f32 %v1564, %v1347
  %v1581 = vmul.f32 %v1565, %v1347
  %v1582 = vmul.f32 %v1566, %v1347
  %v1583 = vmul.f32 %v1567, %v1347
  %v1584 = vmul.f32 %v1568, %v1347
  %v1585 = vmul.f32 %v1569, %v1347
  %v1586 = vmul.f32 %v1570, %v1347
  %v1587 = vmul.f32 %v1571, %v1347
  %v1588 = vmul.f32 %v1572, %v1347
  %v1589 = vmul.f32 %v1573, %v1347
  %v1590 = vmul.f32 %v1574, %v1347
  %v1591 = vmul.f32 %v1575, %v1347
  %v1592 = vmul.f32 %v1576, %v1347
  %v1593 = vmul.f32 %v1577, %v1347
  %v1594 = vmul.f32 %v1578, %v1347
  %v1595 = vadd.f32 %v1579, %v1369
  %v1596 = vadd.f32 %v1580, %v1369
  %v1597 = vadd.f32 %v1581, %v1369
  %v1598 = vadd.f32 %v1582, %v1369
  %v1599 = vadd.f32 %v1583, %v1369
  %v1600 = vadd.f32 %v1584, %v1369
  %v1601 = vadd.f32 %v1585, %v1369
  %v1602 = vadd.f32 %v1586, %v1369
  %v1603 = vadd.f32 %v1587, %v1369
  %v1604 = vadd.f32 %v1588, %v1369
  %v1605 = vadd.f32 %v1589, %v1369
  %v1606 = vadd.f32 %v1590, %v1369
  %v1607 = vadd.f32 %v1591, %v1369
  %v1608 = vadd.f32 %v1592, %v1369
  %v1609 = vadd.f32 %v1593, %v1369
  %v1610 = vadd.f32 %v1594, %v1369
  %v1611 = vmax.f32 %v1595, 0.0
  %v1612 = vmax.f32 %v1596, 0.0
  %v1613 = vmax.f32 %v1597, 0.0
  %v1614 = vmax.f32 %v1598, 0.0
  %v1615 = vmax.f32 %v1599, 0.0
  %v1616 = vmax.f32 %v1600, 0.0
  %v1617 = vmax.f32 %v1601, 0.0
  %v1618 = vmax.f32 %v1602, 0.0
  %v1619 = vmax.f32 %v1603, 0.0
  %v1620 = vmax.f32 %v1604, 0.0
  %v1621 = vmax.f32 %v1605, 0.0
  %v1622 = vmax.f32 %v1606, 0.0
  %v1623 = vmax.f32 %v1607, 0.0
  %v1624 = vmax.f32 %v1608, 0.0
  %v1625 = vmax.f32 %v1609, 0.0
  %v1626 = vmax.f32 %v1610, 0.0
  %v1627 = vmax.f32 %v1547, %v1611
  %v1628 = vmax.f32 %v1548, %v1612
  %v1629 = vmax.f32 %v1549, %v1613
  %v1630 = vmax.f32 %v1550, %v1614
  %v1631 = vmax.f32 %v1551, %v1615
  %v1632 = vmax.f32 %v1552, %v1616
  %v1633 = vmax.f32 %v1553, %v1617
  %v1634 = vmax.f32 %v1554, %v1618
  %v1635 = vmax.f32 %v1555, %v1619
  %v1636 = vmax.f32 %v1556, %v1620
  %v1637 = vmax.f32 %v1557, %v1621
  %v1638 = vmax.f32 %v1558, %v1622
  %v1639 = vmax.f32 %v1559, %v1623
  %v1640 = vmax.f32 %v1560, %v1624
  %v1641 = vmax.f32 %v1561, %v1625
  %v1642 = vmax.f32 %v1562, %v1626
  %1643 = vst.msk [vmem:[%s4] sm:$0xff] %vm233, %v1627
  %1644 = vst.msk [vmem:[%s4 + $0x8] sm:$0xff] %vm233, %v1628
  %1645 = vst.msk [vmem:[%s4 + $0x10] sm:$0xff] %vm233, %v1629
  %1646 = vst.msk [vmem:[%s4 + $0x18] sm:$0xff] %vm233, %v1630
  %1647 = vst.msk [vmem:[%s4 + $0x20] sm:$0xff] %vm233, %v1631
  %1648 = vst.msk [vmem:[%s4 + $0x28] sm:$0xff] %vm233, %v1632
  %1649 = vst.msk [vmem:[%s4 + $0x30] sm:$0xff] %vm233, %v1633
  %1650 = vst.msk [vmem:[%s4 + $0x38] sm:$0xff] %vm233, %v1634
  %1651 = vst.msk [vmem:[%s4 + $0x40] sm:$0xff] %vm233, %v1635
  %1652 = vst.msk [vmem:[%s4 + $0x48] sm:$0xff] %vm233, %v1636
  %1653 = vst.msk [vmem:[%s4 + $0x50] sm:$0xff] %vm233, %v1637
  %1654 = vst.msk [vmem:[%s4 + $0x58] sm:$0xff] %vm233, %v1638
  %1655 = vst.msk [vmem:[%s4 + $0x60] sm:$0xff] %vm233, %v1639
  %1656 = vst.msk [vmem:[%s4 + $0x68] sm:$0xff] %vm233, %v1640
  %1657 = vst.msk [vmem:[%s4 + $0x70] sm:$0xff] %vm233, %v1641
  %1658 = vst.msk [vmem:[%s4 + $0x78] sm:$0xff] %vm233, %v1642
  // Predicated region
  $region18: #{active_mnist_cnn_forward.3} parent=0 // pred_check
    _
  $region19: #{active_mnist_cnn_forward.3} parent=0 // pred_check_branch
    %1660 = sbr.rel (0) target = $region21
  $region20: #{active_mnist_cnn_forward.3} parent=0 // pred_region
    _
  $region21: #{active_mnist_cnn_forward.3} parent=0 // pred_fallthru
    _
  // Predicated region
  $region22: #{active_mnist_cnn_forward.3} parent=0 // pred_check
    _
  $region23: #{active_mnist_cnn_forward.3} parent=0 // pred_check_branch
    %1662 = sbr.rel (0) target = $region25
  $region24: #{active_mnist_cnn_forward.3} parent=0 // pred_region
    _
  $region25: #{active_mnist_cnn_forward.3} parent=0 // pred_fallthru
    _

// kernel: active_mnist_cnn_forward.4
$region0: #{active_mnist_cnn_forward.4}
  #allocation0 [shape = 'u32[]', space=smem, size = 0x4, offset = 0x4, fixed_abs, tag = 'smem constant byte address 0x4 - core index']
  #allocation1 [shape = 'u32[144,128]{1,0:T(1,128)}', space=vmem, size = 0x12000, scoped, tag = 'internal scratch']
  #allocation2 [shape = 'f32[4,32,64]{2,1,0:T(8,128)}', space=vmem, size = 0x10000, scoped, tag = 'scratch operand']
  %s0 = inlined_call_operand.vmem [shape: f32[4,32,288], index: 0, kind: input, shape index: {}]
  %s1 = inlined_call_operand.vmem [shape: f32[288,64], index: 1, kind: input, shape index: {}]
  %s2 = inlined_call_operand.vmem [shape: f32[1,64], index: 2, kind: input, shape index: {}]
  %s3 = inlined_call_operand.vmem [shape: f32[1,64], index: 3, kind: input, shape index: {}]
  %s4 = inlined_call_operand.vmem [shape: f32[32,64], index: 4, kind: output, shape index: {}]
  %s5 = sld [smem:[#allocation0]]
  $region26: #{active_mnist_cnn_forward.4} parent=0
    _
  %s7 = ssub.s32 1, %s5
  %s8 = scalar_select 0, %s7, %s5
  // Predicated region
  $region2: #{active_mnist_cnn_forward.4} parent=0 // pred_check
    _
  $region3: #{active_mnist_cnn_forward.4} parent=0 // pred_check_branch
    %10 = sbr.rel (0) target = $region5
  $region4: #{active_mnist_cnn_forward.4} parent=0 // pred_region
    _
  $region5: #{active_mnist_cnn_forward.4} parent=0 // pred_fallthru
    _
  // Predicated region
  $region6: #{active_mnist_cnn_forward.4} parent=0 // pred_check
    _
  $region7: #{active_mnist_cnn_forward.4} parent=0 // pred_check_branch
    %12 = sbr.rel (0) target = $region9
  $region8: #{active_mnist_cnn_forward.4} parent=0 // pred_region
    _
  $region9: #{active_mnist_cnn_forward.4} parent=0 // pred_fallthru
    _
  // Predicated region
  $region10: #{active_mnist_cnn_forward.4} parent=0 // pred_check
    _
  $region11: #{active_mnist_cnn_forward.4} parent=0 // pred_check_branch
    %14 = sbr.rel (0) target = $region13
  $region12: #{active_mnist_cnn_forward.4} parent=0 // pred_region
    _
  $region13: #{active_mnist_cnn_forward.4} parent=0 // pred_fallthru
    _
  // Predicated region
  $region14: #{active_mnist_cnn_forward.4} parent=0 // pred_check
    _
  $region15: #{active_mnist_cnn_forward.4} parent=0 // pred_check_branch
    %16 = sbr.rel (0) target = $region17
  $region16: #{active_mnist_cnn_forward.4} parent=0 // pred_region
    _
  $region17: #{active_mnist_cnn_forward.4} parent=0 // pred_fallthru
    _
  %v17 = vld [vmem:[%s0] sm:$0xff]
  %v18 = vld [vmem:[%s0 + $0x8] sm:$0xff]
  %v19 = vld [vmem:[%s0 + $0x10] sm:$0xff]
  %v20 = vld [vmem:[%s0 + $0x18] sm:$0xff]
  %v21 = vld [vmem:[%s0 + $0x20] sm:$0xff]
  %v22 = vld [vmem:[%s0 + $0x28] sm:$0xff]
  %v23 = vld [vmem:[%s0 + $0x30] sm:$0xff]
  %v24 = vld [vmem:[%s0 + $0x38] sm:$0xff]
  %v25 = vld [vmem:[%s0 + $0x40] sm:$0xff]
  %v26 = vld [vmem:[%s0 + $0x48] sm:$0xff]
  %v27 = vld [vmem:[%s0 + $0x50] sm:$0xff]
  %v28 = vld [vmem:[%s0 + $0x58] sm:$0xff]
  %v29 = vld [vmem:[%s1] sm:$0xff]
  %v30 = vld [vmem:[%s1 + $0x8] sm:$0xff]
  %v31 = vld [vmem:[%s1 + $0x10] sm:$0xff]
  %v32 = vld [vmem:[%s1 + $0x18] sm:$0xff]
  %v33 = vld [vmem:[%s1 + $0x20] sm:$0xff]
  %v34 = vld [vmem:[%s1 + $0x28] sm:$0xff]
  %v35 = vld [vmem:[%s1 + $0x30] sm:$0xff]
  %v36 = vld [vmem:[%s1 + $0x38] sm:$0xff]
  %v37 = vld [vmem:[%s1 + $0x40] sm:$0xff]
  %v38 = vld [vmem:[%s1 + $0x48] sm:$0xff]
  %v39 = vld [vmem:[%s1 + $0x50] sm:$0xff]
  %v40 = vld [vmem:[%s1 + $0x58] sm:$0xff]
  %v41 = vld [vmem:[%s1 + $0x60] sm:$0xff]
  %v42 = vld [vmem:[%s1 + $0x68] sm:$0xff]
  %v43 = vld [vmem:[%s1 + $0x70] sm:$0xff]
  %v44 = vld [vmem:[%s1 + $0x78] sm:$0xff]
  %v45 = vld [vmem:[%s1 + $0x80] sm:$0xff]
  %v46 = vld [vmem:[%s1 + $0x88] sm:$0xff]
  %v47 = vld [vmem:[%s1 + $0x90] sm:$0xff]
  %v48 = vld [vmem:[%s1 + $0x98] sm:$0xff]
  %v49 = vld [vmem:[%s1 + $0xa0] sm:$0xff]
  %v50 = vld [vmem:[%s1 + $0xa8] sm:$0xff]
  %v51 = vld [vmem:[%s1 + $0xb0] sm:$0xff]
  %v52 = vld [vmem:[%s1 + $0xb8] sm:$0xff]
  %v53 = vld [vmem:[%s1 + $0xc0] sm:$0xff]
  %v54 = vld [vmem:[%s1 + $0xc8] sm:$0xff]
  %v55 = vld [vmem:[%s1 + $0xd0] sm:$0xff]
  %v56 = vld [vmem:[%s1 + $0xd8] sm:$0xff]
  %v57 = vld [vmem:[%s1 + $0xe0] sm:$0xff]
  %v58 = vld [vmem:[%s1 + $0xe8] sm:$0xff]
  %v59 = vld [vmem:[%s1 + $0xf0] sm:$0xff]
  %v60 = vld [vmem:[%s1 + $0xf8] sm:$0xff]
  %v61 = vld [vmem:[%s1 + $0x100] sm:$0xff]
  %v62 = vld [vmem:[%s1 + $0x108] sm:$0xff]
  %v63 = vld [vmem:[%s1 + $0x110] sm:$0xff]
  %v64 = vld [vmem:[%s1 + $0x118] sm:$0xff]
  %vm65 = vcmask 261120
  %v67 = vsel %vm65, %v19, 0
  %v70 = vsel %vm65, %v22, 0
  %v73 = vsel %vm65, %v25, 0
  %v76 = vsel %vm65, %v28, 0
  %78 = vmatprep.subr.mxu0 0.0
  %79 = vmatpush1.msra.mxu0 %v29
  %80 = vmatprep.subr.mxu0 0.0
  %81 = vmatpush1.msra.mxu0 %v30
  %82 = vmatprep.subr.mxu0 0.0
  %83 = vmatpush1.msra.mxu0 %v31
  %84 = vmatprep.subr.mxu0 0.0
  %85 = vmatpush1.msra.mxu0 %v32
  %86 = vmatprep.subr.mxu0 0.0
  %87 = vmatpush1.msra.mxu0 %v33
  %88 = vmatprep.subr.mxu0 0.0
  %89 = vmatpush1.msra.mxu0 %v34
  %90 = vmatprep.subr.mxu0 0.0
  %91 = vmatpush1.msra.mxu0 %v35
  %92 = vmatprep.subr.mxu0 0.0
  %93 = vmatpush1.msra.mxu0 %v36
  %94 = vmatprep.subr.mxu0 0.0
  %95 = vmatpush1.msra.mxu0 %v37
  %96 = vmatprep.subr.mxu0 0.0
  %97 = vmatpush1.msra.mxu0 %v38
  %98 = vmatprep.subr.mxu0 0.0
  %99 = vmatpush1.msra.mxu0 %v39
  %100 = vmatprep.subr.mxu0 0.0
  %101 = vmatpush1.msra.mxu0 %v40
  %102 = vmatprep.subr.mxu0 0.0
  %103 = vmatpush1.msra.mxu0 %v41
  %104 = vmatprep.subr.mxu0 0.0
  %105 = vmatpush1.msra.mxu0 %v42
  %106 = vmatprep.subr.mxu0 0.0
  %107 = vmatpush1.msra.mxu0 %v43
  %108 = vmatprep.subr.mxu0 0.0
  %109 = vmatpush1.msra.mxu0 %v44
  %110 = vmatprep.subr.mxu0 0.0
  %111 = vmatpush1.msra.mxu0 %v45
  %112 = vmatprep.subr.mxu0 0.0
  %113 = vmatpush1.msra.mxu0 %v46
  %114 = vmatprep.subr.mxu0 0.0
  %115 = vmatpush1.msra.mxu0 %v47
  %116 = vmatprep.subr.mxu0 0.0
  %117 = vmatpush1.msra.mxu0 %v48
  %118 = vmatprep.subr.mxu0 0.0
  %119 = vmatpush1.msra.mxu0 %v49
  %120 = vmatprep.subr.mxu0 0.0
  %121 = vmatpush1.msra.mxu0 %v50
  %122 = vmatprep.subr.mxu0 0.0
  %123 = vmatpush1.msra.mxu0 %v51
  %124 = vmatprep.subr.mxu0 0.0
  %125 = vmatpush1.msra.mxu0 %v52
  %126 = vmatprep.subr.mxu0 0.0
  %127 = vmatpush1.msra.mxu0 %v53
  %128 = vmatprep.subr.mxu0 0.0
  %129 = vmatpush1.msra.mxu0 %v54
  %130 = vmatprep.subr.mxu0 0.0
  %131 = vmatpush1.msra.mxu0 %v55
  %132 = vmatprep.subr.mxu0 0.0
  %133 = vmatpush1.msra.mxu0 %v56
  %134 = vmatprep.subr.mxu0 0.0
  %135 = vmatpush1.msra.mxu0 %v57
  %136 = vmatprep.subr.mxu0 0.0
  %137 = vmatpush1.msra.mxu0 %v58
  %138 = vmatprep.subr.mxu0 0.0
  %139 = vmatpush1.msra.mxu0 %v59
  %140 = vmatprep.subr.mxu0 0.0
  %141 = vmatpush1.msra.mxu0 %v60
  %142 = vmatprep.mubr.f32.mxu0 %v18
  %143 = vmatmul.mubr.f32.gmra.mrb[0].mxu0 %v17
  %v144 = vpop.f32.mrb[0].mxu0
  %v145 = vadd.f32 0.0, %v144
  %v146 = vpop.f32.mrb[0].mxu0
  %147 = vmatprep.mubr.f32.mxu0 %v21
  %148 = vmatmul.mubr.f32.gmra.mrb[0].mxu0 %v20
  %v149 = vpop.f32.mrb[0].mxu0
  %v150 = vadd.f32 0.0, %v149
  %v151 = vpop.f32.mrb[0].mxu0
  %152 = vmatprep.mubr.f32.mxu0 %v24
  %153 = vmatmul.mubr.f32.gmra.mrb[0].mxu0 %v23
  %v154 = vpop.f32.mrb[0].mxu0
  %v155 = vadd.f32 0.0, %v154
  %v156 = vpop.f32.mrb[0].mxu0
  %157 = vmatprep.mubr.f32.mxu0 %v27
  %158 = vmatmul.mubr.f32.gmra.mrb[0].mxu0 %v26
  %v159 = vpop.f32.mrb[0].mxu0
  %v160 = vadd.f32 0.0, %v159
  %v161 = vpop.f32.mrb[0].mxu0
  %162 = vdwg.mxu0
  %163 = vmatprep.subr.mxu0 0.0
  %164 = vmatpush1.msra.mxu0 %v61
  %165 = vmatprep.subr.mxu0 0.0
  %166 = vmatpush1.msra.mxu0 %v62
  %167 = vmatprep.subr.mxu0 0.0
  %168 = vmatpush1.msra.mxu0 %v63
  %169 = vmatprep.subr.mxu0 0.0
  %170 = vmatpush1.msra.mxu0 %v64
  %171 = vmatprep.subr.mxu0 0.0
  %172 = vmatpush1.msra.mxu0 0.0
  %173 = vmatprep.subr.mxu0 0.0
  %174 = vmatpush1.msra.mxu0 0.0
  %175 = vmatprep.subr.mxu0 0.0
  %176 = vmatpush1.msra.mxu0 0.0
  %177 = vmatprep.subr.mxu0 0.0
  %178 = vmatpush1.msra.mxu0 0.0
  %179 = vmatprep.subr.mxu0 0.0
  %180 = vmatpush1.msra.mxu0 0.0
  %181 = vmatprep.subr.mxu0 0.0
  %182 = vmatpush1.msra.mxu0 0.0
  %183 = vmatprep.subr.mxu0 0.0
  %184 = vmatpush1.msra.mxu0 0.0
  %185 = vmatprep.subr.mxu0 0.0
  %186 = vmatpush1.msra.mxu0 0.0
  %187 = vmatprep.subr.mxu0 0.0
  %188 = vmatpush1.msra.mxu0 0.0
  %189 = vmatprep.subr.mxu0 0.0
  %190 = vmatpush1.msra.mxu0 0.0
  %191 = vmatprep.subr.mxu0 0.0
  %192 = vmatpush1.msra.mxu0 0.0
  %193 = vmatprep.subr.mxu0 0.0
  %194 = vmatpush1.msra.mxu0 0.0
  %195 = vmatprep.subr.mxu0 0.0
  %196 = vmatpush1.msra.mxu0 0.0
  %197 = vmatprep.subr.mxu0 0.0
  %198 = vmatpush1.msra.mxu0 0.0
  %199 = vmatprep.subr.mxu0 0.0
  %200 = vmatpush1.msra.mxu0 0.0
  %201 = vmatprep.subr.mxu0 0.0
  %202 = vmatpush1.msra.mxu0 0.0
  %203 = vmatprep.subr.mxu0 0.0
  %204 = vmatpush1.msra.mxu0 0.0
  %205 = vmatprep.subr.mxu0 0.0
  %206 = vmatpush1.msra.mxu0 0.0
  %207 = vmatprep.subr.mxu0 0.0
  %208 = vmatpush1.msra.mxu0 0.0
  %209 = vmatprep.subr.mxu0 0.0
  %210 = vmatpush1.msra.mxu0 0.0
  %211 = vmatprep.subr.mxu0 0.0
  %212 = vmatpush1.msra.mxu0 0.0
  %213 = vmatprep.subr.mxu0 0.0
  %214 = vmatpush1.msra.mxu0 0.0
  %215 = vmatprep.subr.mxu0 0.0
  %216 = vmatpush1.msra.mxu0 0.0
  %217 = vmatprep.subr.mxu0 0.0
  %218 = vmatpush1.msra.mxu0 0.0
  %219 = vmatprep.subr.mxu0 0.0
  %220 = vmatpush1.msra.mxu0 0.0
  %221 = vmatprep.subr.mxu0 0.0
  %222 = vmatpush1.msra.mxu0 0.0
  %223 = vmatprep.subr.mxu0 0.0
  %224 = vmatpush1.msra.mxu0 0.0
  %225 = vmatprep.subr.mxu0 0.0
  %226 = vmatpush1.msra.mxu0 0.0
  %227 = vmatprep.mubr.f32.mxu0 0.0
  %228 = vmatmul.mubr.f32.gmra.mrb[0].mxu0 %v67
  %v229 = vpop.f32.mrb[0].mxu0
  %v230 = vadd.f32 %v145, %v229
  %v231 = vpop.f32.mrb[0].mxu0
  %232 = vmatprep.mubr.f32.mxu0 0.0
  %233 = vmatmul.mubr.f32.gmra.mrb[0].mxu0 %v70
  %v234 = vpop.f32.mrb[0].mxu0
  %v235 = vadd.f32 %v150, %v234
  %v236 = vpop.f32.mrb[0].mxu0
  %237 = vmatprep.mubr.f32.mxu0 0.0
  %238 = vmatmul.mubr.f32.gmra.mrb[0].mxu0 %v73
  %v239 = vpop.f32.mrb[0].mxu0
  %v240 = vadd.f32 %v155, %v239
  %v241 = vpop.f32.mrb[0].mxu0
  %242 = vmatprep.mubr.f32.mxu0 0.0
  %243 = vmatmul.mubr.f32.gmra.mrb[0].mxu0 %v76
  %v244 = vpop.f32.mrb[0].mxu0
  %v245 = vadd.f32 %v160, %v244
  %v246 = vpop.f32.mrb[0].mxu0
  %247 = vdwg.mxu0
  %vm248 = vcmask 523264
  %249 = vst.msk [vmem:[#allocation2] sm:$0xff] %vm248, %v230
  %250 = vst.msk [vmem:[#allocation2 + $0x8] sm:$0xff] %vm248, %v235
  %251 = vst.msk [vmem:[#allocation2 + $0x10] sm:$0xff] %vm248, %v240
  %252 = vst.msk [vmem:[#allocation2 + $0x18] sm:$0xff] %vm248, %v245
  %v253 = vsel %vm248, %v230, 0.0
  %v254 = vsel %vm248, %v235, 0.0
  %v255 = vadd.f32 %v253, %v254
  %v256 = vsel %vm248, %v240, 0.0
  %v257 = vadd.f32 %v255, %v256
  %v258 = vsel %vm248, %v245, 0.0
  %v259 = vadd.f32 %v257, %v258
  %v260 = vrot.slane %v259, 4
  %v261 = vadd.f32 %v259, %v260
  %v262 = vrot.slane %v261, 2
  %v263 = vadd.f32 %v261, %v262
  %v264 = vrot.slane %v263, 1
  %v265 = vadd.f32 %v263, %v264
  %v266 = vadd.f32 %v265, 0.0
  %v267 = vmul.f32 %v230, %v230
  %v268 = vmul.f32 %v235, %v235
  %v269 = vmul.f32 %v240, %v240
  %v270 = vmul.f32 %v245, %v245
  %v271 = vsel %vm248, %v267, 0.0
  %v272 = vsel %vm248, %v268, 0.0
  %v273 = vadd.f32 %v271, %v272
  %v274 = vsel %vm248, %v269, 0.0
  %v275 = vadd.f32 %v273, %v274
  %v276 = vsel %vm248, %v270, 0.0
  %v277 = vadd.f32 %v275, %v276
  %v278 = vrot.slane %v277, 4
  %v279 = vadd.f32 %v277, %v278
  %v280 = vrot.slane %v279, 2
  %v281 = vadd.f32 %v279, %v280
  %v282 = vrot.slane %v281, 1
  %v283 = vadd.f32 %v281, %v282
  %v284 = vadd.f32 %v283, 0.0
  %s285 = scalar_lea.vmem %s0, 96
  %v286 = vld [vmem:[%s285] sm:$0xff]
  %v287 = vld [vmem:[%s285 + $0x8] sm:$0xff]
  %v288 = vld [vmem:[%s285 + $0x10] sm:$0xff]
  %v289 = vld [vmem:[%s285 + $0x18] sm:$0xff]
  %v290 = vld [vmem:[%s285 + $0x20] sm:$0xff]
  %v291 = vld [vmem:[%s285 + $0x28] sm:$0xff]
  %v292 = vld [vmem:[%s285 + $0x30] sm:$0xff]
  %v293 = vld [vmem:[%s285 + $0x38] sm:$0xff]
  %v294 = vld [vmem:[%s285 + $0x40] sm:$0xff]
  %v295 = vld [vmem:[%s285 + $0x48] sm:$0xff]
  %v296 = vld [vmem:[%s285 + $0x50] sm:$0xff]
  %v297 = vld [vmem:[%s285 + $0x58] sm:$0xff]
  %v298 = vld [vmem:[%s1] sm:$0xff]
  %v299 = vld [vmem:[%s1 + $0x8] sm:$0xff]
  %v300 = vld [vmem:[%s1 + $0x10] sm:$0xff]
  %v301 = vld [vmem:[%s1 + $0x18] sm:$0xff]
  %v302 = vld [vmem:[%s1 + $0x20] sm:$0xff]
  %v303 = vld [vmem:[%s1 + $0x28] sm:$0xff]
  %v304 = vld [vmem:[%s1 + $0x30] sm:$0xff]
  %v305 = vld [vmem:[%s1 + $0x38] sm:$0xff]
  %v306 = vld [vmem:[%s1 + $0x40] sm:$0xff]
  %v307 = vld [vmem:[%s1 + $0x48] sm:$0xff]
  %v308 = vld [vmem:[%s1 + $0x50] sm:$0xff]
  %v309 = vld [vmem:[%s1 + $0x58] sm:$0xff]
  %v310 = vld [vmem:[%s1 + $0x60] sm:$0xff]
  %v311 = vld [vmem:[%s1 + $0x68] sm:$0xff]
  %v312 = vld [vmem:[%s1 + $0x70] sm:$0xff]
  %v313 = vld [vmem:[%s1 + $0x78] sm:$0xff]
  %v314 = vld [vmem:[%s1 + $0x80] sm:$0xff]
  %v315 = vld [vmem:[%s1 + $0x88] sm:$0xff]
  %v316 = vld [vmem:[%s1 + $0x90] sm:$0xff]
  %v317 = vld [vmem:[%s1 + $0x98] sm:$0xff]
  %v318 = vld [vmem:[%s1 + $0xa0] sm:$0xff]
  %v319 = vld [vmem:[%s1 + $0xa8] sm:$0xff]
  %v320 = vld [vmem:[%s1 + $0xb0] sm:$0xff]
  %v321 = vld [vmem:[%s1 + $0xb8] sm:$0xff]
  %v322 = vld [vmem:[%s1 + $0xc0] sm:$0xff]
  %v323 = vld [vmem:[%s1 + $0xc8] sm:$0xff]
  %v324 = vld [vmem:[%s1 + $0xd0] sm:$0xff]
  %v325 = vld [vmem:[%s1 + $0xd8] sm:$0xff]
  %v326 = vld [vmem:[%s1 + $0xe0] sm:$0xff]
  %v327 = vld [vmem:[%s1 + $0xe8] sm:$0xff]
  %v328 = vld [vmem:[%s1 + $0xf0] sm:$0xff]
  %v329 = vld [vmem:[%s1 + $0xf8] sm:$0xff]
  %v330 = vld [vmem:[%s1 + $0x100] sm:$0xff]
  %v331 = vld [vmem:[%s1 + $0x108] sm:$0xff]
  %v332 = vld [vmem:[%s1 + $0x110] sm:$0xff]
  %v333 = vld [vmem:[%s1 + $0x118] sm:$0xff]
  %v335 = vsel %vm65, %v288, 0
  %v338 = vsel %vm65, %v291, 0
  %v341 = vsel %vm65, %v294, 0
  %v344 = vsel %vm65, %v297, 0
  %346 = vmatprep.subr.mxu0 0.0
  %347 = vmatpush1.msra.mxu0 %v298
  %348 = vmatprep.subr.mxu0 0.0
  %349 = vmatpush1.msra.mxu0 %v299
  %350 = vmatprep.subr.mxu0 0.0
  %351 = vmatpush1.msra.mxu0 %v300
  %352 = vmatprep.subr.mxu0 0.0
  %353 = vmatpush1.msra.mxu0 %v301
  %354 = vmatprep.subr.mxu0 0.0
  %355 = vmatpush1.msra.mxu0 %v302
  %356 = vmatprep.subr.mxu0 0.0
  %357 = vmatpush1.msra.mxu0 %v303
  %358 = vmatprep.subr.mxu0 0.0
  %359 = vmatpush1.msra.mxu0 %v304
  %360 = vmatprep.subr.mxu0 0.0
  %361 = vmatpush1.msra.mxu0 %v305
  %362 = vmatprep.subr.mxu0 0.0
  %363 = vmatpush1.msra.mxu0 %v306
  %364 = vmatprep.subr.mxu0 0.0
  %365 = vmatpush1.msra.mxu0 %v307
  %366 = vmatprep.subr.mxu0 0.0
  %367 = vmatpush1.msra.mxu0 %v308
  %368 = vmatprep.subr.mxu0 0.0
  %369 = vmatpush1.msra.mxu0 %v309
  %370 = vmatprep.subr.mxu0 0.0
  %371 = vmatpush1.msra.mxu0 %v310
  %372 = vmatprep.subr.mxu0 0.0
  %373 = vmatpush1.msra.mxu0 %v311
  %374 = vmatprep.subr.mxu0 0.0
  %375 = vmatpush1.msra.mxu0 %v312
  %376 = vmatprep.subr.mxu0 0.0
  %377 = vmatpush1.msra.mxu0 %v313
  %378 = vmatprep.subr.mxu0 0.0
  %379 = vmatpush1.msra.mxu0 %v314
  %380 = vmatprep.subr.mxu0 0.0
  %381 = vmatpush1.msra.mxu0 %v315
  %382 = vmatprep.subr.mxu0 0.0
  %383 = vmatpush1.msra.mxu0 %v316
  %384 = vmatprep.subr.mxu0 0.0
  %385 = vmatpush1.msra.mxu0 %v317
  %386 = vmatprep.subr.mxu0 0.0
  %387 = vmatpush1.msra.mxu0 %v318
  %388 = vmatprep.subr.mxu0 0.0
  %389 = vmatpush1.msra.mxu0 %v319
  %390 = vmatprep.subr.mxu0 0.0
  %391 = vmatpush1.msra.mxu0 %v320
  %392 = vmatprep.subr.mxu0 0.0
  %393 = vmatpush1.msra.mxu0 %v321
  %394 = vmatprep.subr.mxu0 0.0
  %395 = vmatpush1.msra.mxu0 %v322
  %396 = vmatprep.subr.mxu0 0.0
  %397 = vmatpush1.msra.mxu0 %v323
  %398 = vmatprep.subr.mxu0 0.0
  %399 = vmatpush1.msra.mxu0 %v324
  %400 = vmatprep.subr.mxu0 0.0
  %401 = vmatpush1.msra.mxu0 %v325
  %402 = vmatprep.subr.mxu0 0.0
  %403 = vmatpush1.msra.mxu0 %v326
  %404 = vmatprep.subr.mxu0 0.0
  %405 = vmatpush1.msra.mxu0 %v327
  %406 = vmatprep.subr.mxu0 0.0
  %407 = vmatpush1.msra.mxu0 %v328
  %408 = vmatprep.subr.mxu0 0.0
  %409 = vmatpush1.msra.mxu0 %v329
  %410 = vmatprep.mubr.f32.mxu0 %v287
  %411 = vmatmul.mubr.f32.gmra.mrb[0].mxu0 %v286
  %v412 = vpop.f32.mrb[0].mxu0
  %v413 = vadd.f32 0.0, %v412
  %v414 = vpop.f32.mrb[0].mxu0
  %415 = vmatprep.mubr.f32.mxu0 %v290
  %416 = vmatmul.mubr.f32.gmra.mrb[0].mxu0 %v289
  %v417 = vpop.f32.mrb[0].mxu0
  %v418 = vadd.f32 0.0, %v417
  %v419 = vpop.f32.mrb[0].mxu0
  %420 = vmatprep.mubr.f32.mxu0 %v293
  %421 = vmatmul.mubr.f32.gmra.mrb[0].mxu0 %v292
  %v422 = vpop.f32.mrb[0].mxu0
  %v423 = vadd.f32 0.0, %v422
  %v424 = vpop.f32.mrb[0].mxu0
  %425 = vmatprep.mubr.f32.mxu0 %v296
  %426 = vmatmul.mubr.f32.gmra.mrb[0].mxu0 %v295
  %v427 = vpop.f32.mrb[0].mxu0
  %v428 = vadd.f32 0.0, %v427
  %v429 = vpop.f32.mrb[0].mxu0
  %430 = vdwg.mxu0
  %431 = vmatprep.subr.mxu0 0.0
  %432 = vmatpush1.msra.mxu0 %v330
  %433 = vmatprep.subr.mxu0 0.0
  %434 = vmatpush1.msra.mxu0 %v331
  %435 = vmatprep.subr.mxu0 0.0
  %436 = vmatpush1.msra.mxu0 %v332
  %437 = vmatprep.subr.mxu0 0.0
  %438 = vmatpush1.msra.mxu0 %v333
  %439 = vmatprep.subr.mxu0 0.0
  %440 = vmatpush1.msra.mxu0 0.0
  %441 = vmatprep.subr.mxu0 0.0
  %442 = vmatpush1.msra.mxu0 0.0
  %443 = vmatprep.subr.mxu0 0.0
  %444 = vmatpush1.msra.mxu0 0.0
  %445 = vmatprep.subr.mxu0 0.0
  %446 = vmatpush1.msra.mxu0 0.0
  %447 = vmatprep.subr.mxu0 0.0
  %448 = vmatpush1.msra.mxu0 0.0
  %449 = vmatprep.subr.mxu0 0.0
  %450 = vmatpush1.msra.mxu0 0.0
  %451 = vmatprep.subr.mxu0 0.0
  %452 = vmatpush1.msra.mxu0 0.0
  %453 = vmatprep.subr.mxu0 0.0
  %454 = vmatpush1.msra.mxu0 0.0
  %455 = vmatprep.subr.mxu0 0.0
  %456 = vmatpush1.msra.mxu0 0.0
  %457 = vmatprep.subr.mxu0 0.0
  %458 = vmatpush1.msra.mxu0 0.0
  %459 = vmatprep.subr.mxu0 0.0
  %460 = vmatpush1.msra.mxu0 0.0
  %461 = vmatprep.subr.mxu0 0.0
  %462 = vmatpush1.msra.mxu0 0.0
  %463 = vmatprep.subr.mxu0 0.0
  %464 = vmatpush1.msra.mxu0 0.0
  %465 = vmatprep.subr.mxu0 0.0
  %466 = vmatpush1.msra.mxu0 0.0
  %467 = vmatprep.subr.mxu0 0.0
  %468 = vmatpush1.msra.mxu0 0.0
  %469 = vmatprep.subr.mxu0 0.0
  %470 = vmatpush1.msra.mxu0 0.0
  %471 = vmatprep.subr.mxu0 0.0
  %472 = vmatpush1.msra.mxu0 0.0
  %473 = vmatprep.subr.mxu0 0.0
  %474 = vmatpush1.msra.mxu0 0.0
  %475 = vmatprep.subr.mxu0 0.0
  %476 = vmatpush1.msra.mxu0 0.0
  %477 = vmatprep.subr.mxu0 0.0
  %478 = vmatpush1.msra.mxu0 0.0
  %479 = vmatprep.subr.mxu0 0.0
  %480 = vmatpush1.msra.mxu0 0.0
  %481 = vmatprep.subr.mxu0 0.0
  %482 = vmatpush1.msra.mxu0 0.0
  %483 = vmatprep.subr.mxu0 0.0
  %484 = vmatpush1.msra.mxu0 0.0
  %485 = vmatprep.subr.mxu0 0.0
  %486 = vmatpush1.msra.mxu0 0.0
  %487 = vmatprep.subr.mxu0 0.0
  %488 = vmatpush1.msra.mxu0 0.0
  %489 = vmatprep.subr.mxu0 0.0
  %490 = vmatpush1.msra.mxu0 0.0
  %491 = vmatprep.subr.mxu0 0.0
  %492 = vmatpush1.msra.mxu0 0.0
  %493 = vmatprep.subr.mxu0 0.0
  %494 = vmatpush1.msra.mxu0 0.0
  %495 = vmatprep.mubr.f32.mxu0 0.0
  %496 = vmatmul.mubr.f32.gmra.mrb[0].mxu0 %v335
  %v497 = vpop.f32.mrb[0].mxu0
  %v498 = vadd.f32 %v413, %v497
  %v499 = vpop.f32.mrb[0].mxu0
  %500 = vmatprep.mubr.f32.mxu0 0.0
  %501 = vmatmul.mubr.f32.gmra.mrb[0].mxu0 %v338
  %v502 = vpop.f32.mrb[0].mxu0
  %v503 = vadd.f32 %v418, %v502
  %v504 = vpop.f32.mrb[0].mxu0
  %505 = vmatprep.mubr.f32.mxu0 0.0
  %506 = vmatmul.mubr.f32.gmra.mrb[0].mxu0 %v341
  %v507 = vpop.f32.mrb[0].mxu0
  %v508 = vadd.f32 %v423, %v507
  %v509 = vpop.f32.mrb[0].mxu0
  %510 = vmatprep.mubr.f32.mxu0 0.0
  %511 = vmatmul.mubr.f32.gmra.mrb[0].mxu0 %v344
  %v512 = vpop.f32.mrb[0].mxu0
  %v513 = vadd.f32 %v428, %v512
  %v514 = vpop.f32.mrb[0].mxu0
  %515 = vdwg.mxu0
  %s516 = scalar_lea.vmem [#allocation2], 32
  %517 = vst.msk [vmem:[%s516] sm:$0xff] %vm248, %v498
  %518 = vst.msk [vmem:[%s516 + $0x8] sm:$0xff] %vm248, %v503
  %519 = vst.msk [vmem:[%s516 + $0x10] sm:$0xff] %vm248, %v508
  %520 = vst.msk [vmem:[%s516 + $0x18] sm:$0xff] %vm248, %v513
  %v521 = vsel %vm248, %v498, 0.0
  %v522 = vsel %vm248, %v503, 0.0
  %v523 = vadd.f32 %v521, %v522
  %v524 = vsel %vm248, %v508, 0.0
  %v525 = vadd.f32 %v523, %v524
  %v526 = vsel %vm248, %v513, 0.0
  %v527 = vadd.f32 %v525, %v526
  %v528 = vrot.slane %v527, 4
  %v529 = vadd.f32 %v527, %v528
  %v530 = vrot.slane %v529, 2
  %v531 = vadd.f32 %v529, %v530
  %v532 = vrot.slane %v531, 1
  %v533 = vadd.f32 %v531, %v532
  %v534 = vadd.f32 %v266, %v533
  %v535 = vmul.f32 %v498, %v498
  %v536 = vmul.f32 %v503, %v503
  %v537 = vmul.f32 %v508, %v508
  %v538 = vmul.f32 %v513, %v513
  %v539 = vsel %vm248, %v535, 0.0
  %v540 = vsel %vm248, %v536, 0.0
  %v541 = vadd.f32 %v539, %v540
  %v542 = vsel %vm248, %v537, 0.0
  %v543 = vadd.f32 %v541, %v542
  %v544 = vsel %vm248, %v538, 0.0
  %v545 = vadd.f32 %v543, %v544
  %v546 = vrot.slane %v545, 4
  %v547 = vadd.f32 %v545, %v546
  %v548 = vrot.slane %v547, 2
  %v549 = vadd.f32 %v547, %v548
  %v550 = vrot.slane %v549, 1
  %v551 = vadd.f32 %v549, %v550
  %v552 = vadd.f32 %v284, %v551
  %s553 = scalar_lea.vmem %s0, 192
  %v554 = vld [vmem:[%s553] sm:$0xff]
  %v555 = vld [vmem:[%s553 + $0x8] sm:$0xff]
  %v556 = vld [vmem:[%s553 + $0x10] sm:$0xff]
  %v557 = vld [vmem:[%s553 + $0x18] sm:$0xff]
  %v558 = vld [vmem:[%s553 + $0x20] sm:$0xff]
  %v559 = vld [vmem:[%s553 + $0x28] sm:$0xff]
  %v560 = vld [vmem:[%s553 + $0x30] sm:$0xff]
  %v561 = vld [vmem:[%s553 + $0x38] sm:$0xff]
  %v562 = vld [vmem:[%s553 + $0x40] sm:$0xff]
  %v563 = vld [vmem:[%s553 + $0x48] sm:$0xff]
  %v564 = vld [vmem:[%s553 + $0x50] sm:$0xff]
  %v565 = vld [vmem:[%s553 + $0x58] sm:$0xff]
  %v566 = vld [vmem:[%s1] sm:$0xff]
  %v567 = vld [vmem:[%s1 + $0x8] sm:$0xff]
  %v568 = vld [vmem:[%s1 + $0x10] sm:$0xff]
  %v569 = vld [vmem:[%s1 + $0x18] sm:$0xff]
  %v570 = vld [vmem:[%s1 + $0x20] sm:$0xff]
  %v571 = vld [vmem:[%s1 + $0x28] sm:$0xff]
  %v572 = vld [vmem:[%s1 + $0x30] sm:$0xff]
  %v573 = vld [vmem:[%s1 + $0x38] sm:$0xff]
  %v574 = vld [vmem:[%s1 + $0x40] sm:$0xff]
  %v575 = vld [vmem:[%s1 + $0x48] sm:$0xff]
  %v576 = vld [vmem:[%s1 + $0x50] sm:$0xff]
  %v577 = vld [vmem:[%s1 + $0x58] sm:$0xff]
  %v578 = vld [vmem:[%s1 + $0x60] sm:$0xff]
  %v579 = vld [vmem:[%s1 + $0x68] sm:$0xff]
  %v580 = vld [vmem:[%s1 + $0x70] sm:$0xff]
  %v581 = vld [vmem:[%s1 + $0x78] sm:$0xff]
  %v582 = vld [vmem:[%s1 + $0x80] sm:$0xff]
  %v583 = vld [vmem:[%s1 + $0x88] sm:$0xff]
  %v584 = vld [vmem:[%s1 + $0x90] sm:$0xff]
  %v585 = vld [vmem:[%s1 + $0x98] sm:$0xff]
  %v586 = vld [vmem:[%s1 + $0xa0] sm:$0xff]
  %v587 = vld [vmem:[%s1 + $0xa8] sm:$0xff]
  %v588 = vld [vmem:[%s1 + $0xb0] sm:$0xff]
  %v589 = vld [vmem:[%s1 + $0xb8] sm:$0xff]
  %v590 = vld [vmem:[%s1 + $0xc0] sm:$0xff]
  %v591 = vld [vmem:[%s1 + $0xc8] sm:$0xff]
  %v592 = vld [vmem:[%s1 + $0xd0] sm:$0xff]
  %v593 = vld [vmem:[%s1 + $0xd8] sm:$0xff]
  %v594 = vld [vmem:[%s1 + $0xe0] sm:$0xff]
  %v595 = vld [vmem:[%s1 + $0xe8] sm:$0xff]
  %v596 = vld [vmem:[%s1 + $0xf0] sm:$0xff]
  %v597 = vld [vmem:[%s1 + $0xf8] sm:$0xff]
  %v598 = vld [vmem:[%s1 + $0x100] sm:$0xff]
  %v599 = vld [vmem:[%s1 + $0x108] sm:$0xff]
  %v600 = vld [vmem:[%s1 + $0x110] sm:$0xff]
  %v601 = vld [vmem:[%s1 + $0x118] sm:$0xff]
  %v603 = vsel %vm65, %v556, 0
  %v606 = vsel %vm65, %v559, 0
  %v609 = vsel %vm65, %v562, 0
  %v612 = vsel %vm65, %v565, 0
  %614 = vmatprep.subr.mxu0 0.0
  %615 = vmatpush1.msra.mxu0 %v566
  %616 = vmatprep.subr.mxu0 0.0
  %617 = vmatpush1.msra.mxu0 %v567
  %618 = vmatprep.subr.mxu0 0.0
  %619 = vmatpush1.msra.mxu0 %v568
  %620 = vmatprep.subr.mxu0 0.0
  %621 = vmatpush1.msra.mxu0 %v569
  %622 = vmatprep.subr.mxu0 0.0
  %623 = vmatpush1.msra.mxu0 %v570
  %624 = vmatprep.subr.mxu0 0.0
  %625 = vmatpush1.msra.mxu0 %v571
  %626 = vmatprep.subr.mxu0 0.0
  %627 = vmatpush1.msra.mxu0 %v572
  %628 = vmatprep.subr.mxu0 0.0
  %629 = vmatpush1.msra.mxu0 %v573
  %630 = vmatprep.subr.mxu0 0.0
  %631 = vmatpush1.msra.mxu0 %v574
  %632 = vmatprep.subr.mxu0 0.0
  %633 = vmatpush1.msra.mxu0 %v575
  %634 = vmatprep.subr.mxu0 0.0
  %635 = vmatpush1.msra.mxu0 %v576
  %636 = vmatprep.subr.mxu0 0.0
  %637 = vmatpush1.msra.mxu0 %v577
  %638 = vmatprep.subr.mxu0 0.0
  %639 = vmatpush1.msra.mxu0 %v578
  %640 = vmatprep.subr.mxu0 0.0
  %641 = vmatpush1.msra.mxu0 %v579
  %642 = vmatprep.subr.mxu0 0.0
  %643 = vmatpush1.msra.mxu0 %v580
  %644 = vmatprep.subr.mxu0 0.0
  %645 = vmatpush1.msra.mxu0 %v581
  %646 = vmatprep.subr.mxu0 0.0
  %647 = vmatpush1.msra.mxu0 %v582
  %648 = vmatprep.subr.mxu0 0.0
  %649 = vmatpush1.msra.mxu0 %v583
  %650 = vmatprep.subr.mxu0 0.0
  %651 = vmatpush1.msra.mxu0 %v584
  %652 = vmatprep.subr.mxu0 0.0
  %653 = vmatpush1.msra.mxu0 %v585
  %654 = vmatprep.subr.mxu0 0.0
  %655 = vmatpush1.msra.mxu0 %v586
  %656 = vmatprep.subr.mxu0 0.0
  %657 = vmatpush1.msra.mxu0 %v587
  %658 = vmatprep.subr.mxu0 0.0
  %659 = vmatpush1.msra.mxu0 %v588
  %660 = vmatprep.subr.mxu0 0.0
  %661 = vmatpush1.msra.mxu0 %v589
  %662 = vmatprep.subr.mxu0 0.0
  %663 = vmatpush1.msra.mxu0 %v590
  %664 = vmatprep.subr.mxu0 0.0
  %665 = vmatpush1.msra.mxu0 %v591
  %666 = vmatprep.subr.mxu0 0.0
  %667 = vmatpush1.msra.mxu0 %v592
  %668 = vmatprep.subr.mxu0 0.0
  %669 = vmatpush1.msra.mxu0 %v593
  %670 = vmatprep.subr.mxu0 0.0
  %671 = vmatpush1.msra.mxu0 %v594
  %672 = vmatprep.subr.mxu0 0.0
  %673 = vmatpush1.msra.mxu0 %v595
  %674 = vmatprep.subr.mxu0 0.0
  %675 = vmatpush1.msra.mxu0 %v596
  %676 = vmatprep.subr.mxu0 0.0
  %677 = vmatpush1.msra.mxu0 %v597
  %678 = vmatprep.mubr.f32.mxu0 %v555
  %679 = vmatmul.mubr.f32.gmra.mrb[0].mxu0 %v554
  %v680 = vpop.f32.mrb[0].mxu0
  %v681 = vadd.f32 0.0, %v680
  %v682 = vpop.f32.mrb[0].mxu0
  %683 = vmatprep.mubr.f32.mxu0 %v558
  %684 = vmatmul.mubr.f32.gmra.mrb[0].mxu0 %v557
  %v685 = vpop.f32.mrb[0].mxu0
  %v686 = vadd.f32 0.0, %v685
  %v687 = vpop.f32.mrb[0].mxu0
  %688 = vmatprep.mubr.f32.mxu0 %v561
  %689 = vmatmul.mubr.f32.gmra.mrb[0].mxu0 %v560
  %v690 = vpop.f32.mrb[0].mxu0
  %v691 = vadd.f32 0.0, %v690
  %v692 = vpop.f32.mrb[0].mxu0
  %693 = vmatprep.mubr.f32.mxu0 %v564
  %694 = vmatmul.mubr.f32.gmra.mrb[0].mxu0 %v563
  %v695 = vpop.f32.mrb[0].mxu0
  %v696 = vadd.f32 0.0, %v695
  %v697 = vpop.f32.mrb[0].mxu0
  %698 = vdwg.mxu0
  %699 = vmatprep.subr.mxu0 0.0
  %700 = vmatpush1.msra.mxu0 %v598
  %701 = vmatprep.subr.mxu0 0.0
  %702 = vmatpush1.msra.mxu0 %v599
  %703 = vmatprep.subr.mxu0 0.0
  %704 = vmatpush1.msra.mxu0 %v600
  %705 = vmatprep.subr.mxu0 0.0
  %706 = vmatpush1.msra.mxu0 %v601
  %707 = vmatprep.subr.mxu0 0.0
  %708 = vmatpush1.msra.mxu0 0.0
  %709 = vmatprep.subr.mxu0 0.0
  %710 = vmatpush1.msra.mxu0 0.0
  %711 = vmatprep.subr.mxu0 0.0
  %712 = vmatpush1.msra.mxu0 0.0
  %713 = vmatprep.subr.mxu0 0.0
  %714 = vmatpush1.msra.mxu0 0.0
  %715 = vmatprep.subr.mxu0 0.0
  %716 = vmatpush1.msra.mxu0 0.0
  %717 = vmatprep.subr.mxu0 0.0
  %718 = vmatpush1.msra.mxu0 0.0
  %719 = vmatprep.subr.mxu0 0.0
  %720 = vmatpush1.msra.mxu0 0.0
  %721 = vmatprep.subr.mxu0 0.0
  %722 = vmatpush1.msra.mxu0 0.0
  %723 = vmatprep.subr.mxu0 0.0
  %724 = vmatpush1.msra.mxu0 0.0
  %725 = vmatprep.subr.mxu0 0.0
  %726 = vmatpush1.msra.mxu0 0.0
  %727 = vmatprep.subr.mxu0 0.0
  %728 = vmatpush1.msra.mxu0 0.0
  %729 = vmatprep.subr.mxu0 0.0
  %730 = vmatpush1.msra.mxu0 0.0
  %731 = vmatprep.subr.mxu0 0.0
  %732 = vmatpush1.msra.mxu0 0.0
  %733 = vmatprep.subr.mxu0 0.0
  %734 = vmatpush1.msra.mxu0 0.0
  %735 = vmatprep.subr.mxu0 0.0
  %736 = vmatpush1.msra.mxu0 0.0
  %737 = vmatprep.subr.mxu0 0.0
  %738 = vmatpush1.msra.mxu0 0.0
  %739 = vmatprep.subr.mxu0 0.0
  %740 = vmatpush1.msra.mxu0 0.0
  %741 = vmatprep.subr.mxu0 0.0
  %742 = vmatpush1.msra.mxu0 0.0
  %743 = vmatprep.subr.mxu0 0.0
  %744 = vmatpush1.msra.mxu0 0.0
  %745 = vmatprep.subr.mxu0 0.0
  %746 = vmatpush1.msra.mxu0 0.0
  %747 = vmatprep.subr.mxu0 0.0
  %748 = vmatpush1.msra.mxu0 0.0
  %749 = vmatprep.subr.mxu0 0.0
  %750 = vmatpush1.msra.mxu0 0.0
  %751 = vmatprep.subr.mxu0 0.0
  %752 = vmatpush1.msra.mxu0 0.0
  %753 = vmatprep.subr.mxu0 0.0
  %754 = vmatpush1.msra.mxu0 0.0
  %755 = vmatprep.subr.mxu0 0.0
  %756 = vmatpush1.msra.mxu0 0.0
  %757 = vmatprep.subr.mxu0 0.0
  %758 = vmatpush1.msra.mxu0 0.0
  %759 = vmatprep.subr.mxu0 0.0
  %760 = vmatpush1.msra.mxu0 0.0
  %761 = vmatprep.subr.mxu0 0.0
  %762 = vmatpush1.msra.mxu0 0.0
  %763 = vmatprep.mubr.f32.mxu0 0.0
  %764 = vmatmul.mubr.f32.gmra.mrb[0].mxu0 %v603
  %v765 = vpop.f32.mrb[0].mxu0
  %v766 = vadd.f32 %v681, %v765
  %v767 = vpop.f32.mrb[0].mxu0
  %768 = vmatprep.mubr.f32.mxu0 0.0
  %769 = vmatmul.mubr.f32.gmra.mrb[0].mxu0 %v606
  %v770 = vpop.f32.mrb[0].mxu0
  %v771 = vadd.f32 %v686, %v770
  %v772 = vpop.f32.mrb[0].mxu0
  %773 = vmatprep.mubr.f32.mxu0 0.0
  %774 = vmatmul.mubr.f32.gmra.mrb[0].mxu0 %v609
  %v775 = vpop.f32.mrb[0].mxu0
  %v776 = vadd.f32 %v691, %v775
  %v777 = vpop.f32.mrb[0].mxu0
  %778 = vmatprep.mubr.f32.mxu0 0.0
  %779 = vmatmul.mubr.f32.gmra.mrb[0].mxu0 %v612
  %v780 = vpop.f32.mrb[0].mxu0
  %v781 = vadd.f32 %v696, %v780
  %v782 = vpop.f32.mrb[0].mxu0
  %783 = vdwg.mxu0
  %s784 = scalar_lea.vmem [#allocation2], 64
  %785 = vst.msk [vmem:[%s784] sm:$0xff] %vm248, %v766
  %786 = vst.msk [vmem:[%s784 + $0x8] sm:$0xff] %vm248, %v771
  %787 = vst.msk [vmem:[%s784 + $0x10] sm:$0xff] %vm248, %v776
  %788 = vst.msk [vmem:[%s784 + $0x18] sm:$0xff] %vm248, %v781
  %v789 = vsel %vm248, %v766, 0.0
  %v790 = vsel %vm248, %v771, 0.0
  %v791 = vadd.f32 %v789, %v790
  %v792 = vsel %vm248, %v776, 0.0
  %v793 = vadd.f32 %v791, %v792
  %v794 = vsel %vm248, %v781, 0.0
  %v795 = vadd.f32 %v793, %v794
  %v796 = vrot.slane %v795, 4
  %v797 = vadd.f32 %v795, %v796
  %v798 = vrot.slane %v797, 2
  %v799 = vadd.f32 %v797, %v798
  %v800 = vrot.slane %v799, 1
  %v801 = vadd.f32 %v799, %v800
  %v802 = vadd.f32 %v534, %v801
  %v803 = vmul.f32 %v766, %v766
  %v804 = vmul.f32 %v771, %v771
  %v805 = vmul.f32 %v776, %v776
  %v806 = vmul.f32 %v781, %v781
  %v807 = vsel %vm248, %v803, 0.0
  %v808 = vsel %vm248, %v804, 0.0
  %v809 = vadd.f32 %v807, %v808
  %v810 = vsel %vm248, %v805, 0.0
  %v811 = vadd.f32 %v809, %v810
  %v812 = vsel %vm248, %v806, 0.0
  %v813 = vadd.f32 %v811, %v812
  %v814 = vrot.slane %v813, 4
  %v815 = vadd.f32 %v813, %v814
  %v816 = vrot.slane %v815, 2
  %v817 = vadd.f32 %v815, %v816
  %v818 = vrot.slane %v817, 1
  %v819 = vadd.f32 %v817, %v818
  %v820 = vadd.f32 %v552, %v819
  %s821 = scalar_lea.vmem %s0, 288
  %v822 = vld [vmem:[%s821] sm:$0xff]
  %v823 = vld [vmem:[%s821 + $0x8] sm:$0xff]
  %v824 = vld [vmem:[%s821 + $0x10] sm:$0xff]
  %v825 = vld [vmem:[%s821 + $0x18] sm:$0xff]
  %v826 = vld [vmem:[%s821 + $0x20] sm:$0xff]
  %v827 = vld [vmem:[%s821 + $0x28] sm:$0xff]
  %v828 = vld [vmem:[%s821 + $0x30] sm:$0xff]
  %v829 = vld [vmem:[%s821 + $0x38] sm:$0xff]
  %v830 = vld [vmem:[%s821 + $0x40] sm:$0xff]
  %v831 = vld [vmem:[%s821 + $0x48] sm:$0xff]
  %v832 = vld [vmem:[%s821 + $0x50] sm:$0xff]
  %v833 = vld [vmem:[%s821 + $0x58] sm:$0xff]
  %v834 = vld [vmem:[%s1] sm:$0xff]
  %v835 = vld [vmem:[%s1 + $0x8] sm:$0xff]
  %v836 = vld [vmem:[%s1 + $0x10] sm:$0xff]
  %v837 = vld [vmem:[%s1 + $0x18] sm:$0xff]
  %v838 = vld [vmem:[%s1 + $0x20] sm:$0xff]
  %v839 = vld [vmem:[%s1 + $0x28] sm:$0xff]
  %v840 = vld [vmem:[%s1 + $0x30] sm:$0xff]
  %v841 = vld [vmem:[%s1 + $0x38] sm:$0xff]
  %v842 = vld [vmem:[%s1 + $0x40] sm:$0xff]
  %v843 = vld [vmem:[%s1 + $0x48] sm:$0xff]
  %v844 = vld [vmem:[%s1 + $0x50] sm:$0xff]
  %v845 = vld [vmem:[%s1 + $0x58] sm:$0xff]
  %v846 = vld [vmem:[%s1 + $0x60] sm:$0xff]
  %v847 = vld [vmem:[%s1 + $0x68] sm:$0xff]
  %v848 = vld [vmem:[%s1 + $0x70] sm:$0xff]
  %v849 = vld [vmem:[%s1 + $0x78] sm:$0xff]
  %v850 = vld [vmem:[%s1 + $0x80] sm:$0xff]
  %v851 = vld [vmem:[%s1 + $0x88] sm:$0xff]
  %v852 = vld [vmem:[%s1 + $0x90] sm:$0xff]
  %v853 = vld [vmem:[%s1 + $0x98] sm:$0xff]
  %v854 = vld [vmem:[%s1 + $0xa0] sm:$0xff]
  %v855 = vld [vmem:[%s1 + $0xa8] sm:$0xff]
  %v856 = vld [vmem:[%s1 + $0xb0] sm:$0xff]
  %v857 = vld [vmem:[%s1 + $0xb8] sm:$0xff]
  %v858 = vld [vmem:[%s1 + $0xc0] sm:$0xff]
  %v859 = vld [vmem:[%s1 + $0xc8] sm:$0xff]
  %v860 = vld [vmem:[%s1 + $0xd0] sm:$0xff]
  %v861 = vld [vmem:[%s1 + $0xd8] sm:$0xff]
  %v862 = vld [vmem:[%s1 + $0xe0] sm:$0xff]
  %v863 = vld [vmem:[%s1 + $0xe8] sm:$0xff]
  %v864 = vld [vmem:[%s1 + $0xf0] sm:$0xff]
  %v865 = vld [vmem:[%s1 + $0xf8] sm:$0xff]
  %v866 = vld [vmem:[%s1 + $0x100] sm:$0xff]
  %v867 = vld [vmem:[%s1 + $0x108] sm:$0xff]
  %v868 = vld [vmem:[%s1 + $0x110] sm:$0xff]
  %v869 = vld [vmem:[%s1 + $0x118] sm:$0xff]
  %v871 = vsel %vm65, %v824, 0
  %v874 = vsel %vm65, %v827, 0
  %v877 = vsel %vm65, %v830, 0
  %v880 = vsel %vm65, %v833, 0
  %882 = vmatprep.subr.mxu0 0.0
  %883 = vmatpush1.msra.mxu0 %v834
  %884 = vmatprep.subr.mxu0 0.0
  %885 = vmatpush1.msra.mxu0 %v835
  %886 = vmatprep.subr.mxu0 0.0
  %887 = vmatpush1.msra.mxu0 %v836
  %888 = vmatprep.subr.mxu0 0.0
  %889 = vmatpush1.msra.mxu0 %v837
  %890 = vmatprep.subr.mxu0 0.0
  %891 = vmatpush1.msra.mxu0 %v838
  %892 = vmatprep.subr.mxu0 0.0
  %893 = vmatpush1.msra.mxu0 %v839
  %894 = vmatprep.subr.mxu0 0.0
  %895 = vmatpush1.msra.mxu0 %v840
  %896 = vmatprep.subr.mxu0 0.0
  %897 = vmatpush1.msra.mxu0 %v841
  %898 = vmatprep.subr.mxu0 0.0
  %899 = vmatpush1.msra.mxu0 %v842
  %900 = vmatprep.subr.mxu0 0.0
  %901 = vmatpush1.msra.mxu0 %v843
  %902 = vmatprep.subr.mxu0 0.0
  %903 = vmatpush1.msra.mxu0 %v844
  %904 = vmatprep.subr.mxu0 0.0
  %905 = vmatpush1.msra.mxu0 %v845
  %906 = vmatprep.subr.mxu0 0.0
  %907 = vmatpush1.msra.mxu0 %v846
  %908 = vmatprep.subr.mxu0 0.0
  %909 = vmatpush1.msra.mxu0 %v847
  %910 = vmatprep.subr.mxu0 0.0
  %911 = vmatpush1.msra.mxu0 %v848
  %912 = vmatprep.subr.mxu0 0.0
  %913 = vmatpush1.msra.mxu0 %v849
  %914 = vmatprep.subr.mxu0 0.0
  %915 = vmatpush1.msra.mxu0 %v850
  %916 = vmatprep.subr.mxu0 0.0
  %917 = vmatpush1.msra.mxu0 %v851
  %918 = vmatprep.subr.mxu0 0.0
  %919 = vmatpush1.msra.mxu0 %v852
  %920 = vmatprep.subr.mxu0 0.0
  %921 = vmatpush1.msra.mxu0 %v853
  %922 = vmatprep.subr.mxu0 0.0
  %923 = vmatpush1.msra.mxu0 %v854
  %924 = vmatprep.subr.mxu0 0.0
  %925 = vmatpush1.msra.mxu0 %v855
  %926 = vmatprep.subr.mxu0 0.0
  %927 = vmatpush1.msra.mxu0 %v856
  %928 = vmatprep.subr.mxu0 0.0
  %929 = vmatpush1.msra.mxu0 %v857
  %930 = vmatprep.subr.mxu0 0.0
  %931 = vmatpush1.msra.mxu0 %v858
  %932 = vmatprep.subr.mxu0 0.0
  %933 = vmatpush1.msra.mxu0 %v859
  %934 = vmatprep.subr.mxu0 0.0
  %935 = vmatpush1.msra.mxu0 %v860
  %936 = vmatprep.subr.mxu0 0.0
  %937 = vmatpush1.msra.mxu0 %v861
  %938 = vmatprep.subr.mxu0 0.0
  %939 = vmatpush1.msra.mxu0 %v862
  %940 = vmatprep.subr.mxu0 0.0
  %941 = vmatpush1.msra.mxu0 %v863
  %942 = vmatprep.subr.mxu0 0.0
  %943 = vmatpush1.msra.mxu0 %v864
  %944 = vmatprep.subr.mxu0 0.0
  %945 = vmatpush1.msra.mxu0 %v865
  %946 = vmatprep.mubr.f32.mxu0 %v823
  %947 = vmatmul.mubr.f32.gmra.mrb[0].mxu0 %v822
  %v948 = vpop.f32.mrb[0].mxu0
  %v949 = vadd.f32 0.0, %v948
  %v950 = vpop.f32.mrb[0].mxu0
  %951 = vmatprep.mubr.f32.mxu0 %v826
  %952 = vmatmul.mubr.f32.gmra.mrb[0].mxu0 %v825
  %v953 = vpop.f32.mrb[0].mxu0
  %v954 = vadd.f32 0.0, %v953
  %v955 = vpop.f32.mrb[0].mxu0
  %956 = vmatprep.mubr.f32.mxu0 %v829
  %957 = vmatmul.mubr.f32.gmra.mrb[0].mxu0 %v828
  %v958 = vpop.f32.mrb[0].mxu0
  %v959 = vadd.f32 0.0, %v958
  %v960 = vpop.f32.mrb[0].mxu0
  %961 = vmatprep.mubr.f32.mxu0 %v832
  %962 = vmatmul.mubr.f32.gmra.mrb[0].mxu0 %v831
  %v963 = vpop.f32.mrb[0].mxu0
  %v964 = vadd.f32 0.0, %v963
  %v965 = vpop.f32.mrb[0].mxu0
  %966 = vdwg.mxu0
  %967 = vmatprep.subr.mxu0 0.0
  %968 = vmatpush1.msra.mxu0 %v866
  %969 = vmatprep.subr.mxu0 0.0
  %970 = vmatpush1.msra.mxu0 %v867
  %971 = vmatprep.subr.mxu0 0.0
  %972 = vmatpush1.msra.mxu0 %v868
  %973 = vmatprep.subr.mxu0 0.0
  %974 = vmatpush1.msra.mxu0 %v869
  %975 = vmatprep.subr.mxu0 0.0
  %976 = vmatpush1.msra.mxu0 0.0
  %977 = vmatprep.subr.mxu0 0.0
  %978 = vmatpush1.msra.mxu0 0.0
  %979 = vmatprep.subr.mxu0 0.0
  %980 = vmatpush1.msra.mxu0 0.0
  %981 = vmatprep.subr.mxu0 0.0
  %982 = vmatpush1.msra.mxu0 0.0
  %983 = vmatprep.subr.mxu0 0.0
  %984 = vmatpush1.msra.mxu0 0.0
  %985 = vmatprep.subr.mxu0 0.0
  %986 = vmatpush1.msra.mxu0 0.0
  %987 = vmatprep.subr.mxu0 0.0
  %988 = vmatpush1.msra.mxu0 0.0
  %989 = vmatprep.subr.mxu0 0.0
  %990 = vmatpush1.msra.mxu0 0.0
  %991 = vmatprep.subr.mxu0 0.0
  %992 = vmatpush1.msra.mxu0 0.0
  %993 = vmatprep.subr.mxu0 0.0
  %994 = vmatpush1.msra.mxu0 0.0
  %995 = vmatprep.subr.mxu0 0.0
  %996 = vmatpush1.msra.mxu0 0.0
  %997 = vmatprep.subr.mxu0 0.0
  %998 = vmatpush1.msra.mxu0 0.0
  %999 = vmatprep.subr.mxu0 0.0
  %1000 = vmatpush1.msra.mxu0 0.0
  %1001 = vmatprep.subr.mxu0 0.0
  %1002 = vmatpush1.msra.mxu0 0.0
  %1003 = vmatprep.subr.mxu0 0.0
  %1004 = vmatpush1.msra.mxu0 0.0
  %1005 = vmatprep.subr.mxu0 0.0
  %1006 = vmatpush1.msra.mxu0 0.0
  %1007 = vmatprep.subr.mxu0 0.0
  %1008 = vmatpush1.msra.mxu0 0.0
  %1009 = vmatprep.subr.mxu0 0.0
  %1010 = vmatpush1.msra.mxu0 0.0
  %1011 = vmatprep.subr.mxu0 0.0
  %1012 = vmatpush1.msra.mxu0 0.0
  %1013 = vmatprep.subr.mxu0 0.0
  %1014 = vmatpush1.msra.mxu0 0.0
  %1015 = vmatprep.subr.mxu0 0.0
  %1016 = vmatpush1.msra.mxu0 0.0
  %1017 = vmatprep.subr.mxu0 0.0
  %1018 = vmatpush1.msra.mxu0 0.0
  %1019 = vmatprep.subr.mxu0 0.0
  %1020 = vmatpush1.msra.mxu0 0.0
  %1021 = vmatprep.subr.mxu0 0.0
  %1022 = vmatpush1.msra.mxu0 0.0
  %1023 = vmatprep.subr.mxu0 0.0
  %1024 = vmatpush1.msra.mxu0 0.0
  %1025 = vmatprep.subr.mxu0 0.0
  %1026 = vmatpush1.msra.mxu0 0.0
  %1027 = vmatprep.subr.mxu0 0.0
  %1028 = vmatpush1.msra.mxu0 0.0
  %1029 = vmatprep.subr.mxu0 0.0
  %1030 = vmatpush1.msra.mxu0 0.0
  %1031 = vmatprep.mubr.f32.mxu0 0.0
  %1032 = vmatmul.mubr.f32.gmra.mrb[0].mxu0 %v871
  %v1033 = vpop.f32.mrb[0].mxu0
  %v1034 = vadd.f32 %v949, %v1033
  %v1035 = vpop.f32.mrb[0].mxu0
  %1036 = vmatprep.mubr.f32.mxu0 0.0
  %1037 = vmatmul.mubr.f32.gmra.mrb[0].mxu0 %v874
  %v1038 = vpop.f32.mrb[0].mxu0
  %v1039 = vadd.f32 %v954, %v1038
  %v1040 = vpop.f32.mrb[0].mxu0
  %1041 = vmatprep.mubr.f32.mxu0 0.0
  %1042 = vmatmul.mubr.f32.gmra.mrb[0].mxu0 %v877
  %v1043 = vpop.f32.mrb[0].mxu0
  %v1044 = vadd.f32 %v959, %v1043
  %v1045 = vpop.f32.mrb[0].mxu0
  %1046 = vmatprep.mubr.f32.mxu0 0.0
  %1047 = vmatmul.mubr.f32.gmra.mrb[0].mxu0 %v880
  %v1048 = vpop.f32.mrb[0].mxu0
  %v1049 = vadd.f32 %v964, %v1048
  %v1050 = vpop.f32.mrb[0].mxu0
  %1051 = vdwg.mxu0
  %s1052 = scalar_lea.vmem [#allocation2], 96
  %1053 = vst.msk [vmem:[%s1052] sm:$0xff] %vm248, %v1034
  %1054 = vst.msk [vmem:[%s1052 + $0x8] sm:$0xff] %vm248, %v1039
  %1055 = vst.msk [vmem:[%s1052 + $0x10] sm:$0xff] %vm248, %v1044
  %1056 = vst.msk [vmem:[%s1052 + $0x18] sm:$0xff] %vm248, %v1049
  %v1057 = vsel %vm248, %v1034, 0.0
  %v1058 = vsel %vm248, %v1039, 0.0
  %v1059 = vadd.f32 %v1057, %v1058
  %v1060 = vsel %vm248, %v1044, 0.0
  %v1061 = vadd.f32 %v1059, %v1060
  %v1062 = vsel %vm248, %v1049, 0.0
  %v1063 = vadd.f32 %v1061, %v1062
  %v1064 = vrot.slane %v1063, 4
  %v1065 = vadd.f32 %v1063, %v1064
  %v1066 = vrot.slane %v1065, 2
  %v1067 = vadd.f32 %v1065, %v1066
  %v1068 = vrot.slane %v1067, 1
  %v1069 = vadd.f32 %v1067, %v1068
  %v1070 = vadd.f32 %v802, %v1069
  %v1071 = vmul.f32 %v1034, %v1034
  %v1072 = vmul.f32 %v1039, %v1039
  %v1073 = vmul.f32 %v1044, %v1044
  %v1074 = vmul.f32 %v1049, %v1049
  %v1075 = vsel %vm248, %v1071, 0.0
  %v1076 = vsel %vm248, %v1072, 0.0
  %v1077 = vadd.f32 %v1075, %v1076
  %v1078 = vsel %vm248, %v1073, 0.0
  %v1079 = vadd.f32 %v1077, %v1078
  %v1080 = vsel %vm248, %v1074, 0.0
  %v1081 = vadd.f32 %v1079, %v1080
  %v1082 = vrot.slane %v1081, 4
  %v1083 = vadd.f32 %v1081, %v1082
  %v1084 = vrot.slane %v1083, 2
  %v1085 = vadd.f32 %v1083, %v1084
  %v1086 = vrot.slane %v1085, 1
  %v1087 = vadd.f32 %v1085, %v1086
  %v1088 = vadd.f32 %v820, %v1087
  %v1089 = vrcp.pop 128.0
  %v1090 = vmul.f32 %v1070, %v1089
  %v1091 = vmul.f32 %v1088, %v1089
  %v1092 = vmul.f32 %v1090, %v1090
  %v1093 = vsub.f32 %v1091, %v1092
  %v1094 = vmax.f32 %v1093, 0.0
  %v1095 = vld [vmem:[%s2] sm:$0x1]
  %v1096 = vadd.f32 %v1094, 1e-05
  %v1097 = vrsqrt.pop %v1096
  %v1098 = vmul.f32 %v1095, %v1097
  %v1099 = vld [vmem:[%s3] sm:$0x1]
  %v1100 = vmul.f32 %v1090, %v1098
  %v1101 = vsub.f32 %v1099, %v1100
  %v1102 = vld [vmem:[#allocation2] sm:$0xff]
  %v1103 = vld [vmem:[#allocation2 + $0x8] sm:$0xff]
  %v1104 = vld [vmem:[#allocation2 + $0x10] sm:$0xff]
  %v1105 = vld [vmem:[#allocation2 + $0x18] sm:$0xff]
  %v1107 = vlaneseq
  %v1108 = vshrl.u32 %v1107, 7
  %v1109 = vsub.s32 0, %v1108
  %v1110 = vrot.slane %v1098, %v1109
  %v1112 = vmul.f32 %v1102, %v1110
  %v1113 = vmul.f32 %v1103, %v1110
  %v1114 = vmul.f32 %v1104, %v1110
  %v1115 = vmul.f32 %v1105, %v1110
  %v1117 = vlaneseq
  %v1118 = vshrl.u32 %v1117, 7
  %v1119 = vsub.s32 0, %v1118
  %v1120 = vrot.slane %v1101, %v1119
  %v1122 = vadd.f32 %v1112, %v1120
  %v1123 = vadd.f32 %v1113, %v1120
  %v1124 = vadd.f32 %v1114, %v1120
  %v1125 = vadd.f32 %v1115, %v1120
  %v1126 = vmax.f32 %v1122, 0.0
  %v1127 = vmax.f32 %v1123, 0.0
  %v1128 = vmax.f32 %v1124, 0.0
  %v1129 = vmax.f32 %v1125, 0.0
  %v1130 = vld [vmem:[%s516] sm:$0xff]
  %v1131 = vld [vmem:[%s516 + $0x8] sm:$0xff]
  %v1132 = vld [vmem:[%s516 + $0x10] sm:$0xff]
  %v1133 = vld [vmem:[%s516 + $0x18] sm:$0xff]
  %v1134 = vmul.f32 %v1130, %v1110
  %v1135 = vmul.f32 %v1131, %v1110
  %v1136 = vmul.f32 %v1132, %v1110
  %v1137 = vmul.f32 %v1133, %v1110
  %v1138 = vadd.f32 %v1134, %v1120
  %v1139 = vadd.f32 %v1135, %v1120
  %v1140 = vadd.f32 %v1136, %v1120
  %v1141 = vadd.f32 %v1137, %v1120
  %v1142 = vmax.f32 %v1138, 0.0
  %v1143 = vmax.f32 %v1139, 0.0
  %v1144 = vmax.f32 %v1140, 0.0
  %v1145 = vmax.f32 %v1141, 0.0
  %v1146 = vmax.f32 %v1126, %v1142
  %v1147 = vmax.f32 %v1127, %v1143
  %v1148 = vmax.f32 %v1128, %v1144
  %v1149 = vmax.f32 %v1129, %v1145
  %v1150 = vld [vmem:[%s784] sm:$0xff]
  %v1151 = vld [vmem:[%s784 + $0x8] sm:$0xff]
  %v1152 = vld [vmem:[%s784 + $0x10] sm:$0xff]
  %v1153 = vld [vmem:[%s784 + $0x18] sm:$0xff]
  %v1154 = vmul.f32 %v1150, %v1110
  %v1155 = vmul.f32 %v1151, %v1110
  %v1156 = vmul.f32 %v1152, %v1110
  %v1157 = vmul.f32 %v1153, %v1110
  %v1158 = vadd.f32 %v1154, %v1120
  %v1159 = vadd.f32 %v1155, %v1120
  %v1160 = vadd.f32 %v1156, %v1120
  %v1161 = vadd.f32 %v1157, %v1120
  %v1162 = vmax.f32 %v1158, 0.0
  %v1163 = vmax.f32 %v1159, 0.0
  %v1164 = vmax.f32 %v1160, 0.0
  %v1165 = vmax.f32 %v1161, 0.0
  %v1166 = vmax.f32 %v1146, %v1162
  %v1167 = vmax.f32 %v1147, %v1163
  %v1168 = vmax.f32 %v1148, %v1164
  %v1169 = vmax.f32 %v1149, %v1165
  %v1170 = vld [vmem:[%s1052] sm:$0xff]
  %v1171 = vld [vmem:[%s1052 + $0x8] sm:$0xff]
  %v1172 = vld [vmem:[%s1052 + $0x10] sm:$0xff]
  %v1173 = vld [vmem:[%s1052 + $0x18] sm:$0xff]
  %v1174 = vmul.f32 %v1170, %v1110
  %v1175 = vmul.f32 %v1171, %v1110
  %v1176 = vmul.f32 %v1172, %v1110
  %v1177 = vmul.f32 %v1173, %v1110
  %v1178 = vadd.f32 %v1174, %v1120
  %v1179 = vadd.f32 %v1175, %v1120
  %v1180 = vadd.f32 %v1176, %v1120
  %v1181 = vadd.f32 %v1177, %v1120
  %v1182 = vmax.f32 %v1178, 0.0
  %v1183 = vmax.f32 %v1179, 0.0
  %v1184 = vmax.f32 %v1180, 0.0
  %v1185 = vmax.f32 %v1181, 0.0
  %v1186 = vmax.f32 %v1166, %v1182
  %v1187 = vmax.f32 %v1167, %v1183
  %v1188 = vmax.f32 %v1168, %v1184
  %v1189 = vmax.f32 %v1169, %v1185
  %1190 = vst.msk [vmem:[%s4] sm:$0xff] %vm248, %v1186
  %1191 = vst.msk [vmem:[%s4 + $0x8] sm:$0xff] %vm248, %v1187
  %1192 = vst.msk [vmem:[%s4 + $0x10] sm:$0xff] %vm248, %v1188
  %1193 = vst.msk [vmem:[%s4 + $0x18] sm:$0xff] %vm248, %v1189
  // Predicated region
  $region18: #{active_mnist_cnn_forward.4} parent=0 // pred_check
    _
  $region19: #{active_mnist_cnn_forward.4} parent=0 // pred_check_branch
    %1195 = sbr.rel (0) target = $region21
  $region20: #{active_mnist_cnn_forward.4} parent=0 // pred_region
    _
  $region21: #{active_mnist_cnn_forward.4} parent=0 // pred_fallthru
    _
  // Predicated region
  $region22: #{active_mnist_cnn_forward.4} parent=0 // pred_check
    _
  $region23: #{active_mnist_cnn_forward.4} parent=0 // pred_check_branch
    %1197 = sbr.rel (0) target = $region25
  $region24: #{active_mnist_cnn_forward.4} parent=0 // pred_region
    _
  $region25: #{active_mnist_cnn_forward.4} parent=0 // pred_fallthru
    _

// kernel: active_mnist_cnn_forward.5
$region0: #{active_mnist_cnn_forward.5}
  #allocation0 [shape = 'u32[]', space=smem, size = 0x4, offset = 0x4, fixed_abs, tag = 'smem constant byte address 0x4 - core index']
  #allocation1 [shape = 'u32[144,128]{1,0:T(1,128)}', space=vmem, size = 0x12000, scoped, tag = 'internal scratch']
  #allocation2 [shape = 'f32[4,8,128]{2,1,0:T(8,128)}', space=vmem, size = 0x4000, scoped, tag = 'scratch operand']
  %s0 = inlined_call_operand.vmem [shape: f32[4,8,576], index: 0, kind: input, shape index: {}]
  %s1 = inlined_call_operand.vmem [shape: f32[576,128], index: 1, kind: input, shape index: {}]
  %s2 = inlined_call_operand.vmem [shape: f32[1,128], index: 2, kind: input, shape index: {}]
  %s3 = inlined_call_operand.vmem [shape: f32[1,128], index: 3, kind: input, shape index: {}]
  %s4 = inlined_call_operand.vmem [shape: f32[8,128], index: 4, kind: output, shape index: {}]
  %s5 = sld [smem:[#allocation0]]
  $region26: #{active_mnist_cnn_forward.5} parent=0
    _
  %s7 = ssub.s32 1, %s5
  %s8 = scalar_select 0, %s7, %s5
  // Predicated region
  $region2: #{active_mnist_cnn_forward.5} parent=0 // pred_check
    _
  $region3: #{active_mnist_cnn_forward.5} parent=0 // pred_check_branch
    %10 = sbr.rel (0) target = $region5
  $region4: #{active_mnist_cnn_forward.5} parent=0 // pred_region
    _
  $region5: #{active_mnist_cnn_forward.5} parent=0 // pred_fallthru
    _
  // Predicated region
  $region6: #{active_mnist_cnn_forward.5} parent=0 // pred_check
    _
  $region7: #{active_mnist_cnn_forward.5} parent=0 // pred_check_branch
    %12 = sbr.rel (0) target = $region9
  $region8: #{active_mnist_cnn_forward.5} parent=0 // pred_region
    _
  $region9: #{active_mnist_cnn_forward.5} parent=0 // pred_fallthru
    _
  // Predicated region
  $region10: #{active_mnist_cnn_forward.5} parent=0 // pred_check
    _
  $region11: #{active_mnist_cnn_forward.5} parent=0 // pred_check_branch
    %14 = sbr.rel (0) target = $region13
  $region12: #{active_mnist_cnn_forward.5} parent=0 // pred_region
    _
  $region13: #{active_mnist_cnn_forward.5} parent=0 // pred_fallthru
    _
  // Predicated region
  $region14: #{active_mnist_cnn_forward.5} parent=0 // pred_check
    _
  $region15: #{active_mnist_cnn_forward.5} parent=0 // pred_check_branch
    %16 = sbr.rel (0) target = $region17
  $region16: #{active_mnist_cnn_forward.5} parent=0 // pred_region
    _
  $region17: #{active_mnist_cnn_forward.5} parent=0 // pred_fallthru
    _
  %v17 = vld [vmem:[%s0] sm:$0xff]
  %v18 = vld [vmem:[%s0 + $0x8] sm:$0xff]
  %v19 = vld [vmem:[%s0 + $0x10] sm:$0xff]
  %v20 = vld [vmem:[%s0 + $0x18] sm:$0xff]
  %v21 = vld [vmem:[%s0 + $0x20] sm:$0xff]
  %v22 = vld [vmem:[%s1] sm:$0xff]
  %v23 = vld [vmem:[%s1 + $0x8] sm:$0xff]
  %v24 = vld [vmem:[%s1 + $0x10] sm:$0xff]
  %v25 = vld [vmem:[%s1 + $0x18] sm:$0xff]
  %v26 = vld [vmem:[%s1 + $0x20] sm:$0xff]
  %v27 = vld [vmem:[%s1 + $0x28] sm:$0xff]
  %v28 = vld [vmem:[%s1 + $0x30] sm:$0xff]
  %v29 = vld [vmem:[%s1 + $0x38] sm:$0xff]
  %v30 = vld [vmem:[%s1 + $0x40] sm:$0xff]
  %v31 = vld [vmem:[%s1 + $0x48] sm:$0xff]
  %v32 = vld [vmem:[%s1 + $0x50] sm:$0xff]
  %v33 = vld [vmem:[%s1 + $0x58] sm:$0xff]
  %v34 = vld [vmem:[%s1 + $0x60] sm:$0xff]
  %v35 = vld [vmem:[%s1 + $0x68] sm:$0xff]
  %v36 = vld [vmem:[%s1 + $0x70] sm:$0xff]
  %v37 = vld [vmem:[%s1 + $0x78] sm:$0xff]
  %v38 = vld [vmem:[%s1 + $0x80] sm:$0xff]
  %v39 = vld [vmem:[%s1 + $0x88] sm:$0xff]
  %v40 = vld [vmem:[%s1 + $0x90] sm:$0xff]
  %v41 = vld [vmem:[%s1 + $0x98] sm:$0xff]
  %v42 = vld [vmem:[%s1 + $0xa0] sm:$0xff]
  %v43 = vld [vmem:[%s1 + $0xa8] sm:$0xff]
  %v44 = vld [vmem:[%s1 + $0xb0] sm:$0xff]
  %v45 = vld [vmem:[%s1 + $0xb8] sm:$0xff]
  %v46 = vld [vmem:[%s1 + $0xc0] sm:$0xff]
  %v47 = vld [vmem:[%s1 + $0xc8] sm:$0xff]
  %v48 = vld [vmem:[%s1 + $0xd0] sm:$0xff]
  %v49 = vld [vmem:[%s1 + $0xd8] sm:$0xff]
  %v50 = vld [vmem:[%s1 + $0xe0] sm:$0xff]
  %v51 = vld [vmem:[%s1 + $0xe8] sm:$0xff]
  %v52 = vld [vmem:[%s1 + $0xf0] sm:$0xff]
  %v53 = vld [vmem:[%s1 + $0xf8] sm:$0xff]
  %v54 = vld [vmem:[%s1 + $0x100] sm:$0xff]
  %v55 = vld [vmem:[%s1 + $0x108] sm:$0xff]
  %v56 = vld [vmem:[%s1 + $0x110] sm:$0xff]
  %v57 = vld [vmem:[%s1 + $0x118] sm:$0xff]
  %v58 = vld [vmem:[%s1 + $0x120] sm:$0xff]
  %v59 = vld [vmem:[%s1 + $0x128] sm:$0xff]
  %v60 = vld [vmem:[%s1 + $0x130] sm:$0xff]
  %v61 = vld [vmem:[%s1 + $0x138] sm:$0xff]
  %v62 = vld [vmem:[%s1 + $0x140] sm:$0xff]
  %v63 = vld [vmem:[%s1 + $0x148] sm:$0xff]
  %v64 = vld [vmem:[%s1 + $0x150] sm:$0xff]
  %v65 = vld [vmem:[%s1 + $0x158] sm:$0xff]
  %v66 = vld [vmem:[%s1 + $0x160] sm:$0xff]
  %v67 = vld [vmem:[%s1 + $0x168] sm:$0xff]
  %v68 = vld [vmem:[%s1 + $0x170] sm:$0xff]
  %v69 = vld [vmem:[%s1 + $0x178] sm:$0xff]
  %v70 = vld [vmem:[%s1 + $0x180] sm:$0xff]
  %v71 = vld [vmem:[%s1 + $0x188] sm:$0xff]
  %v72 = vld [vmem:[%s1 + $0x190] sm:$0xff]
  %v73 = vld [vmem:[%s1 + $0x198] sm:$0xff]
  %v74 = vld [vmem:[%s1 + $0x1a0] sm:$0xff]
  %v75 = vld [vmem:[%s1 + $0x1a8] sm:$0xff]
  %v76 = vld [vmem:[%s1 + $0x1b0] sm:$0xff]
  %v77 = vld [vmem:[%s1 + $0x1b8] sm:$0xff]
  %v78 = vld [vmem:[%s1 + $0x1c0] sm:$0xff]
  %v79 = vld [vmem:[%s1 + $0x1c8] sm:$0xff]
  %v80 = vld [vmem:[%s1 + $0x1d0] sm:$0xff]
  %v81 = vld [vmem:[%s1 + $0x1d8] sm:$0xff]
  %v82 = vld [vmem:[%s1 + $0x1e0] sm:$0xff]
  %v83 = vld [vmem:[%s1 + $0x1e8] sm:$0xff]
  %v84 = vld [vmem:[%s1 + $0x1f0] sm:$0xff]
  %v85 = vld [vmem:[%s1 + $0x1f8] sm:$0xff]
  %v86 = vld [vmem:[%s1 + $0x200] sm:$0xff]
  %v87 = vld [vmem:[%s1 + $0x208] sm:$0xff]
  %v88 = vld [vmem:[%s1 + $0x210] sm:$0xff]
  %v89 = vld [vmem:[%s1 + $0x218] sm:$0xff]
  %v90 = vld [vmem:[%s1 + $0x220] sm:$0xff]
  %v91 = vld [vmem:[%s1 + $0x228] sm:$0xff]
  %v92 = vld [vmem:[%s1 + $0x230] sm:$0xff]
  %v93 = vld [vmem:[%s1 + $0x238] sm:$0xff]
  %vm94 = vcmask 523264
  %v96 = vsel %vm94, %v21, 0
  %98 = vmatprep.subr.mxu0 0.0
  %99 = vmatpush1.msra.mxu0 %v22
  %100 = vmatprep.subr.mxu0 0.0
  %101 = vmatpush1.msra.mxu0 %v23
  %102 = vmatprep.subr.mxu0 0.0
  %103 = vmatpush1.msra.mxu0 %v24
  %104 = vmatprep.subr.mxu0 0.0
  %105 = vmatpush1.msra.mxu0 %v25
  %106 = vmatprep.subr.mxu0 0.0
  %107 = vmatpush1.msra.mxu0 %v26
  %108 = vmatprep.subr.mxu0 0.0
  %109 = vmatpush1.msra.mxu0 %v27
  %110 = vmatprep.subr.mxu0 0.0
  %111 = vmatpush1.msra.mxu0 %v28
  %112 = vmatprep.subr.mxu0 0.0
  %113 = vmatpush1.msra.mxu0 %v29
  %114 = vmatprep.subr.mxu0 0.0
  %115 = vmatpush1.msra.mxu0 %v30
  %116 = vmatprep.subr.mxu0 0.0
  %117 = vmatpush1.msra.mxu0 %v31
  %118 = vmatprep.subr.mxu0 0.0
  %119 = vmatpush1.msra.mxu0 %v32
  %120 = vmatprep.subr.mxu0 0.0
  %121 = vmatpush1.msra.mxu0 %v33
  %122 = vmatprep.subr.mxu0 0.0
  %123 = vmatpush1.msra.mxu0 %v34
  %124 = vmatprep.subr.mxu0 0.0
  %125 = vmatpush1.msra.mxu0 %v35
  %126 = vmatprep.subr.mxu0 0.0
  %127 = vmatpush1.msra.mxu0 %v36
  %128 = vmatprep.subr.mxu0 0.0
  %129 = vmatpush1.msra.mxu0 %v37
  %130 = vmatprep.subr.mxu0 0.0
  %131 = vmatpush1.msra.mxu0 %v38
  %132 = vmatprep.subr.mxu0 0.0
  %133 = vmatpush1.msra.mxu0 %v39
  %134 = vmatprep.subr.mxu0 0.0
  %135 = vmatpush1.msra.mxu0 %v40
  %136 = vmatprep.subr.mxu0 0.0
  %137 = vmatpush1.msra.mxu0 %v41
  %138 = vmatprep.subr.mxu0 0.0
  %139 = vmatpush1.msra.mxu0 %v42
  %140 = vmatprep.subr.mxu0 0.0
  %141 = vmatpush1.msra.mxu0 %v43
  %142 = vmatprep.subr.mxu0 0.0
  %143 = vmatpush1.msra.mxu0 %v44
  %144 = vmatprep.subr.mxu0 0.0
  %145 = vmatpush1.msra.mxu0 %v45
  %146 = vmatprep.subr.mxu0 0.0
  %147 = vmatpush1.msra.mxu0 %v46
  %148 = vmatprep.subr.mxu0 0.0
  %149 = vmatpush1.msra.mxu0 %v47
  %150 = vmatprep.subr.mxu0 0.0
  %151 = vmatpush1.msra.mxu0 %v48
  %152 = vmatprep.subr.mxu0 0.0
  %153 = vmatpush1.msra.mxu0 %v49
  %154 = vmatprep.subr.mxu0 0.0
  %155 = vmatpush1.msra.mxu0 %v50
  %156 = vmatprep.subr.mxu0 0.0
  %157 = vmatpush1.msra.mxu0 %v51
  %158 = vmatprep.subr.mxu0 0.0
  %159 = vmatpush1.msra.mxu0 %v52
  %160 = vmatprep.subr.mxu0 0.0
  %161 = vmatpush1.msra.mxu0 %v53
  %162 = vmatprep.mubr.f32.mxu0 %v18
  %163 = vmatmul.mubr.f32.gmra.mrb[0].mxu0 %v17
  %v164 = vpop.f32.mrb[0].mxu0
  %v165 = vadd.f32 0.0, %v164
  %v166 = vpop.f32.mrb[0].mxu0
  %167 = vdwg.mxu0
  %168 = vmatprep.subr.mxu0 0.0
  %169 = vmatpush1.msra.mxu0 %v54
  %170 = vmatprep.subr.mxu0 0.0
  %171 = vmatpush1.msra.mxu0 %v55
  %172 = vmatprep.subr.mxu0 0.0
  %173 = vmatpush1.msra.mxu0 %v56
  %174 = vmatprep.subr.mxu0 0.0
  %175 = vmatpush1.msra.mxu0 %v57
  %176 = vmatprep.subr.mxu0 0.0
  %177 = vmatpush1.msra.mxu0 %v58
  %178 = vmatprep.subr.mxu0 0.0
  %179 = vmatpush1.msra.mxu0 %v59
  %180 = vmatprep.subr.mxu0 0.0
  %181 = vmatpush1.msra.mxu0 %v60
  %182 = vmatprep.subr.mxu0 0.0
  %183 = vmatpush1.msra.mxu0 %v61
  %184 = vmatprep.subr.mxu0 0.0
  %185 = vmatpush1.msra.mxu0 %v62
  %186 = vmatprep.subr.mxu0 0.0
  %187 = vmatpush1.msra.mxu0 %v63
  %188 = vmatprep.subr.mxu0 0.0
  %189 = vmatpush1.msra.mxu0 %v64
  %190 = vmatprep.subr.mxu0 0.0
  %191 = vmatpush1.msra.mxu0 %v65
  %192 = vmatprep.subr.mxu0 0.0
  %193 = vmatpush1.msra.mxu0 %v66
  %194 = vmatprep.subr.mxu0 0.0
  %195 = vmatpush1.msra.mxu0 %v67
  %196 = vmatprep.subr.mxu0 0.0
  %197 = vmatpush1.msra.mxu0 %v68
  %198 = vmatprep.subr.mxu0 0.0
  %199 = vmatpush1.msra.mxu0 %v69
  %200 = vmatprep.subr.mxu0 0.0
  %201 = vmatpush1.msra.mxu0 %v70
  %202 = vmatprep.subr.mxu0 0.0
  %203 = vmatpush1.msra.mxu0 %v71
  %204 = vmatprep.subr.mxu0 0.0
  %205 = vmatpush1.msra.mxu0 %v72
  %206 = vmatprep.subr.mxu0 0.0
  %207 = vmatpush1.msra.mxu0 %v73
  %208 = vmatprep.subr.mxu0 0.0
  %209 = vmatpush1.msra.mxu0 %v74
  %210 = vmatprep.subr.mxu0 0.0
  %211 = vmatpush1.msra.mxu0 %v75
  %212 = vmatprep.subr.mxu0 0.0
  %213 = vmatpush1.msra.mxu0 %v76
  %214 = vmatprep.subr.mxu0 0.0
  %215 = vmatpush1.msra.mxu0 %v77
  %216 = vmatprep.subr.mxu0 0.0
  %217 = vmatpush1.msra.mxu0 %v78
  %218 = vmatprep.subr.mxu0 0.0
  %219 = vmatpush1.msra.mxu0 %v79
  %220 = vmatprep.subr.mxu0 0.0
  %221 = vmatpush1.msra.mxu0 %v80
  %222 = vmatprep.subr.mxu0 0.0
  %223 = vmatpush1.msra.mxu0 %v81
  %224 = vmatprep.subr.mxu0 0.0
  %225 = vmatpush1.msra.mxu0 %v82
  %226 = vmatprep.subr.mxu0 0.0
  %227 = vmatpush1.msra.mxu0 %v83
  %228 = vmatprep.subr.mxu0 0.0
  %229 = vmatpush1.msra.mxu0 %v84
  %230 = vmatprep.subr.mxu0 0.0
  %231 = vmatpush1.msra.mxu0 %v85
  %232 = vmatprep.mubr.f32.mxu0 %v20
  %233 = vmatmul.mubr.f32.gmra.mrb[0].mxu0 %v19
  %v234 = vpop.f32.mrb[0].mxu0
  %v235 = vadd.f32 %v165, %v234
  %v236 = vpop.f32.mrb[0].mxu0
  %237 = vdwg.mxu0
  %238 = vmatprep.subr.mxu0 0.0
  %239 = vmatpush1.msra.mxu0 %v86
  %240 = vmatprep.subr.mxu0 0.0
  %241 = vmatpush1.msra.mxu0 %v87
  %242 = vmatprep.subr.mxu0 0.0
  %243 = vmatpush1.msra.mxu0 %v88
  %244 = vmatprep.subr.mxu0 0.0
  %245 = vmatpush1.msra.mxu0 %v89
  %246 = vmatprep.subr.mxu0 0.0
  %247 = vmatpush1.msra.mxu0 %v90
  %248 = vmatprep.subr.mxu0 0.0
  %249 = vmatpush1.msra.mxu0 %v91
  %250 = vmatprep.subr.mxu0 0.0
  %251 = vmatpush1.msra.mxu0 %v92
  %252 = vmatprep.subr.mxu0 0.0
  %253 = vmatpush1.msra.mxu0 %v93
  %254 = vmatprep.subr.mxu0 0.0
  %255 = vmatpush1.msra.mxu0 0.0
  %256 = vmatprep.subr.mxu0 0.0
  %257 = vmatpush1.msra.mxu0 0.0
  %258 = vmatprep.subr.mxu0 0.0
  %259 = vmatpush1.msra.mxu0 0.0
  %260 = vmatprep.subr.mxu0 0.0
  %261 = vmatpush1.msra.mxu0 0.0
  %262 = vmatprep.subr.mxu0 0.0
  %263 = vmatpush1.msra.mxu0 0.0
  %264 = vmatprep.subr.mxu0 0.0
  %265 = vmatpush1.msra.mxu0 0.0
  %266 = vmatprep.subr.mxu0 0.0
  %267 = vmatpush1.msra.mxu0 0.0
  %268 = vmatprep.subr.mxu0 0.0
  %269 = vmatpush1.msra.mxu0 0.0
  %270 = vmatprep.subr.mxu0 0.0
  %271 = vmatpush1.msra.mxu0 0.0
  %272 = vmatprep.subr.mxu0 0.0
  %273 = vmatpush1.msra.mxu0 0.0
  %274 = vmatprep.subr.mxu0 0.0
  %275 = vmatpush1.msra.mxu0 0.0
  %276 = vmatprep.subr.mxu0 0.0
  %277 = vmatpush1.msra.mxu0 0.0
  %278 = vmatprep.subr.mxu0 0.0
  %279 = vmatpush1.msra.mxu0 0.0
  %280 = vmatprep.subr.mxu0 0.0
  %281 = vmatpush1.msra.mxu0 0.0
  %282 = vmatprep.subr.mxu0 0.0
  %283 = vmatpush1.msra.mxu0 0.0
  %284 = vmatprep.subr.mxu0 0.0
  %285 = vmatpush1.msra.mxu0 0.0
  %286 = vmatprep.subr.mxu0 0.0
  %287 = vmatpush1.msra.mxu0 0.0
  %288 = vmatprep.subr.mxu0 0.0
  %289 = vmatpush1.msra.mxu0 0.0
  %290 = vmatprep.subr.mxu0 0.0
  %291 = vmatpush1.msra.mxu0 0.0
  %292 = vmatprep.subr.mxu0 0.0
  %293 = vmatpush1.msra.mxu0 0.0
  %294 = vmatprep.subr.mxu0 0.0
  %295 = vmatpush1.msra.mxu0 0.0
  %296 = vmatprep.subr.mxu0 0.0
  %297 = vmatpush1.msra.mxu0 0.0
  %298 = vmatprep.subr.mxu0 0.0
  %299 = vmatpush1.msra.mxu0 0.0
  %300 = vmatprep.subr.mxu0 0.0
  %301 = vmatpush1.msra.mxu0 0.0
  %302 = vmatprep.mubr.f32.mxu0 0.0
  %303 = vmatmul.mubr.f32.gmra.mrb[0].mxu0 %v96
  %v304 = vpop.f32.mrb[0].mxu0
  %v305 = vadd.f32 %v235, %v304
  %v306 = vpop.f32.mrb[0].mxu0
  %307 = vdwg.mxu0
  %308 = vst [vmem:[#allocation2] sm:$0xff] %v305
  %v309 = vrot.slane %v305, 4
  %v310 = vadd.f32 %v305, %v309
  %v311 = vrot.slane %v310, 2
  %v312 = vadd.f32 %v310, %v311
  %v313 = vrot.slane %v312, 1
  %v314 = vadd.f32 %v312, %v313
  %v315 = vadd.f32 %v314, 0.0
  %v316 = vmul.f32 %v305, %v305
  %v317 = vrot.slane %v316, 4
  %v318 = vadd.f32 %v316, %v317
  %v319 = vrot.slane %v318, 2
  %v320 = vadd.f32 %v318, %v319
  %v321 = vrot.slane %v320, 1
  %v322 = vadd.f32 %v320, %v321
  %v323 = vadd.f32 %v322, 0.0
  %s324 = scalar_lea.vmem %s0, 40
  %v325 = vld [vmem:[%s324] sm:$0xff]
  %v326 = vld [vmem:[%s324 + $0x8] sm:$0xff]
  %v327 = vld [vmem:[%s324 + $0x10] sm:$0xff]
  %v328 = vld [vmem:[%s324 + $0x18] sm:$0xff]
  %v329 = vld [vmem:[%s324 + $0x20] sm:$0xff]
  %v330 = vld [vmem:[%s1] sm:$0xff]
  %v331 = vld [vmem:[%s1 + $0x8] sm:$0xff]
  %v332 = vld [vmem:[%s1 + $0x10] sm:$0xff]
  %v333 = vld [vmem:[%s1 + $0x18] sm:$0xff]
  %v334 = vld [vmem:[%s1 + $0x20] sm:$0xff]
  %v335 = vld [vmem:[%s1 + $0x28] sm:$0xff]
  %v336 = vld [vmem:[%s1 + $0x30] sm:$0xff]
  %v337 = vld [vmem:[%s1 + $0x38] sm:$0xff]
  %v338 = vld [vmem:[%s1 + $0x40] sm:$0xff]
  %v339 = vld [vmem:[%s1 + $0x48] sm:$0xff]
  %v340 = vld [vmem:[%s1 + $0x50] sm:$0xff]
  %v341 = vld [vmem:[%s1 + $0x58] sm:$0xff]
  %v342 = vld [vmem:[%s1 + $0x60] sm:$0xff]
  %v343 = vld [vmem:[%s1 + $0x68] sm:$0xff]
  %v344 = vld [vmem:[%s1 + $0x70] sm:$0xff]
  %v345 = vld [vmem:[%s1 + $0x78] sm:$0xff]
  %v346 = vld [vmem:[%s1 + $0x80] sm:$0xff]
  %v347 = vld [vmem:[%s1 + $0x88] sm:$0xff]
  %v348 = vld [vmem:[%s1 + $0x90] sm:$0xff]
  %v349 = vld [vmem:[%s1 + $0x98] sm:$0xff]
  %v350 = vld [vmem:[%s1 + $0xa0] sm:$0xff]
  %v351 = vld [vmem:[%s1 + $0xa8] sm:$0xff]
  %v352 = vld [vmem:[%s1 + $0xb0] sm:$0xff]
  %v353 = vld [vmem:[%s1 + $0xb8] sm:$0xff]
  %v354 = vld [vmem:[%s1 + $0xc0] sm:$0xff]
  %v355 = vld [vmem:[%s1 + $0xc8] sm:$0xff]
  %v356 = vld [vmem:[%s1 + $0xd0] sm:$0xff]
  %v357 = vld [vmem:[%s1 + $0xd8] sm:$0xff]
  %v358 = vld [vmem:[%s1 + $0xe0] sm:$0xff]
  %v359 = vld [vmem:[%s1 + $0xe8] sm:$0xff]
  %v360 = vld [vmem:[%s1 + $0xf0] sm:$0xff]
  %v361 = vld [vmem:[%s1 + $0xf8] sm:$0xff]
  %v362 = vld [vmem:[%s1 + $0x100] sm:$0xff]
  %v363 = vld [vmem:[%s1 + $0x108] sm:$0xff]
  %v364 = vld [vmem:[%s1 + $0x110] sm:$0xff]
  %v365 = vld [vmem:[%s1 + $0x118] sm:$0xff]
  %v366 = vld [vmem:[%s1 + $0x120] sm:$0xff]
  %v367 = vld [vmem:[%s1 + $0x128] sm:$0xff]
  %v368 = vld [vmem:[%s1 + $0x130] sm:$0xff]
  %v369 = vld [vmem:[%s1 + $0x138] sm:$0xff]
  %v370 = vld [vmem:[%s1 + $0x140] sm:$0xff]
  %v371 = vld [vmem:[%s1 + $0x148] sm:$0xff]
  %v372 = vld [vmem:[%s1 + $0x150] sm:$0xff]
  %v373 = vld [vmem:[%s1 + $0x158] sm:$0xff]
  %v374 = vld [vmem:[%s1 + $0x160] sm:$0xff]
  %v375 = vld [vmem:[%s1 + $0x168] sm:$0xff]
  %v376 = vld [vmem:[%s1 + $0x170] sm:$0xff]
  %v377 = vld [vmem:[%s1 + $0x178] sm:$0xff]
  %v378 = vld [vmem:[%s1 + $0x180] sm:$0xff]
  %v379 = vld [vmem:[%s1 + $0x188] sm:$0xff]
  %v380 = vld [vmem:[%s1 + $0x190] sm:$0xff]
  %v381 = vld [vmem:[%s1 + $0x198] sm:$0xff]
  %v382 = vld [vmem:[%s1 + $0x1a0] sm:$0xff]
  %v383 = vld [vmem:[%s1 + $0x1a8] sm:$0xff]
  %v384 = vld [vmem:[%s1 + $0x1b0] sm:$0xff]
  %v385 = vld [vmem:[%s1 + $0x1b8] sm:$0xff]
  %v386 = vld [vmem:[%s1 + $0x1c0] sm:$0xff]
  %v387 = vld [vmem:[%s1 + $0x1c8] sm:$0xff]
  %v388 = vld [vmem:[%s1 + $0x1d0] sm:$0xff]
  %v389 = vld [vmem:[%s1 + $0x1d8] sm:$0xff]
  %v390 = vld [vmem:[%s1 + $0x1e0] sm:$0xff]
  %v391 = vld [vmem:[%s1 + $0x1e8] sm:$0xff]
  %v392 = vld [vmem:[%s1 + $0x1f0] sm:$0xff]
  %v393 = vld [vmem:[%s1 + $0x1f8] sm:$0xff]
  %v394 = vld [vmem:[%s1 + $0x200] sm:$0xff]
  %v395 = vld [vmem:[%s1 + $0x208] sm:$0xff]
  %v396 = vld [vmem:[%s1 + $0x210] sm:$0xff]
  %v397 = vld [vmem:[%s1 + $0x218] sm:$0xff]
  %v398 = vld [vmem:[%s1 + $0x220] sm:$0xff]
  %v399 = vld [vmem:[%s1 + $0x228] sm:$0xff]
  %v400 = vld [vmem:[%s1 + $0x230] sm:$0xff]
  %v401 = vld [vmem:[%s1 + $0x238] sm:$0xff]
  %v403 = vsel %vm94, %v329, 0
  %405 = vmatprep.subr.mxu0 0.0
  %406 = vmatpush1.msra.mxu0 %v330
  %407 = vmatprep.subr.mxu0 0.0
  %408 = vmatpush1.msra.mxu0 %v331
  %409 = vmatprep.subr.mxu0 0.0
  %410 = vmatpush1.msra.mxu0 %v332
  %411 = vmatprep.subr.mxu0 0.0
  %412 = vmatpush1.msra.mxu0 %v333
  %413 = vmatprep.subr.mxu0 0.0
  %414 = vmatpush1.msra.mxu0 %v334
  %415 = vmatprep.subr.mxu0 0.0
  %416 = vmatpush1.msra.mxu0 %v335
  %417 = vmatprep.subr.mxu0 0.0
  %418 = vmatpush1.msra.mxu0 %v336
  %419 = vmatprep.subr.mxu0 0.0
  %420 = vmatpush1.msra.mxu0 %v337
  %421 = vmatprep.subr.mxu0 0.0
  %422 = vmatpush1.msra.mxu0 %v338
  %423 = vmatprep.subr.mxu0 0.0
  %424 = vmatpush1.msra.mxu0 %v339
  %425 = vmatprep.subr.mxu0 0.0
  %426 = vmatpush1.msra.mxu0 %v340
  %427 = vmatprep.subr.mxu0 0.0
  %428 = vmatpush1.msra.mxu0 %v341
  %429 = vmatprep.subr.mxu0 0.0
  %430 = vmatpush1.msra.mxu0 %v342
  %431 = vmatprep.subr.mxu0 0.0
  %432 = vmatpush1.msra.mxu0 %v343
  %433 = vmatprep.subr.mxu0 0.0
  %434 = vmatpush1.msra.mxu0 %v344
  %435 = vmatprep.subr.mxu0 0.0
  %436 = vmatpush1.msra.mxu0 %v345
  %437 = vmatprep.subr.mxu0 0.0
  %438 = vmatpush1.msra.mxu0 %v346
  %439 = vmatprep.subr.mxu0 0.0
  %440 = vmatpush1.msra.mxu0 %v347
  %441 = vmatprep.subr.mxu0 0.0
  %442 = vmatpush1.msra.mxu0 %v348
  %443 = vmatprep.subr.mxu0 0.0
  %444 = vmatpush1.msra.mxu0 %v349
  %445 = vmatprep.subr.mxu0 0.0
  %446 = vmatpush1.msra.mxu0 %v350
  %447 = vmatprep.subr.mxu0 0.0
  %448 = vmatpush1.msra.mxu0 %v351
  %449 = vmatprep.subr.mxu0 0.0
  %450 = vmatpush1.msra.mxu0 %v352
  %451 = vmatprep.subr.mxu0 0.0
  %452 = vmatpush1.msra.mxu0 %v353
  %453 = vmatprep.subr.mxu0 0.0
  %454 = vmatpush1.msra.mxu0 %v354
  %455 = vmatprep.subr.mxu0 0.0
  %456 = vmatpush1.msra.mxu0 %v355
  %457 = vmatprep.subr.mxu0 0.0
  %458 = vmatpush1.msra.mxu0 %v356
  %459 = vmatprep.subr.mxu0 0.0
  %460 = vmatpush1.msra.mxu0 %v357
  %461 = vmatprep.subr.mxu0 0.0
  %462 = vmatpush1.msra.mxu0 %v358
  %463 = vmatprep.subr.mxu0 0.0
  %464 = vmatpush1.msra.mxu0 %v359
  %465 = vmatprep.subr.mxu0 0.0
  %466 = vmatpush1.msra.mxu0 %v360
  %467 = vmatprep.subr.mxu0 0.0
  %468 = vmatpush1.msra.mxu0 %v361
  %469 = vmatprep.mubr.f32.mxu0 %v326
  %470 = vmatmul.mubr.f32.gmra.mrb[0].mxu0 %v325
  %v471 = vpop.f32.mrb[0].mxu0
  %v472 = vadd.f32 0.0, %v471
  %v473 = vpop.f32.mrb[0].mxu0
  %474 = vdwg.mxu0
  %475 = vmatprep.subr.mxu0 0.0
  %476 = vmatpush1.msra.mxu0 %v362
  %477 = vmatprep.subr.mxu0 0.0
  %478 = vmatpush1.msra.mxu0 %v363
  %479 = vmatprep.subr.mxu0 0.0
  %480 = vmatpush1.msra.mxu0 %v364
  %481 = vmatprep.subr.mxu0 0.0
  %482 = vmatpush1.msra.mxu0 %v365
  %483 = vmatprep.subr.mxu0 0.0
  %484 = vmatpush1.msra.mxu0 %v366
  %485 = vmatprep.subr.mxu0 0.0
  %486 = vmatpush1.msra.mxu0 %v367
  %487 = vmatprep.subr.mxu0 0.0
  %488 = vmatpush1.msra.mxu0 %v368
  %489 = vmatprep.subr.mxu0 0.0
  %490 = vmatpush1.msra.mxu0 %v369
  %491 = vmatprep.subr.mxu0 0.0
  %492 = vmatpush1.msra.mxu0 %v370
  %493 = vmatprep.subr.mxu0 0.0
  %494 = vmatpush1.msra.mxu0 %v371
  %495 = vmatprep.subr.mxu0 0.0
  %496 = vmatpush1.msra.mxu0 %v372
  %497 = vmatprep.subr.mxu0 0.0
  %498 = vmatpush1.msra.mxu0 %v373
  %499 = vmatprep.subr.mxu0 0.0
  %500 = vmatpush1.msra.mxu0 %v374
  %501 = vmatprep.subr.mxu0 0.0
  %502 = vmatpush1.msra.mxu0 %v375
  %503 = vmatprep.subr.mxu0 0.0
  %504 = vmatpush1.msra.mxu0 %v376
  %505 = vmatprep.subr.mxu0 0.0
  %506 = vmatpush1.msra.mxu0 %v377
  %507 = vmatprep.subr.mxu0 0.0
  %508 = vmatpush1.msra.mxu0 %v378
  %509 = vmatprep.subr.mxu0 0.0
  %510 = vmatpush1.msra.mxu0 %v379
  %511 = vmatprep.subr.mxu0 0.0
  %512 = vmatpush1.msra.mxu0 %v380
  %513 = vmatprep.subr.mxu0 0.0
  %514 = vmatpush1.msra.mxu0 %v381
  %515 = vmatprep.subr.mxu0 0.0
  %516 = vmatpush1.msra.mxu0 %v382
  %517 = vmatprep.subr.mxu0 0.0
  %518 = vmatpush1.msra.mxu0 %v383
  %519 = vmatprep.subr.mxu0 0.0
  %520 = vmatpush1.msra.mxu0 %v384
  %521 = vmatprep.subr.mxu0 0.0
  %522 = vmatpush1.msra.mxu0 %v385
  %523 = vmatprep.subr.mxu0 0.0
  %524 = vmatpush1.msra.mxu0 %v386
  %525 = vmatprep.subr.mxu0 0.0
  %526 = vmatpush1.msra.mxu0 %v387
  %527 = vmatprep.subr.mxu0 0.0
  %528 = vmatpush1.msra.mxu0 %v388
  %529 = vmatprep.subr.mxu0 0.0
  %530 = vmatpush1.msra.mxu0 %v389
  %531 = vmatprep.subr.mxu0 0.0
  %532 = vmatpush1.msra.mxu0 %v390
  %533 = vmatprep.subr.mxu0 0.0
  %534 = vmatpush1.msra.mxu0 %v391
  %535 = vmatprep.subr.mxu0 0.0
  %536 = vmatpush1.msra.mxu0 %v392
  %537 = vmatprep.subr.mxu0 0.0
  %538 = vmatpush1.msra.mxu0 %v393
  %539 = vmatprep.mubr.f32.mxu0 %v328
  %540 = vmatmul.mubr.f32.gmra.mrb[0].mxu0 %v327
  %v541 = vpop.f32.mrb[0].mxu0
  %v542 = vadd.f32 %v472, %v541
  %v543 = vpop.f32.mrb[0].mxu0
  %544 = vdwg.mxu0
  %545 = vmatprep.subr.mxu0 0.0
  %546 = vmatpush1.msra.mxu0 %v394
  %547 = vmatprep.subr.mxu0 0.0
  %548 = vmatpush1.msra.mxu0 %v395
  %549 = vmatprep.subr.mxu0 0.0
  %550 = vmatpush1.msra.mxu0 %v396
  %551 = vmatprep.subr.mxu0 0.0
  %552 = vmatpush1.msra.mxu0 %v397
  %553 = vmatprep.subr.mxu0 0.0
  %554 = vmatpush1.msra.mxu0 %v398
  %555 = vmatprep.subr.mxu0 0.0
  %556 = vmatpush1.msra.mxu0 %v399
  %557 = vmatprep.subr.mxu0 0.0
  %558 = vmatpush1.msra.mxu0 %v400
  %559 = vmatprep.subr.mxu0 0.0
  %560 = vmatpush1.msra.mxu0 %v401
  %561 = vmatprep.subr.mxu0 0.0
  %562 = vmatpush1.msra.mxu0 0.0
  %563 = vmatprep.subr.mxu0 0.0
  %564 = vmatpush1.msra.mxu0 0.0
  %565 = vmatprep.subr.mxu0 0.0
  %566 = vmatpush1.msra.mxu0 0.0
  %567 = vmatprep.subr.mxu0 0.0
  %568 = vmatpush1.msra.mxu0 0.0
  %569 = vmatprep.subr.mxu0 0.0
  %570 = vmatpush1.msra.mxu0 0.0
  %571 = vmatprep.subr.mxu0 0.0
  %572 = vmatpush1.msra.mxu0 0.0
  %573 = vmatprep.subr.mxu0 0.0
  %574 = vmatpush1.msra.mxu0 0.0
  %575 = vmatprep.subr.mxu0 0.0
  %576 = vmatpush1.msra.mxu0 0.0
  %577 = vmatprep.subr.mxu0 0.0
  %578 = vmatpush1.msra.mxu0 0.0
  %579 = vmatprep.subr.mxu0 0.0
  %580 = vmatpush1.msra.mxu0 0.0
  %581 = vmatprep.subr.mxu0 0.0
  %582 = vmatpush1.msra.mxu0 0.0
  %583 = vmatprep.subr.mxu0 0.0
  %584 = vmatpush1.msra.mxu0 0.0
  %585 = vmatprep.subr.mxu0 0.0
  %586 = vmatpush1.msra.mxu0 0.0
  %587 = vmatprep.subr.mxu0 0.0
  %588 = vmatpush1.msra.mxu0 0.0
  %589 = vmatprep.subr.mxu0 0.0
  %590 = vmatpush1.msra.mxu0 0.0
  %591 = vmatprep.subr.mxu0 0.0
  %592 = vmatpush1.msra.mxu0 0.0
  %593 = vmatprep.subr.mxu0 0.0
  %594 = vmatpush1.msra.mxu0 0.0
  %595 = vmatprep.subr.mxu0 0.0
  %596 = vmatpush1.msra.mxu0 0.0
  %597 = vmatprep.subr.mxu0 0.0
  %598 = vmatpush1.msra.mxu0 0.0
  %599 = vmatprep.subr.mxu0 0.0
  %600 = vmatpush1.msra.mxu0 0.0
  %601 = vmatprep.subr.mxu0 0.0
  %602 = vmatpush1.msra.mxu0 0.0
  %603 = vmatprep.subr.mxu0 0.0
  %604 = vmatpush1.msra.mxu0 0.0
  %605 = vmatprep.subr.mxu0 0.0
  %606 = vmatpush1.msra.mxu0 0.0
  %607 = vmatprep.subr.mxu0 0.0
  %608 = vmatpush1.msra.mxu0 0.0
  %609 = vmatprep.mubr.f32.mxu0 0.0
  %610 = vmatmul.mubr.f32.gmra.mrb[0].mxu0 %v403
  %v611 = vpop.f32.mrb[0].mxu0
  %v612 = vadd.f32 %v542, %v611
  %v613 = vpop.f32.mrb[0].mxu0
  %614 = vdwg.mxu0
  %s615 = scalar_lea.vmem [#allocation2], 8
  %616 = vst [vmem:[%s615] sm:$0xff] %v612
  %v617 = vrot.slane %v612, 4
  %v618 = vadd.f32 %v612, %v617
  %v619 = vrot.slane %v618, 2
  %v620 = vadd.f32 %v618, %v619
  %v621 = vrot.slane %v620, 1
  %v622 = vadd.f32 %v620, %v621
  %v623 = vadd.f32 %v315, %v622
  %v624 = vmul.f32 %v612, %v612
  %v625 = vrot.slane %v624, 4
  %v626 = vadd.f32 %v624, %v625
  %v627 = vrot.slane %v626, 2
  %v628 = vadd.f32 %v626, %v627
  %v629 = vrot.slane %v628, 1
  %v630 = vadd.f32 %v628, %v629
  %v631 = vadd.f32 %v323, %v630
  %s632 = scalar_lea.vmem %s0, 80
  %v633 = vld [vmem:[%s632] sm:$0xff]
  %v634 = vld [vmem:[%s632 + $0x8] sm:$0xff]
  %v635 = vld [vmem:[%s632 + $0x10] sm:$0xff]
  %v636 = vld [vmem:[%s632 + $0x18] sm:$0xff]
  %v637 = vld [vmem:[%s632 + $0x20] sm:$0xff]
  %v638 = vld [vmem:[%s1] sm:$0xff]
  %v639 = vld [vmem:[%s1 + $0x8] sm:$0xff]
  %v640 = vld [vmem:[%s1 + $0x10] sm:$0xff]
  %v641 = vld [vmem:[%s1 + $0x18] sm:$0xff]
  %v642 = vld [vmem:[%s1 + $0x20] sm:$0xff]
  %v643 = vld [vmem:[%s1 + $0x28] sm:$0xff]
  %v644 = vld [vmem:[%s1 + $0x30] sm:$0xff]
  %v645 = vld [vmem:[%s1 + $0x38] sm:$0xff]
  %v646 = vld [vmem:[%s1 + $0x40] sm:$0xff]
  %v647 = vld [vmem:[%s1 + $0x48] sm:$0xff]
  %v648 = vld [vmem:[%s1 + $0x50] sm:$0xff]
  %v649 = vld [vmem:[%s1 + $0x58] sm:$0xff]
  %v650 = vld [vmem:[%s1 + $0x60] sm:$0xff]
  %v651 = vld [vmem:[%s1 + $0x68] sm:$0xff]
  %v652 = vld [vmem:[%s1 + $0x70] sm:$0xff]
  %v653 = vld [vmem:[%s1 + $0x78] sm:$0xff]
  %v654 = vld [vmem:[%s1 + $0x80] sm:$0xff]
  %v655 = vld [vmem:[%s1 + $0x88] sm:$0xff]
  %v656 = vld [vmem:[%s1 + $0x90] sm:$0xff]
  %v657 = vld [vmem:[%s1 + $0x98] sm:$0xff]
  %v658 = vld [vmem:[%s1 + $0xa0] sm:$0xff]
  %v659 = vld [vmem:[%s1 + $0xa8] sm:$0xff]
  %v660 = vld [vmem:[%s1 + $0xb0] sm:$0xff]
  %v661 = vld [vmem:[%s1 + $0xb8] sm:$0xff]
  %v662 = vld [vmem:[%s1 + $0xc0] sm:$0xff]
  %v663 = vld [vmem:[%s1 + $0xc8] sm:$0xff]
  %v664 = vld [vmem:[%s1 + $0xd0] sm:$0xff]
  %v665 = vld [vmem:[%s1 + $0xd8] sm:$0xff]
  %v666 = vld [vmem:[%s1 + $0xe0] sm:$0xff]
  %v667 = vld [vmem:[%s1 + $0xe8] sm:$0xff]
  %v668 = vld [vmem:[%s1 + $0xf0] sm:$0xff]
  %v669 = vld [vmem:[%s1 + $0xf8] sm:$0xff]
  %v670 = vld [vmem:[%s1 + $0x100] sm:$0xff]
  %v671 = vld [vmem:[%s1 + $0x108] sm:$0xff]
  %v672 = vld [vmem:[%s1 + $0x110] sm:$0xff]
  %v673 = vld [vmem:[%s1 + $0x118] sm:$0xff]
  %v674 = vld [vmem:[%s1 + $0x120] sm:$0xff]
  %v675 = vld [vmem:[%s1 + $0x128] sm:$0xff]
  %v676 = vld [vmem:[%s1 + $0x130] sm:$0xff]
  %v677 = vld [vmem:[%s1 + $0x138] sm:$0xff]
  %v678 = vld [vmem:[%s1 + $0x140] sm:$0xff]
  %v679 = vld [vmem:[%s1 + $0x148] sm:$0xff]
  %v680 = vld [vmem:[%s1 + $0x150] sm:$0xff]
  %v681 = vld [vmem:[%s1 + $0x158] sm:$0xff]
  %v682 = vld [vmem:[%s1 + $0x160] sm:$0xff]
  %v683 = vld [vmem:[%s1 + $0x168] sm:$0xff]
  %v684 = vld [vmem:[%s1 + $0x170] sm:$0xff]
  %v685 = vld [vmem:[%s1 + $0x178] sm:$0xff]
  %v686 = vld [vmem:[%s1 + $0x180] sm:$0xff]
  %v687 = vld [vmem:[%s1 + $0x188] sm:$0xff]
  %v688 = vld [vmem:[%s1 + $0x190] sm:$0xff]
  %v689 = vld [vmem:[%s1 + $0x198] sm:$0xff]
  %v690 = vld [vmem:[%s1 + $0x1a0] sm:$0xff]
  %v691 = vld [vmem:[%s1 + $0x1a8] sm:$0xff]
  %v692 = vld [vmem:[%s1 + $0x1b0] sm:$0xff]
  %v693 = vld [vmem:[%s1 + $0x1b8] sm:$0xff]
  %v694 = vld [vmem:[%s1 + $0x1c0] sm:$0xff]
  %v695 = vld [vmem:[%s1 + $0x1c8] sm:$0xff]
  %v696 = vld [vmem:[%s1 + $0x1d0] sm:$0xff]
  %v697 = vld [vmem:[%s1 + $0x1d8] sm:$0xff]
  %v698 = vld [vmem:[%s1 + $0x1e0] sm:$0xff]
  %v699 = vld [vmem:[%s1 + $0x1e8] sm:$0xff]
  %v700 = vld [vmem:[%s1 + $0x1f0] sm:$0xff]
  %v701 = vld [vmem:[%s1 + $0x1f8] sm:$0xff]
  %v702 = vld [vmem:[%s1 + $0x200] sm:$0xff]
  %v703 = vld [vmem:[%s1 + $0x208] sm:$0xff]
  %v704 = vld [vmem:[%s1 + $0x210] sm:$0xff]
  %v705 = vld [vmem:[%s1 + $0x218] sm:$0xff]
  %v706 = vld [vmem:[%s1 + $0x220] sm:$0xff]
  %v707 = vld [vmem:[%s1 + $0x228] sm:$0xff]
  %v708 = vld [vmem:[%s1 + $0x230] sm:$0xff]
  %v709 = vld [vmem:[%s1 + $0x238] sm:$0xff]
  %v711 = vsel %vm94, %v637, 0
  %713 = vmatprep.subr.mxu0 0.0
  %714 = vmatpush1.msra.mxu0 %v638
  %715 = vmatprep.subr.mxu0 0.0
  %716 = vmatpush1.msra.mxu0 %v639
  %717 = vmatprep.subr.mxu0 0.0
  %718 = vmatpush1.msra.mxu0 %v640
  %719 = vmatprep.subr.mxu0 0.0
  %720 = vmatpush1.msra.mxu0 %v641
  %721 = vmatprep.subr.mxu0 0.0
  %722 = vmatpush1.msra.mxu0 %v642
  %723 = vmatprep.subr.mxu0 0.0
  %724 = vmatpush1.msra.mxu0 %v643
  %725 = vmatprep.subr.mxu0 0.0
  %726 = vmatpush1.msra.mxu0 %v644
  %727 = vmatprep.subr.mxu0 0.0
  %728 = vmatpush1.msra.mxu0 %v645
  %729 = vmatprep.subr.mxu0 0.0
  %730 = vmatpush1.msra.mxu0 %v646
  %731 = vmatprep.subr.mxu0 0.0
  %732 = vmatpush1.msra.mxu0 %v647
  %733 = vmatprep.subr.mxu0 0.0
  %734 = vmatpush1.msra.mxu0 %v648
  %735 = vmatprep.subr.mxu0 0.0
  %736 = vmatpush1.msra.mxu0 %v649
  %737 = vmatprep.subr.mxu0 0.0
  %738 = vmatpush1.msra.mxu0 %v650
  %739 = vmatprep.subr.mxu0 0.0
  %740 = vmatpush1.msra.mxu0 %v651
  %741 = vmatprep.subr.mxu0 0.0
  %742 = vmatpush1.msra.mxu0 %v652
  %743 = vmatprep.subr.mxu0 0.0
  %744 = vmatpush1.msra.mxu0 %v653
  %745 = vmatprep.subr.mxu0 0.0
  %746 = vmatpush1.msra.mxu0 %v654
  %747 = vmatprep.subr.mxu0 0.0
  %748 = vmatpush1.msra.mxu0 %v655
  %749 = vmatprep.subr.mxu0 0.0
  %750 = vmatpush1.msra.mxu0 %v656
  %751 = vmatprep.subr.mxu0 0.0
  %752 = vmatpush1.msra.mxu0 %v657
  %753 = vmatprep.subr.mxu0 0.0
  %754 = vmatpush1.msra.mxu0 %v658
  %755 = vmatprep.subr.mxu0 0.0
  %756 = vmatpush1.msra.mxu0 %v659
  %757 = vmatprep.subr.mxu0 0.0
  %758 = vmatpush1.msra.mxu0 %v660
  %759 = vmatprep.subr.mxu0 0.0
  %760 = vmatpush1.msra.mxu0 %v661
  %761 = vmatprep.subr.mxu0 0.0
  %762 = vmatpush1.msra.mxu0 %v662
  %763 = vmatprep.subr.mxu0 0.0
  %764 = vmatpush1.msra.mxu0 %v663
  %765 = vmatprep.subr.mxu0 0.0
  %766 = vmatpush1.msra.mxu0 %v664
  %767 = vmatprep.subr.mxu0 0.0
  %768 = vmatpush1.msra.mxu0 %v665
  %769 = vmatprep.subr.mxu0 0.0
  %770 = vmatpush1.msra.mxu0 %v666
  %771 = vmatprep.subr.mxu0 0.0
  %772 = vmatpush1.msra.mxu0 %v667
  %773 = vmatprep.subr.mxu0 0.0
  %774 = vmatpush1.msra.mxu0 %v668
  %775 = vmatprep.subr.mxu0 0.0
  %776 = vmatpush1.msra.mxu0 %v669
  %777 = vmatprep.mubr.f32.mxu0 %v634
  %778 = vmatmul.mubr.f32.gmra.mrb[0].mxu0 %v633
  %v779 = vpop.f32.mrb[0].mxu0
  %v780 = vadd.f32 0.0, %v779
  %v781 = vpop.f32.mrb[0].mxu0
  %782 = vdwg.mxu0
  %783 = vmatprep.subr.mxu0 0.0
  %784 = vmatpush1.msra.mxu0 %v670
  %785 = vmatprep.subr.mxu0 0.0
  %786 = vmatpush1.msra.mxu0 %v671
  %787 = vmatprep.subr.mxu0 0.0
  %788 = vmatpush1.msra.mxu0 %v672
  %789 = vmatprep.subr.mxu0 0.0
  %790 = vmatpush1.msra.mxu0 %v673
  %791 = vmatprep.subr.mxu0 0.0
  %792 = vmatpush1.msra.mxu0 %v674
  %793 = vmatprep.subr.mxu0 0.0
  %794 = vmatpush1.msra.mxu0 %v675
  %795 = vmatprep.subr.mxu0 0.0
  %796 = vmatpush1.msra.mxu0 %v676
  %797 = vmatprep.subr.mxu0 0.0
  %798 = vmatpush1.msra.mxu0 %v677
  %799 = vmatprep.subr.mxu0 0.0
  %800 = vmatpush1.msra.mxu0 %v678
  %801 = vmatprep.subr.mxu0 0.0
  %802 = vmatpush1.msra.mxu0 %v679
  %803 = vmatprep.subr.mxu0 0.0
  %804 = vmatpush1.msra.mxu0 %v680
  %805 = vmatprep.subr.mxu0 0.0
  %806 = vmatpush1.msra.mxu0 %v681
  %807 = vmatprep.subr.mxu0 0.0
  %808 = vmatpush1.msra.mxu0 %v682
  %809 = vmatprep.subr.mxu0 0.0
  %810 = vmatpush1.msra.mxu0 %v683
  %811 = vmatprep.subr.mxu0 0.0
  %812 = vmatpush1.msra.mxu0 %v684
  %813 = vmatprep.subr.mxu0 0.0
  %814 = vmatpush1.msra.mxu0 %v685
  %815 = vmatprep.subr.mxu0 0.0
  %816 = vmatpush1.msra.mxu0 %v686
  %817 = vmatprep.subr.mxu0 0.0
  %818 = vmatpush1.msra.mxu0 %v687
  %819 = vmatprep.subr.mxu0 0.0
  %820 = vmatpush1.msra.mxu0 %v688
  %821 = vmatprep.subr.mxu0 0.0
  %822 = vmatpush1.msra.mxu0 %v689
  %823 = vmatprep.subr.mxu0 0.0
  %824 = vmatpush1.msra.mxu0 %v690
  %825 = vmatprep.subr.mxu0 0.0
  %826 = vmatpush1.msra.mxu0 %v691
  %827 = vmatprep.subr.mxu0 0.0
  %828 = vmatpush1.msra.mxu0 %v692
  %829 = vmatprep.subr.mxu0 0.0
  %830 = vmatpush1.msra.mxu0 %v693
  %831 = vmatprep.subr.mxu0 0.0
  %832 = vmatpush1.msra.mxu0 %v694
  %833 = vmatprep.subr.mxu0 0.0
  %834 = vmatpush1.msra.mxu0 %v695
  %835 = vmatprep.subr.mxu0 0.0
  %836 = vmatpush1.msra.mxu0 %v696
  %837 = vmatprep.subr.mxu0 0.0
  %838 = vmatpush1.msra.mxu0 %v697
  %839 = vmatprep.subr.mxu0 0.0
  %840 = vmatpush1.msra.mxu0 %v698
  %841 = vmatprep.subr.mxu0 0.0
  %842 = vmatpush1.msra.mxu0 %v699
  %843 = vmatprep.subr.mxu0 0.0
  %844 = vmatpush1.msra.mxu0 %v700
  %845 = vmatprep.subr.mxu0 0.0
  %846 = vmatpush1.msra.mxu0 %v701
  %847 = vmatprep.mubr.f32.mxu0 %v636
  %848 = vmatmul.mubr.f32.gmra.mrb[0].mxu0 %v635
  %v849 = vpop.f32.mrb[0].mxu0
  %v850 = vadd.f32 %v780, %v849
  %v851 = vpop.f32.mrb[0].mxu0
  %852 = vdwg.mxu0
  %853 = vmatprep.subr.mxu0 0.0
  %854 = vmatpush1.msra.mxu0 %v702
  %855 = vmatprep.subr.mxu0 0.0
  %856 = vmatpush1.msra.mxu0 %v703
  %857 = vmatprep.subr.mxu0 0.0
  %858 = vmatpush1.msra.mxu0 %v704
  %859 = vmatprep.subr.mxu0 0.0
  %860 = vmatpush1.msra.mxu0 %v705
  %861 = vmatprep.subr.mxu0 0.0
  %862 = vmatpush1.msra.mxu0 %v706
  %863 = vmatprep.subr.mxu0 0.0
  %864 = vmatpush1.msra.mxu0 %v707
  %865 = vmatprep.subr.mxu0 0.0
  %866 = vmatpush1.msra.mxu0 %v708
  %867 = vmatprep.subr.mxu0 0.0
  %868 = vmatpush1.msra.mxu0 %v709
  %869 = vmatprep.subr.mxu0 0.0
  %870 = vmatpush1.msra.mxu0 0.0
  %871 = vmatprep.subr.mxu0 0.0
  %872 = vmatpush1.msra.mxu0 0.0
  %873 = vmatprep.subr.mxu0 0.0
  %874 = vmatpush1.msra.mxu0 0.0
  %875 = vmatprep.subr.mxu0 0.0
  %876 = vmatpush1.msra.mxu0 0.0
  %877 = vmatprep.subr.mxu0 0.0
  %878 = vmatpush1.msra.mxu0 0.0
  %879 = vmatprep.subr.mxu0 0.0
  %880 = vmatpush1.msra.mxu0 0.0
  %881 = vmatprep.subr.mxu0 0.0
  %882 = vmatpush1.msra.mxu0 0.0
  %883 = vmatprep.subr.mxu0 0.0
  %884 = vmatpush1.msra.mxu0 0.0
  %885 = vmatprep.subr.mxu0 0.0
  %886 = vmatpush1.msra.mxu0 0.0
  %887 = vmatprep.subr.mxu0 0.0
  %888 = vmatpush1.msra.mxu0 0.0
  %889 = vmatprep.subr.mxu0 0.0
  %890 = vmatpush1.msra.mxu0 0.0
  %891 = vmatprep.subr.mxu0 0.0
  %892 = vmatpush1.msra.mxu0 0.0
  %893 = vmatprep.subr.mxu0 0.0
  %894 = vmatpush1.msra.mxu0 0.0
  %895 = vmatprep.subr.mxu0 0.0
  %896 = vmatpush1.msra.mxu0 0.0
  %897 = vmatprep.subr.mxu0 0.0
  %898 = vmatpush1.msra.mxu0 0.0
  %899 = vmatprep.subr.mxu0 0.0
  %900 = vmatpush1.msra.mxu0 0.0
  %901 = vmatprep.subr.mxu0 0.0
  %902 = vmatpush1.msra.mxu0 0.0
  %903 = vmatprep.subr.mxu0 0.0
  %904 = vmatpush1.msra.mxu0 0.0
  %905 = vmatprep.subr.mxu0 0.0
  %906 = vmatpush1.msra.mxu0 0.0
  %907 = vmatprep.subr.mxu0 0.0
  %908 = vmatpush1.msra.mxu0 0.0
  %909 = vmatprep.subr.mxu0 0.0
  %910 = vmatpush1.msra.mxu0 0.0
  %911 = vmatprep.subr.mxu0 0.0
  %912 = vmatpush1.msra.mxu0 0.0
  %913 = vmatprep.subr.mxu0 0.0
  %914 = vmatpush1.msra.mxu0 0.0
  %915 = vmatprep.subr.mxu0 0.0
  %916 = vmatpush1.msra.mxu0 0.0
  %917 = vmatprep.mubr.f32.mxu0 0.0
  %918 = vmatmul.mubr.f32.gmra.mrb[0].mxu0 %v711
  %v919 = vpop.f32.mrb[0].mxu0
  %v920 = vadd.f32 %v850, %v919
  %v921 = vpop.f32.mrb[0].mxu0
  %922 = vdwg.mxu0
  %s923 = scalar_lea.vmem [#allocation2], 16
  %924 = vst [vmem:[%s923] sm:$0xff] %v920
  %v925 = vrot.slane %v920, 4
  %v926 = vadd.f32 %v920, %v925
  %v927 = vrot.slane %v926, 2
  %v928 = vadd.f32 %v926, %v927
  %v929 = vrot.slane %v928, 1
  %v930 = vadd.f32 %v928, %v929
  %v931 = vadd.f32 %v623, %v930
  %v932 = vmul.f32 %v920, %v920
  %v933 = vrot.slane %v932, 4
  %v934 = vadd.f32 %v932, %v933
  %v935 = vrot.slane %v934, 2
  %v936 = vadd.f32 %v934, %v935
  %v937 = vrot.slane %v936, 1
  %v938 = vadd.f32 %v936, %v937
  %v939 = vadd.f32 %v631, %v938
  %s940 = scalar_lea.vmem %s0, 120
  %v941 = vld [vmem:[%s940] sm:$0xff]
  %v942 = vld [vmem:[%s940 + $0x8] sm:$0xff]
  %v943 = vld [vmem:[%s940 + $0x10] sm:$0xff]
  %v944 = vld [vmem:[%s940 + $0x18] sm:$0xff]
  %v945 = vld [vmem:[%s940 + $0x20] sm:$0xff]
  %v946 = vld [vmem:[%s1] sm:$0xff]
  %v947 = vld [vmem:[%s1 + $0x8] sm:$0xff]
  %v948 = vld [vmem:[%s1 + $0x10] sm:$0xff]
  %v949 = vld [vmem:[%s1 + $0x18] sm:$0xff]
  %v950 = vld [vmem:[%s1 + $0x20] sm:$0xff]
  %v951 = vld [vmem:[%s1 + $0x28] sm:$0xff]
  %v952 = vld [vmem:[%s1 + $0x30] sm:$0xff]
  %v953 = vld [vmem:[%s1 + $0x38] sm:$0xff]
  %v954 = vld [vmem:[%s1 + $0x40] sm:$0xff]
  %v955 = vld [vmem:[%s1 + $0x48] sm:$0xff]
  %v956 = vld [vmem:[%s1 + $0x50] sm:$0xff]
  %v957 = vld [vmem:[%s1 + $0x58] sm:$0xff]
  %v958 = vld [vmem:[%s1 + $0x60] sm:$0xff]
  %v959 = vld [vmem:[%s1 + $0x68] sm:$0xff]
  %v960 = vld [vmem:[%s1 + $0x70] sm:$0xff]
  %v961 = vld [vmem:[%s1 + $0x78] sm:$0xff]
  %v962 = vld [vmem:[%s1 + $0x80] sm:$0xff]
  %v963 = vld [vmem:[%s1 + $0x88] sm:$0xff]
  %v964 = vld [vmem:[%s1 + $0x90] sm:$0xff]
  %v965 = vld [vmem:[%s1 + $0x98] sm:$0xff]
  %v966 = vld [vmem:[%s1 + $0xa0] sm:$0xff]
  %v967 = vld [vmem:[%s1 + $0xa8] sm:$0xff]
  %v968 = vld [vmem:[%s1 + $0xb0] sm:$0xff]
  %v969 = vld [vmem:[%s1 + $0xb8] sm:$0xff]
  %v970 = vld [vmem:[%s1 + $0xc0] sm:$0xff]
  %v971 = vld [vmem:[%s1 + $0xc8] sm:$0xff]
  %v972 = vld [vmem:[%s1 + $0xd0] sm:$0xff]
  %v973 = vld [vmem:[%s1 + $0xd8] sm:$0xff]
  %v974 = vld [vmem:[%s1 + $0xe0] sm:$0xff]
  %v975 = vld [vmem:[%s1 + $0xe8] sm:$0xff]
  %v976 = vld [vmem:[%s1 + $0xf0] sm:$0xff]
  %v977 = vld [vmem:[%s1 + $0xf8] sm:$0xff]
  %v978 = vld [vmem:[%s1 + $0x100] sm:$0xff]
  %v979 = vld [vmem:[%s1 + $0x108] sm:$0xff]
  %v980 = vld [vmem:[%s1 + $0x110] sm:$0xff]
  %v981 = vld [vmem:[%s1 + $0x118] sm:$0xff]
  %v982 = vld [vmem:[%s1 + $0x120] sm:$0xff]
  %v983 = vld [vmem:[%s1 + $0x128] sm:$0xff]
  %v984 = vld [vmem:[%s1 + $0x130] sm:$0xff]
  %v985 = vld [vmem:[%s1 + $0x138] sm:$0xff]
  %v986 = vld [vmem:[%s1 + $0x140] sm:$0xff]
  %v987 = vld [vmem:[%s1 + $0x148] sm:$0xff]
  %v988 = vld [vmem:[%s1 + $0x150] sm:$0xff]
  %v989 = vld [vmem:[%s1 + $0x158] sm:$0xff]
  %v990 = vld [vmem:[%s1 + $0x160] sm:$0xff]
  %v991 = vld [vmem:[%s1 + $0x168] sm:$0xff]
  %v992 = vld [vmem:[%s1 + $0x170] sm:$0xff]
  %v993 = vld [vmem:[%s1 + $0x178] sm:$0xff]
  %v994 = vld [vmem:[%s1 + $0x180] sm:$0xff]
  %v995 = vld [vmem:[%s1 + $0x188] sm:$0xff]
  %v996 = vld [vmem:[%s1 + $0x190] sm:$0xff]
  %v997 = vld [vmem:[%s1 + $0x198] sm:$0xff]
  %v998 = vld [vmem:[%s1 + $0x1a0] sm:$0xff]
  %v999 = vld [vmem:[%s1 + $0x1a8] sm:$0xff]
  %v1000 = vld [vmem:[%s1 + $0x1b0] sm:$0xff]
  %v1001 = vld [vmem:[%s1 + $0x1b8] sm:$0xff]
  %v1002 = vld [vmem:[%s1 + $0x1c0] sm:$0xff]
  %v1003 = vld [vmem:[%s1 + $0x1c8] sm:$0xff]
  %v1004 = vld [vmem:[%s1 + $0x1d0] sm:$0xff]
  %v1005 = vld [vmem:[%s1 + $0x1d8] sm:$0xff]
  %v1006 = vld [vmem:[%s1 + $0x1e0] sm:$0xff]
  %v1007 = vld [vmem:[%s1 + $0x1e8] sm:$0xff]
  %v1008 = vld [vmem:[%s1 + $0x1f0] sm:$0xff]
  %v1009 = vld [vmem:[%s1 + $0x1f8] sm:$0xff]
  %v1010 = vld [vmem:[%s1 + $0x200] sm:$0xff]
  %v1011 = vld [vmem:[%s1 + $0x208] sm:$0xff]
  %v1012 = vld [vmem:[%s1 + $0x210] sm:$0xff]
  %v1013 = vld [vmem:[%s1 + $0x218] sm:$0xff]
  %v1014 = vld [vmem:[%s1 + $0x220] sm:$0xff]
  %v1015 = vld [vmem:[%s1 + $0x228] sm:$0xff]
  %v1016 = vld [vmem:[%s1 + $0x230] sm:$0xff]
  %v1017 = vld [vmem:[%s1 + $0x238] sm:$0xff]
  %v1019 = vsel %vm94, %v945, 0
  %1021 = vmatprep.subr.mxu0 0.0
  %1022 = vmatpush1.msra.mxu0 %v946
  %1023 = vmatprep.subr.mxu0 0.0
  %1024 = vmatpush1.msra.mxu0 %v947
  %1025 = vmatprep.subr.mxu0 0.0
  %1026 = vmatpush1.msra.mxu0 %v948
  %1027 = vmatprep.subr.mxu0 0.0
  %1028 = vmatpush1.msra.mxu0 %v949
  %1029 = vmatprep.subr.mxu0 0.0
  %1030 = vmatpush1.msra.mxu0 %v950
  %1031 = vmatprep.subr.mxu0 0.0
  %1032 = vmatpush1.msra.mxu0 %v951
  %1033 = vmatprep.subr.mxu0 0.0
  %1034 = vmatpush1.msra.mxu0 %v952
  %1035 = vmatprep.subr.mxu0 0.0
  %1036 = vmatpush1.msra.mxu0 %v953
  %1037 = vmatprep.subr.mxu0 0.0
  %1038 = vmatpush1.msra.mxu0 %v954
  %1039 = vmatprep.subr.mxu0 0.0
  %1040 = vmatpush1.msra.mxu0 %v955
  %1041 = vmatprep.subr.mxu0 0.0
  %1042 = vmatpush1.msra.mxu0 %v956
  %1043 = vmatprep.subr.mxu0 0.0
  %1044 = vmatpush1.msra.mxu0 %v957
  %1045 = vmatprep.subr.mxu0 0.0
  %1046 = vmatpush1.msra.mxu0 %v958
  %1047 = vmatprep.subr.mxu0 0.0
  %1048 = vmatpush1.msra.mxu0 %v959
  %1049 = vmatprep.subr.mxu0 0.0
  %1050 = vmatpush1.msra.mxu0 %v960
  %1051 = vmatprep.subr.mxu0 0.0
  %1052 = vmatpush1.msra.mxu0 %v961
  %1053 = vmatprep.subr.mxu0 0.0
  %1054 = vmatpush1.msra.mxu0 %v962
  %1055 = vmatprep.subr.mxu0 0.0
  %1056 = vmatpush1.msra.mxu0 %v963
  %1057 = vmatprep.subr.mxu0 0.0
  %1058 = vmatpush1.msra.mxu0 %v964
  %1059 = vmatprep.subr.mxu0 0.0
  %1060 = vmatpush1.msra.mxu0 %v965
  %1061 = vmatprep.subr.mxu0 0.0
  %1062 = vmatpush1.msra.mxu0 %v966
  %1063 = vmatprep.subr.mxu0 0.0
  %1064 = vmatpush1.msra.mxu0 %v967
  %1065 = vmatprep.subr.mxu0 0.0
  %1066 = vmatpush1.msra.mxu0 %v968
  %1067 = vmatprep.subr.mxu0 0.0
  %1068 = vmatpush1.msra.mxu0 %v969
  %1069 = vmatprep.subr.mxu0 0.0
  %1070 = vmatpush1.msra.mxu0 %v970
  %1071 = vmatprep.subr.mxu0 0.0
  %1072 = vmatpush1.msra.mxu0 %v971
  %1073 = vmatprep.subr.mxu0 0.0
  %1074 = vmatpush1.msra.mxu0 %v972
  %1075 = vmatprep.subr.mxu0 0.0
  %1076 = vmatpush1.msra.mxu0 %v973
  %1077 = vmatprep.subr.mxu0 0.0
  %1078 = vmatpush1.msra.mxu0 %v974
  %1079 = vmatprep.subr.mxu0 0.0
  %1080 = vmatpush1.msra.mxu0 %v975
  %1081 = vmatprep.subr.mxu0 0.0
  %1082 = vmatpush1.msra.mxu0 %v976
  %1083 = vmatprep.subr.mxu0 0.0
  %1084 = vmatpush1.msra.mxu0 %v977
  %1085 = vmatprep.mubr.f32.mxu0 %v942
  %1086 = vmatmul.mubr.f32.gmra.mrb[0].mxu0 %v941
  %v1087 = vpop.f32.mrb[0].mxu0
  %v1088 = vadd.f32 0.0, %v1087
  %v1089 = vpop.f32.mrb[0].mxu0
  %1090 = vdwg.mxu0
  %1091 = vmatprep.subr.mxu0 0.0
  %1092 = vmatpush1.msra.mxu0 %v978
  %1093 = vmatprep.subr.mxu0 0.0
  %1094 = vmatpush1.msra.mxu0 %v979
  %1095 = vmatprep.subr.mxu0 0.0
  %1096 = vmatpush1.msra.mxu0 %v980
  %1097 = vmatprep.subr.mxu0 0.0
  %1098 = vmatpush1.msra.mxu0 %v981
  %1099 = vmatprep.subr.mxu0 0.0
  %1100 = vmatpush1.msra.mxu0 %v982
  %1101 = vmatprep.subr.mxu0 0.0
  %1102 = vmatpush1.msra.mxu0 %v983
  %1103 = vmatprep.subr.mxu0 0.0
  %1104 = vmatpush1.msra.mxu0 %v984
  %1105 = vmatprep.subr.mxu0 0.0
  %1106 = vmatpush1.msra.mxu0 %v985
  %1107 = vmatprep.subr.mxu0 0.0
  %1108 = vmatpush1.msra.mxu0 %v986
  %1109 = vmatprep.subr.mxu0 0.0
  %1110 = vmatpush1.msra.mxu0 %v987
  %1111 = vmatprep.subr.mxu0 0.0
  %1112 = vmatpush1.msra.mxu0 %v988
  %1113 = vmatprep.subr.mxu0 0.0
  %1114 = vmatpush1.msra.mxu0 %v989
  %1115 = vmatprep.subr.mxu0 0.0
  %1116 = vmatpush1.msra.mxu0 %v990
  %1117 = vmatprep.subr.mxu0 0.0
  %1118 = vmatpush1.msra.mxu0 %v991
  %1119 = vmatprep.subr.mxu0 0.0
  %1120 = vmatpush1.msra.mxu0 %v992
  %1121 = vmatprep.subr.mxu0 0.0
  %1122 = vmatpush1.msra.mxu0 %v993
  %1123 = vmatprep.subr.mxu0 0.0
  %1124 = vmatpush1.msra.mxu0 %v994
  %1125 = vmatprep.subr.mxu0 0.0
  %1126 = vmatpush1.msra.mxu0 %v995
  %1127 = vmatprep.subr.mxu0 0.0
  %1128 = vmatpush1.msra.mxu0 %v996
  %1129 = vmatprep.subr.mxu0 0.0
  %1130 = vmatpush1.msra.mxu0 %v997
  %1131 = vmatprep.subr.mxu0 0.0
  %1132 = vmatpush1.msra.mxu0 %v998
  %1133 = vmatprep.subr.mxu0 0.0
  %1134 = vmatpush1.msra.mxu0 %v999
  %1135 = vmatprep.subr.mxu0 0.0
  %1136 = vmatpush1.msra.mxu0 %v1000
  %1137 = vmatprep.subr.mxu0 0.0
  %1138 = vmatpush1.msra.mxu0 %v1001
  %1139 = vmatprep.subr.mxu0 0.0
  %1140 = vmatpush1.msra.mxu0 %v1002
  %1141 = vmatprep.subr.mxu0 0.0
  %1142 = vmatpush1.msra.mxu0 %v1003
  %1143 = vmatprep.subr.mxu0 0.0
  %1144 = vmatpush1.msra.mxu0 %v1004
  %1145 = vmatprep.subr.mxu0 0.0
  %1146 = vmatpush1.msra.mxu0 %v1005
  %1147 = vmatprep.subr.mxu0 0.0
  %1148 = vmatpush1.msra.mxu0 %v1006
  %1149 = vmatprep.subr.mxu0 0.0
  %1150 = vmatpush1.msra.mxu0 %v1007
  %1151 = vmatprep.subr.mxu0 0.0
  %1152 = vmatpush1.msra.mxu0 %v1008
  %1153 = vmatprep.subr.mxu0 0.0
  %1154 = vmatpush1.msra.mxu0 %v1009
  %1155 = vmatprep.mubr.f32.mxu0 %v944
  %1156 = vmatmul.mubr.f32.gmra.mrb[0].mxu0 %v943
  %v1157 = vpop.f32.mrb[0].mxu0
  %v1158 = vadd.f32 %v1088, %v1157
  %v1159 = vpop.f32.mrb[0].mxu0
  %1160 = vdwg.mxu0
  %1161 = vmatprep.subr.mxu0 0.0
  %1162 = vmatpush1.msra.mxu0 %v1010
  %1163 = vmatprep.subr.mxu0 0.0
  %1164 = vmatpush1.msra.mxu0 %v1011
  %1165 = vmatprep.subr.mxu0 0.0
  %1166 = vmatpush1.msra.mxu0 %v1012
  %1167 = vmatprep.subr.mxu0 0.0
  %1168 = vmatpush1.msra.mxu0 %v1013
  %1169 = vmatprep.subr.mxu0 0.0
  %1170 = vmatpush1.msra.mxu0 %v1014
  %1171 = vmatprep.subr.mxu0 0.0
  %1172 = vmatpush1.msra.mxu0 %v1015
  %1173 = vmatprep.subr.mxu0 0.0
  %1174 = vmatpush1.msra.mxu0 %v1016
  %1175 = vmatprep.subr.mxu0 0.0
  %1176 = vmatpush1.msra.mxu0 %v1017
  %1177 = vmatprep.subr.mxu0 0.0
  %1178 = vmatpush1.msra.mxu0 0.0
  %1179 = vmatprep.subr.mxu0 0.0
  %1180 = vmatpush1.msra.mxu0 0.0
  %1181 = vmatprep.subr.mxu0 0.0
  %1182 = vmatpush1.msra.mxu0 0.0
  %1183 = vmatprep.subr.mxu0 0.0
  %1184 = vmatpush1.msra.mxu0 0.0
  %1185 = vmatprep.subr.mxu0 0.0
  %1186 = vmatpush1.msra.mxu0 0.0
  %1187 = vmatprep.subr.mxu0 0.0
  %1188 = vmatpush1.msra.mxu0 0.0
  %1189 = vmatprep.subr.mxu0 0.0
  %1190 = vmatpush1.msra.mxu0 0.0
  %1191 = vmatprep.subr.mxu0 0.0
  %1192 = vmatpush1.msra.mxu0 0.0
  %1193 = vmatprep.subr.mxu0 0.0
  %1194 = vmatpush1.msra.mxu0 0.0
  %1195 = vmatprep.subr.mxu0 0.0
  %1196 = vmatpush1.msra.mxu0 0.0
  %1197 = vmatprep.subr.mxu0 0.0
  %1198 = vmatpush1.msra.mxu0 0.0
  %1199 = vmatprep.subr.mxu0 0.0
  %1200 = vmatpush1.msra.mxu0 0.0
  %1201 = vmatprep.subr.mxu0 0.0
  %1202 = vmatpush1.msra.mxu0 0.0
  %1203 = vmatprep.subr.mxu0 0.0
  %1204 = vmatpush1.msra.mxu0 0.0
  %1205 = vmatprep.subr.mxu0 0.0
  %1206 = vmatpush1.msra.mxu0 0.0
  %1207 = vmatprep.subr.mxu0 0.0
  %1208 = vmatpush1.msra.mxu0 0.0
  %1209 = vmatprep.subr.mxu0 0.0
  %1210 = vmatpush1.msra.mxu0 0.0
  %1211 = vmatprep.subr.mxu0 0.0
  %1212 = vmatpush1.msra.mxu0 0.0
  %1213 = vmatprep.subr.mxu0 0.0
  %1214 = vmatpush1.msra.mxu0 0.0
  %1215 = vmatprep.subr.mxu0 0.0
  %1216 = vmatpush1.msra.mxu0 0.0
  %1217 = vmatprep.subr.mxu0 0.0
  %1218 = vmatpush1.msra.mxu0 0.0
  %1219 = vmatprep.subr.mxu0 0.0
  %1220 = vmatpush1.msra.mxu0 0.0
  %1221 = vmatprep.subr.mxu0 0.0
  %1222 = vmatpush1.msra.mxu0 0.0
  %1223 = vmatprep.subr.mxu0 0.0
  %1224 = vmatpush1.msra.mxu0 0.0
  %1225 = vmatprep.mubr.f32.mxu0 0.0
  %1226 = vmatmul.mubr.f32.gmra.mrb[0].mxu0 %v1019
  %v1227 = vpop.f32.mrb[0].mxu0
  %v1228 = vadd.f32 %v1158, %v1227
  %v1229 = vpop.f32.mrb[0].mxu0
  %1230 = vdwg.mxu0
  %s1231 = scalar_lea.vmem [#allocation2], 24
  %1232 = vst [vmem:[%s1231] sm:$0xff] %v1228
  %v1233 = vrot.slane %v1228, 4
  %v1234 = vadd.f32 %v1228, %v1233
  %v1235 = vrot.slane %v1234, 2
  %v1236 = vadd.f32 %v1234, %v1235
  %v1237 = vrot.slane %v1236, 1
  %v1238 = vadd.f32 %v1236, %v1237
  %v1239 = vadd.f32 %v931, %v1238
  %v1240 = vmul.f32 %v1228, %v1228
  %v1241 = vrot.slane %v1240, 4
  %v1242 = vadd.f32 %v1240, %v1241
  %v1243 = vrot.slane %v1242, 2
  %v1244 = vadd.f32 %v1242, %v1243
  %v1245 = vrot.slane %v1244, 1
  %v1246 = vadd.f32 %v1244, %v1245
  %v1247 = vadd.f32 %v939, %v1246
  %v1248 = vrcp.pop 32.0
  %v1249 = vmul.f32 %v1239, %v1248
  %v1250 = vmul.f32 %v1247, %v1248
  %v1251 = vmul.f32 %v1249, %v1249
  %v1252 = vsub.f32 %v1250, %v1251
  %v1253 = vmax.f32 %v1252, 0.0
  %v1254 = vld [vmem:[%s2] sm:$0x1]
  %v1255 = vadd.f32 %v1253, 1e-05
  %v1256 = vrsqrt.pop %v1255
  %v1257 = vmul.f32 %v1254, %v1256
  %v1258 = vld [vmem:[%s3] sm:$0x1]
  %v1259 = vmul.f32 %v1249, %v1257
  %v1260 = vsub.f32 %v1258, %v1259
  %v1261 = vld [vmem:[#allocation2] sm:$0xff]
  %v1263 = vlaneseq
  %v1264 = vshrl.u32 %v1263, 7
  %v1265 = vsub.s32 0, %v1264
  %v1266 = vrot.slane %v1257, %v1265
  %v1268 = vmul.f32 %v1261, %v1266
  %v1270 = vlaneseq
  %v1271 = vshrl.u32 %v1270, 7
  %v1272 = vsub.s32 0, %v1271
  %v1273 = vrot.slane %v1260, %v1272
  %v1275 = vadd.f32 %v1268, %v1273
  %v1276 = vmax.f32 %v1275, 0.0
  %v1277 = vld [vmem:[%s615] sm:$0xff]
  %v1278 = vmul.f32 %v1277, %v1266
  %v1279 = vadd.f32 %v1278, %v1273
  %v1280 = vmax.f32 %v1279, 0.0
  %v1281 = vmax.f32 %v1276, %v1280
  %v1282 = vld [vmem:[%s923] sm:$0xff]
  %v1283 = vmul.f32 %v1282, %v1266
  %v1284 = vadd.f32 %v1283, %v1273
  %v1285 = vmax.f32 %v1284, 0.0
  %v1286 = vmax.f32 %v1281, %v1285
  %v1287 = vld [vmem:[%s1231] sm:$0xff]
  %v1288 = vmul.f32 %v1287, %v1266
  %v1289 = vadd.f32 %v1288, %v1273
  %v1290 = vmax.f32 %v1289, 0.0
  %v1291 = vmax.f32 %v1286, %v1290
  %1292 = vst [vmem:[%s4] sm:$0xff] %v1291
  // Predicated region
  $region18: #{active_mnist_cnn_forward.5} parent=0 // pred_check
    _
  $region19: #{active_mnist_cnn_forward.5} parent=0 // pred_check_branch
    %1294 = sbr.rel (0) target = $region21
  $region20: #{active_mnist_cnn_forward.5} parent=0 // pred_region
    _
  $region21: #{active_mnist_cnn_forward.5} parent=0 // pred_fallthru
    _
  // Predicated region
  $region22: #{active_mnist_cnn_forward.5} parent=0 // pred_check
    _
  $region23: #{active_mnist_cnn_forward.5} parent=0 // pred_check_branch
    %1296 = sbr.rel (0) target = $region25
  $region24: #{active_mnist_cnn_forward.5} parent=0 // pred_region
    _
  $region25: #{active_mnist_cnn_forward.5} parent=0 // pred_fallthru
    _

</llo_original>
